<compile_context>
chip_gen: v6e
topology: v6e:2x2x1
jax: 0.10.0
libtpu: 0.0.40
codegen_flags: <defaults>
</compile_context>

<pallas_src>
import jax
import jax.numpy as jnp
from jax.experimental import pallas as pl
from jax.experimental.pallas import tpu as pltpu

_HIGHEST = jax.lax.Precision.HIGHEST


def mlp_kernel(x_ref, w1_ref, b1_ref, w2_ref, b2_ref, w3_ref, b3_ref,
               w4_ref, b4_ref, out_ref):
    # x_ref: (1, TB) float32 -- batch on the 128-lane axis.
    x = x_ref[...]

    # linear_1 (1 -> 10) + ReLU: outer product -> VPU broadcast multiply.
    # (10, 1) * (1, TB) -> (10, TB)
    h = jnp.maximum(w1_ref[...] * x + b1_ref[...], 0.0)

    # linear_2 (10 -> 20) + ReLU: (20, 10) @ (10, TB) -> (20, TB), dense N.
    h = jnp.maximum(
        jnp.dot(w2_ref[...], h, preferred_element_type=jnp.float32,
                precision=_HIGHEST) + b2_ref[...], 0.0)

    # linear_3 (20 -> 10) + ReLU: (10, 20) @ (20, TB) -> (10, TB)
    h = jnp.maximum(
        jnp.dot(w3_ref[...], h, preferred_element_type=jnp.float32,
                precision=_HIGHEST) + b3_ref[...], 0.0)

    # output_layer (10 -> 1), no activation: (1, 10) @ (10, TB) -> (1, TB)
    out_ref[...] = (jnp.dot(w4_ref[...], h, preferred_element_type=jnp.float32,
                            precision=_HIGHEST) + b4_ref[...])


def _pick_tb(B, max_tb):
    """Pick a lane-dense batch tile.

    Large tiles amortize the ~0.35 us per-grid-step overhead; for big batches we
    keep at least two grid steps so the 'parallel' axis can feed both v7x
    TensorCores.  Tiny batches get a 128-lane tile (overhead is negligible there).
    """
    lanes = 128
    b_padded = pl.cdiv(B, lanes) * lanes
    if b_padded <= 2 * lanes:
        return lanes
    half = pl.cdiv(pl.cdiv(B, 2), lanes) * lanes       # >= 2 balanced steps
    return max(lanes, min(max_tb, half))


def _run_pallas(xt, pt, B, tb, single_buffer_consts):
    """Build and invoke the pallas_call for a (1, B) input."""
    grid = (pl.cdiv(B, tb),)

    def const_spec(a):
        # Constant block index -> fetched once, VMEM-resident across the grid.
        if single_buffer_consts:
            return pl.BlockSpec(a.shape, lambda i: (0, 0),
                                pipeline_mode=pl.Buffered(buffer_count=1))
        return pl.BlockSpec(a.shape, lambda i: (0, 0))

    (w1t, b1t, w2t, b2t, w3t, b3t, w4t, b4t) = pt

    # Advisory cost: ~2*(1*10 + 10*20 + 20*10 + 10*1) flops per batch element.
    cost = pl.CostEstimate(flops=840 * B, transcendentals=0,
                           bytes_accessed=8 * B + 4 * 461)

    return pl.pallas_call(
        mlp_kernel,
        out_shape=jax.ShapeDtypeStruct((1, B), jnp.float32),
        grid=grid,
        in_specs=[
            pl.BlockSpec((1, tb), lambda i: (0, i)),      # x tile (lane-dense)
            const_spec(w1t), const_spec(b1t),
            const_spec(w2t), const_spec(b2t),
            const_spec(w3t), const_spec(b3t),
            const_spec(w4t), const_spec(b4t),
        ],
        out_specs=pl.BlockSpec((1, tb), lambda i: (0, i)),   # lane-dense output
        compiler_params=pltpu.CompilerParams(
            dimension_semantics=("parallel",),                # megacore on v7x
        ),
        cost_estimate=cost,
    )(xt, w1t, b1t, w2t, b2t, w3t, b3t, w4t, b4t)


def mlp_forward(x, params, *, tb=None, max_tb=16384):
    """x: (B, 1) float32. params: dict of weights (in,out) / biases (1,out).

    Returns (B, 1) float32, identical semantics to the PyTorch module.
    `tb` (batch tile, multiple of 128) is auto-picked if None; `max_tb` is the
    sweepable cap (8K-32K is the sweet spot per the roofline measurements).
    """
    B = x.shape[0]
    # (B, 1) -> (1, B): pure reshape (bitcast), batch lands on the lane axis.
    xt = x.reshape(1, B)

    # Transposed parameters: weight (out_f, in_f), bias (out_f, 1).
    pt = (params["w1"].T, params["b1"].T,    # (10, 1), (10, 1)
          params["w2"].T, params["b2"].T,    # (20, 10), (20, 1)
          params["w3"].T, params["b3"].T,    # (10, 20), (10, 1)
          params["w4"].T, params["b4"].T)    # (1, 10),  (1, 1)

    if tb is None:
        tb = _pick_tb(B, max_tb)

    try:
        out_t = _run_pallas(xt, pt, B, tb, single_buffer_consts=True)
    except Exception:
        # Fallback if this JAX build rejects pipeline_mode=pl.Buffered(1) on the
        # constant operands; semantics and layout are identical.
        out_t = _run_pallas(xt, pt, B, tb, single_buffer_consts=False)

    # Back to the module's (B, 1) layout (again just a reshape).
    return out_t.reshape(B, 1)


def init_params(key):
    """Deterministic init mimicking nn.Linear defaults (uniform +-1/sqrt(fan_in))."""
    dims = [(1, 10), (10, 20), (20, 10), (10, 1)]
    params = {}
    keys = jax.random.split(key, 2 * len(dims))
    for i, (fan_in, fan_out) in enumerate(dims):
        bound = 1.0 / (fan_in ** 0.5)
        w = jax.random.uniform(keys[2 * i], (fan_in, fan_out),
                               minval=-bound, maxval=bound, dtype=jnp.float32)
        b = jax.random.uniform(keys[2 * i + 1], (1, fan_out),
                               minval=-bound, maxval=bound, dtype=jnp.float32)
        params[f"w{i + 1}"] = w
        params[f"b{i + 1}"] = b
    return params


def mlp_reference(x, p):
    h = jnp.maximum(jnp.dot(x, p["w1"], precision=_HIGHEST) + p["b1"], 0.0)
    h = jnp.maximum(jnp.dot(h, p["w2"], precision=_HIGHEST) + p["b2"], 0.0)
    h = jnp.maximum(jnp.dot(h, p["w3"], precision=_HIGHEST) + p["b3"], 0.0)
    return jnp.dot(h, p["w4"], precision=_HIGHEST) + p["b4"]


if __name__ == "__main__":
    key = jax.random.PRNGKey(0)
    pkey, xkey = jax.random.split(key)
    params = init_params(pkey)

    # Small deterministic example; B not a multiple of 128 exercises the
    # ragged last block (no host-side pad needed).
    B = 200
    x = jax.random.normal(xkey, (B, 1), dtype=jnp.float32)

    out = mlp_forward(x, params)
    out = jax.block_until_ready(out)

    ref = mlp_reference(x, params)
    assert out.shape == (B, 1), out.shape
    assert jnp.allclose(out, ref, atol=1e-5, rtol=1e-5), (out, ref)

    print("KERNEL_OK")
</pallas_src>

<mosaic_0001>
module attributes {stable_mosaic.version = 11 : i64} {
  func.func @mlp_kernel(%arg0: i32, %arg1: memref<1x128xf32, #tpu.memory_space<vmem>>, %arg2: memref<10x1xf32, #tpu.memory_space<vmem>>, %arg3: memref<10x1xf32, #tpu.memory_space<vmem>>, %arg4: memref<20x10xf32, #tpu.memory_space<vmem>>, %arg5: memref<20x1xf32, #tpu.memory_space<vmem>>, %arg6: memref<10x20xf32, #tpu.memory_space<vmem>>, %arg7: memref<10x1xf32, #tpu.memory_space<vmem>>, %arg8: memref<1x10xf32, #tpu.memory_space<vmem>>, %arg9: memref<1x1xf32, #tpu.memory_space<vmem>>, %arg10: memref<1x128xf32, #tpu.memory_space<vmem>>) attributes {dimension_semantics = [#tpu.dimension_semantics<parallel>], iteration_bounds = array<i64: 2>, scalar_prefetch = 0 : i64, scratch_operands = 0 : i64, tpu.core_type = #tpu.core_type<tc>, window_params = [{transform_indices = @transform_0, window_bounds = array<i64: 1, 128>}, {pipeline_mode = #tpu.pipeline_mode<synchronous>, transform_indices = @transform_1, window_bounds = array<i64: 10, 1>}, {pipeline_mode = #tpu.pipeline_mode<synchronous>, transform_indices = @transform_2, window_bounds = array<i64: 10, 1>}, {pipeline_mode = #tpu.pipeline_mode<synchronous>, transform_indices = @transform_3, window_bounds = array<i64: 20, 10>}, {pipeline_mode = #tpu.pipeline_mode<synchronous>, transform_indices = @transform_4, window_bounds = array<i64: 20, 1>}, {pipeline_mode = #tpu.pipeline_mode<synchronous>, transform_indices = @transform_5, window_bounds = array<i64: 10, 20>}, {pipeline_mode = #tpu.pipeline_mode<synchronous>, transform_indices = @transform_6, window_bounds = array<i64: 10, 1>}, {pipeline_mode = #tpu.pipeline_mode<synchronous>, transform_indices = @transform_7, window_bounds = array<i64: 1, 10>}, {pipeline_mode = #tpu.pipeline_mode<synchronous>, transform_indices = @transform_8, window_bounds = array<i64: 1, 1>}, {transform_indices = @transform_9, window_bounds = array<i64: 1, 128>}]} {
    %c0 = arith.constant 0 : index
    %c0_0 = arith.constant 0 : index
    %0 = vector.load %arg1[%c0, %c0_0] : memref<1x128xf32, #tpu.memory_space<vmem>>, vector<1x128xf32>
    %c0_1 = arith.constant 0 : index
    %c0_2 = arith.constant 0 : index
    %1 = vector.load %arg2[%c0_1, %c0_2] : memref<10x1xf32, #tpu.memory_space<vmem>>, vector<10x1xf32>
    %2 = vector.broadcast %1 : vector<10x1xf32> to vector<10x128xf32>
    %3 = vector.broadcast %0 : vector<1x128xf32> to vector<10x128xf32>
    %4 = arith.mulf %2, %3 : vector<10x128xf32>
    %c0_3 = arith.constant 0 : index
    %c0_4 = arith.constant 0 : index
    %5 = vector.load %arg3[%c0_3, %c0_4] : memref<10x1xf32, #tpu.memory_space<vmem>>, vector<10x1xf32>
    %6 = vector.broadcast %5 : vector<10x1xf32> to vector<10x128xf32>
    %7 = arith.addf %4, %6 : vector<10x128xf32>
    %cst = arith.constant 0.000000e+00 : f32
    %8 = vector.broadcast %cst : f32 to vector<10x128xf32>
    %9 = arith.maximumf %7, %8 : vector<10x128xf32>
    %c0_5 = arith.constant 0 : index
    %c0_6 = arith.constant 0 : index
    %10 = vector.load %arg4[%c0_5, %c0_6] : memref<20x10xf32, #tpu.memory_space<vmem>>, vector<20x10xf32>
    %cst_7 = arith.constant dense<0.000000e+00> : vector<20x128xf32>
    %11 = tpu.matmul %10, %9, %cst_7 {dimension_numbers = #tpu.dot_dimension_numbers<[1], [0], [0], [1], [0, 0, 1, 1], [], []>, precision = #tpu.contract_precision<fp32>} : vector<20x10xf32>, vector<10x128xf32>, vector<20x128xf32> -> vector<20x128xf32>
    %c0_8 = arith.constant 0 : index
    %c0_9 = arith.constant 0 : index
    %12 = vector.load %arg5[%c0_8, %c0_9] : memref<20x1xf32, #tpu.memory_space<vmem>>, vector<20x1xf32>
    %13 = vector.broadcast %12 : vector<20x1xf32> to vector<20x128xf32>
    %14 = arith.addf %11, %13 : vector<20x128xf32>
    %cst_10 = arith.constant 0.000000e+00 : f32
    %15 = vector.broadcast %cst_10 : f32 to vector<20x128xf32>
    %16 = arith.maximumf %14, %15 : vector<20x128xf32>
    %c0_11 = arith.constant 0 : index
    %c0_12 = arith.constant 0 : index
    %17 = vector.load %arg6[%c0_11, %c0_12] : memref<10x20xf32, #tpu.memory_space<vmem>>, vector<10x20xf32>
    %cst_13 = arith.constant dense<0.000000e+00> : vector<10x128xf32>
    %18 = tpu.matmul %17, %16, %cst_13 {dimension_numbers = #tpu.dot_dimension_numbers<[1], [0], [0], [1], [0, 0, 1, 1], [], []>, precision = #tpu.contract_precision<fp32>} : vector<10x20xf32>, vector<20x128xf32>, vector<10x128xf32> -> vector<10x128xf32>
    %c0_14 = arith.constant 0 : index
    %c0_15 = arith.constant 0 : index
    %19 = vector.load %arg7[%c0_14, %c0_15] : memref<10x1xf32, #tpu.memory_space<vmem>>, vector<10x1xf32>
    %20 = vector.broadcast %19 : vector<10x1xf32> to vector<10x128xf32>
    %21 = arith.addf %18, %20 : vector<10x128xf32>
    %cst_16 = arith.constant 0.000000e+00 : f32
    %22 = vector.broadcast %cst_16 : f32 to vector<10x128xf32>
    %23 = arith.maximumf %21, %22 : vector<10x128xf32>
    %c0_17 = arith.constant 0 : index
    %c0_18 = arith.constant 0 : index
    %24 = vector.load %arg8[%c0_17, %c0_18] : memref<1x10xf32, #tpu.memory_space<vmem>>, vector<1x10xf32>
    %cst_19 = arith.constant dense<0.000000e+00> : vector<1x128xf32>
    %25 = tpu.matmul %24, %23, %cst_19 {dimension_numbers = #tpu.dot_dimension_numbers<[1], [0], [0], [1], [0, 0, 1, 1], [], []>, precision = #tpu.contract_precision<fp32>} : vector<1x10xf32>, vector<10x128xf32>, vector<1x128xf32> -> vector<1x128xf32>
    %c0_20 = arith.constant 0 : index
    %c0_21 = arith.constant 0 : index
    %26 = vector.load %arg9[%c0_20, %c0_21] : memref<1x1xf32, #tpu.memory_space<vmem>>, vector<1x1xf32>
    %27 = vector.broadcast %26 : vector<1x1xf32> to vector<1x128xf32>
    %28 = arith.addf %25, %27 : vector<1x128xf32>
    %c0_22 = arith.constant 0 : index
    %c0_23 = arith.constant 0 : index
    %29 = vector.load %arg10[%c0_22, %c0_23] : memref<1x128xf32, #tpu.memory_space<vmem>>, vector<1x128xf32>
    tpu.vector_store %arg10[%c0_22, %c0_23], %28 {strides = array<i32>} : memref<1x128xf32, #tpu.memory_space<vmem>>, vector<1x128xf32>,
    return
  }
  func.func @transform_0(%arg0: i32) -> (i32, i32) {
    %c0_i32 = arith.constant 0 : i32
    %c0_i32_0 = arith.constant 0 : i32
    return %c0_i32, %arg0 : i32, i32
  }
  func.func @transform_1(%arg0: i32) -> (i32, i32) {
    %c0_i32 = arith.constant 0 : i32
    %c0_i32_0 = arith.constant 0 : i32
    %c0_i32_1 = arith.constant 0 : i32
    return %c0_i32, %c0_i32_0 : i32, i32
  }
  func.func @transform_2(%arg0: i32) -> (i32, i32) {
    %c0_i32 = arith.constant 0 : i32
    %c0_i32_0 = arith.constant 0 : i32
    %c0_i32_1 = arith.constant 0 : i32
    return %c0_i32, %c0_i32_0 : i32, i32
  }
  func.func @transform_3(%arg0: i32) -> (i32, i32) {
    %c0_i32 = arith.constant 0 : i32
    %c0_i32_0 = arith.constant 0 : i32
    %c0_i32_1 = arith.constant 0 : i32
    return %c0_i32, %c0_i32_0 : i32, i32
  }
  func.func @transform_4(%arg0: i32) -> (i32, i32) {
    %c0_i32 = arith.constant 0 : i32
    %c0_i32_0 = arith.constant 0 : i32
    %c0_i32_1 = arith.constant 0 : i32
    return %c0_i32, %c0_i32_0 : i32, i32
  }
  func.func @transform_5(%arg0: i32) -> (i32, i32) {
    %c0_i32 = arith.constant 0 : i32
    %c0_i32_0 = arith.constant 0 : i32
    %c0_i32_1 = arith.constant 0 : i32
    return %c0_i32, %c0_i32_0 : i32, i32
  }
  func.func @transform_6(%arg0: i32) -> (i32, i32) {
    %c0_i32 = arith.constant 0 : i32
    %c0_i32_0 = arith.constant 0 : i32
    %c0_i32_1 = arith.constant 0 : i32
    return %c0_i32, %c0_i32_0 : i32, i32
  }
  func.func @transform_7(%arg0: i32) -> (i32, i32) {
    %c0_i32 = arith.constant 0 : i32
    %c0_i32_0 = arith.constant 0 : i32
    %c0_i32_1 = arith.constant 0 : i32
    return %c0_i32, %c0_i32_0 : i32, i32
  }
  func.func @transform_8(%arg0: i32) -> (i32, i32) {
    %c0_i32 = arith.constant 0 : i32
    %c0_i32_0 = arith.constant 0 : i32
    %c0_i32_1 = arith.constant 0 : i32
    return %c0_i32, %c0_i32_0 : i32, i32
  }
  func.func @transform_9(%arg0: i32) -> (i32, i32) {
    %c0_i32 = arith.constant 0 : i32
    %c0_i32_0 = arith.constant 0 : i32
    return %c0_i32, %arg0 : i32, i32
  }
}

module attributes {stable_mosaic.version = 11 : i64} {
  func.func @mlp_kernel(%arg0: i32, %arg1: memref<1x128xf32, #tpu.memory_space<vmem>>, %arg2: memref<10x1xf32, #tpu.memory_space<vmem>>, %arg3: memref<10x1xf32, #tpu.memory_space<vmem>>, %arg4: memref<20x10xf32, #tpu.memory_space<vmem>>, %arg5: memref<20x1xf32, #tpu.memory_space<vmem>>, %arg6: memref<10x20xf32, #tpu.memory_space<vmem>>, %arg7: memref<10x1xf32, #tpu.memory_space<vmem>>, %arg8: memref<1x10xf32, #tpu.memory_space<vmem>>, %arg9: memref<1x1xf32, #tpu.memory_space<vmem>>, %arg10: memref<1x128xf32, #tpu.memory_space<vmem>>) attributes {dimension_semantics = [#tpu.dimension_semantics<parallel>], iteration_bounds = array<i64: 2>, scalar_prefetch = 0 : i64, scratch_operands = 0 : i64, tpu.core_type = #tpu.core_type<tc>, window_params = [{transform_indices = @transform_0, window_bounds = array<i64: 1, 128>}, {pipeline_mode = #tpu.pipeline_mode<synchronous>, transform_indices = @transform_1, window_bounds = array<i64: 10, 1>}, {pipeline_mode = #tpu.pipeline_mode<synchronous>, transform_indices = @transform_2, window_bounds = array<i64: 10, 1>}, {pipeline_mode = #tpu.pipeline_mode<synchronous>, transform_indices = @transform_3, window_bounds = array<i64: 20, 10>}, {pipeline_mode = #tpu.pipeline_mode<synchronous>, transform_indices = @transform_4, window_bounds = array<i64: 20, 1>}, {pipeline_mode = #tpu.pipeline_mode<synchronous>, transform_indices = @transform_5, window_bounds = array<i64: 10, 20>}, {pipeline_mode = #tpu.pipeline_mode<synchronous>, transform_indices = @transform_6, window_bounds = array<i64: 10, 1>}, {pipeline_mode = #tpu.pipeline_mode<synchronous>, transform_indices = @transform_7, window_bounds = array<i64: 1, 10>}, {pipeline_mode = #tpu.pipeline_mode<synchronous>, transform_indices = @transform_8, window_bounds = array<i64: 1, 1>}, {transform_indices = @transform_9, window_bounds = array<i64: 1, 128>}]} {
    %c0 = arith.constant 0 : index
    %c0_0 = arith.constant 0 : index
    %0 = vector.load %arg1[%c0, %c0_0] : memref<1x128xf32, #tpu.memory_space<vmem>>, vector<1x128xf32>
    %c0_1 = arith.constant 0 : index
    %c0_2 = arith.constant 0 : index
    %1 = vector.load %arg2[%c0_1, %c0_2] : memref<10x1xf32, #tpu.memory_space<vmem>>, vector<10x1xf32>
    %2 = vector.broadcast %1 : vector<10x1xf32> to vector<10x128xf32>
    %3 = vector.broadcast %0 : vector<1x128xf32> to vector<10x128xf32>
    %4 = arith.mulf %2, %3 : vector<10x128xf32>
    %c0_3 = arith.constant 0 : index
    %c0_4 = arith.constant 0 : index
    %5 = vector.load %arg3[%c0_3, %c0_4] : memref<10x1xf32, #tpu.memory_space<vmem>>, vector<10x1xf32>
    %6 = vector.broadcast %5 : vector<10x1xf32> to vector<10x128xf32>
    %7 = arith.addf %4, %6 : vector<10x128xf32>
    %cst = arith.constant 0.000000e+00 : f32
    %8 = vector.broadcast %cst : f32 to vector<10x128xf32>
    %9 = arith.maximumf %7, %8 : vector<10x128xf32>
    %c0_5 = arith.constant 0 : index
    %c0_6 = arith.constant 0 : index
    %10 = vector.load %arg4[%c0_5, %c0_6] : memref<20x10xf32, #tpu.memory_space<vmem>>, vector<20x10xf32>
    %cst_7 = arith.constant dense<0.000000e+00> : vector<20x128xf32>
    %11 = tpu.matmul %10, %9, %cst_7 {dimension_numbers = #tpu.dot_dimension_numbers<[1], [0], [0], [1], [0, 0, 1, 1], [], []>, precision = #tpu.contract_precision<fp32>} : vector<20x10xf32>, vector<10x128xf32>, vector<20x128xf32> -> vector<20x128xf32>
    %c0_8 = arith.constant 0 : index
    %c0_9 = arith.constant 0 : index
    %12 = vector.load %arg5[%c0_8, %c0_9] : memref<20x1xf32, #tpu.memory_space<vmem>>, vector<20x1xf32>
    %13 = vector.broadcast %12 : vector<20x1xf32> to vector<20x128xf32>
    %14 = arith.addf %11, %13 : vector<20x128xf32>
    %cst_10 = arith.constant 0.000000e+00 : f32
    %15 = vector.broadcast %cst_10 : f32 to vector<20x128xf32>
    %16 = arith.maximumf %14, %15 : vector<20x128xf32>
    %c0_11 = arith.constant 0 : index
    %c0_12 = arith.constant 0 : index
    %17 = vector.load %arg6[%c0_11, %c0_12] : memref<10x20xf32, #tpu.memory_space<vmem>>, vector<10x20xf32>
    %cst_13 = arith.constant dense<0.000000e+00> : vector<10x128xf32>
    %18 = tpu.matmul %17, %16, %cst_13 {dimension_numbers = #tpu.dot_dimension_numbers<[1], [0], [0], [1], [0, 0, 1, 1], [], []>, precision = #tpu.contract_precision<fp32>} : vector<10x20xf32>, vector<20x128xf32>, vector<10x128xf32> -> vector<10x128xf32>
    %c0_14 = arith.constant 0 : index
    %c0_15 = arith.constant 0 : index
    %19 = vector.load %arg7[%c0_14, %c0_15] : memref<10x1xf32, #tpu.memory_space<vmem>>, vector<10x1xf32>
    %20 = vector.broadcast %19 : vector<10x1xf32> to vector<10x128xf32>
    %21 = arith.addf %18, %20 : vector<10x128xf32>
    %cst_16 = arith.constant 0.000000e+00 : f32
    %22 = vector.broadcast %cst_16 : f32 to vector<10x128xf32>
    %23 = arith.maximumf %21, %22 : vector<10x128xf32>
    %c0_17 = arith.constant 0 : index
    %c0_18 = arith.constant 0 : index
    %24 = vector.load %arg8[%c0_17, %c0_18] : memref<1x10xf32, #tpu.memory_space<vmem>>, vector<1x10xf32>
    %cst_19 = arith.constant dense<0.000000e+00> : vector<1x128xf32>
    %25 = tpu.matmul %24, %23, %cst_19 {dimension_numbers = #tpu.dot_dimension_numbers<[1], [0], [0], [1], [0, 0, 1, 1], [], []>, precision = #tpu.contract_precision<fp32>} : vector<1x10xf32>, vector<10x128xf32>, vector<1x128xf32> -> vector<1x128xf32>
    %c0_20 = arith.constant 0 : index
    %c0_21 = arith.constant 0 : index
    %26 = vector.load %arg9[%c0_20, %c0_21] : memref<1x1xf32, #tpu.memory_space<vmem>>, vector<1x1xf32>
    %27 = vector.broadcast %26 : vector<1x1xf32> to vector<1x128xf32>
    %28 = arith.addf %25, %27 : vector<1x128xf32>
    %c0_22 = arith.constant 0 : index
    %c0_23 = arith.constant 0 : index
    %29 = vector.load %arg10[%c0_22, %c0_23] : memref<1x128xf32, #tpu.memory_space<vmem>>, vector<1x128xf32>
    tpu.vector_store %arg10[%c0_22, %c0_23], %28 {strides = array<i32>} : memref<1x128xf32, #tpu.memory_space<vmem>>, vector<1x128xf32>,
    return
  }
  func.func @transform_0(%arg0: i32) -> (i32, i32) {
    %c0_i32 = arith.constant 0 : i32
    %c0_i32_0 = arith.constant 0 : i32
    return %c0_i32, %arg0 : i32, i32
  }
  func.func @transform_1(%arg0: i32) -> (i32, i32) {
    %c0_i32 = arith.constant 0 : i32
    %c0_i32_0 = arith.constant 0 : i32
    %c0_i32_1 = arith.constant 0 : i32
    return %c0_i32, %c0_i32_0 : i32, i32
  }
  func.func @transform_2(%arg0: i32) -> (i32, i32) {
    %c0_i32 = arith.constant 0 : i32
    %c0_i32_0 = arith.constant 0 : i32
    %c0_i32_1 = arith.constant 0 : i32
    return %c0_i32, %c0_i32_0 : i32, i32
  }
  func.func @transform_3(%arg0: i32) -> (i32, i32) {
    %c0_i32 = arith.constant 0 : i32
    %c0_i32_0 = arith.constant 0 : i32
    %c0_i32_1 = arith.constant 0 : i32
    return %c0_i32, %c0_i32_0 : i32, i32
  }
  func.func @transform_4(%arg0: i32) -> (i32, i32) {
    %c0_i32 = arith.constant 0 : i32
    %c0_i32_0 = arith.constant 0 : i32
    %c0_i32_1 = arith.constant 0 : i32
    return %c0_i32, %c0_i32_0 : i32, i32
  }
  func.func @transform_5(%arg0: i32) -> (i32, i32) {
    %c0_i32 = arith.constant 0 : i32
    %c0_i32_0 = arith.constant 0 : i32
    %c0_i32_1 = arith.constant 0 : i32
    return %c0_i32, %c0_i32_0 : i32, i32
  }
  func.func @transform_6(%arg0: i32) -> (i32, i32) {
    %c0_i32 = arith.constant 0 : i32
    %c0_i32_0 = arith.constant 0 : i32
    %c0_i32_1 = arith.constant 0 : i32
    return %c0_i32, %c0_i32_0 : i32, i32
  }
  func.func @transform_7(%arg0: i32) -> (i32, i32) {
    %c0_i32 = arith.constant 0 : i32
    %c0_i32_0 = arith.constant 0 : i32
    %c0_i32_1 = arith.constant 0 : i32
    return %c0_i32, %c0_i32_0 : i32, i32
  }
  func.func @transform_8(%arg0: i32) -> (i32, i32) {
    %c0_i32 = arith.constant 0 : i32
    %c0_i32_0 = arith.constant 0 : i32
    %c0_i32_1 = arith.constant 0 : i32
    return %c0_i32, %c0_i32_0 : i32, i32
  }
  func.func @transform_9(%arg0: i32) -> (i32, i32) {
    %c0_i32 = arith.constant 0 : i32
    %c0_i32_0 = arith.constant 0 : i32
    return %c0_i32, %arg0 : i32, i32
  }
}

</mosaic_0001>

<llo_original>
// kernel: tpu_custom_call.1
$region0: #{tpu_custom_call.1}
  #allocation0 [shape = 'u32[]', space=smem, size = 0x4, offset = 0x4, fixed_abs, tag = 'smem constant byte address 0x4 - core index']
  #allocation1 [shape = 'u32[144,128]{1,0:T(1,128)}', space=vmem, size = 0x12000, scoped, tag = 'internal scratch']
  #allocation2 [shape = 'f32[1,1]{1,0:T(1,128)S(1)}', space=vmem, size = 0x200, scoped, tag = 'scoped memory for tpu_custom_call.1']
  %s0 = inlined_call_operand.vmem [shape: f32[1,200], index: 0, kind: input, shape index: {}]
  %s1 = inlined_call_operand.vmem [shape: f32[10,1], index: 1, kind: input, shape index: {}]
  %s2 = inlined_call_operand.vmem [shape: f32[10,1], index: 2, kind: input, shape index: {}]
  %s3 = inlined_call_operand.vmem [shape: f32[20,10], index: 3, kind: input, shape index: {}]
  %s4 = inlined_call_operand.vmem [shape: f32[20,1], index: 4, kind: input, shape index: {}]
  %s5 = inlined_call_operand.vmem [shape: f32[10,20], index: 5, kind: input, shape index: {}]
  %s6 = inlined_call_operand.vmem [shape: f32[10,1], index: 6, kind: input, shape index: {}]
  %s7 = inlined_call_operand.vmem [shape: f32[1,10], index: 7, kind: input, shape index: {}]
  %s8 = inlined_call_operand.<no memory space> [shape: f32[1,1], index: 8, kind: input, shape index: {}]
  %s9 = inlined_call_operand.hbm [shape: f32[1,200], index: 9, kind: output, shape index: {}]
  %s10 = sld [smem:[#allocation0]]
  $region69: #{tpu_custom_call.1} parent=0
    _
  %s12 = ssub.s32 1, %s10
  %s13 = scalar_select 0, %s12, %s10
  %v14 = vstv %s8
  %15 = vst [vmem:[#allocation2] sm:$0x1] %v14
  $region1: #{tpu_custom_call.1} parent=0
    #allocation3 [shape = 'u8[1024]{0}', space=vmem, size = 0x400, scoped, tag = 'output window, operand 0']
    #allocation4 [shape = 's32[2]{0}', space=sflag, size = 0x8, scoped, tag = 'scoped memory for tpu_custom_call.1']
    %16 = vsyncpa [#allocation4], 0
    %s17 = scalar_lea.sflag [#allocation4], 1
    %18 = vsyncpa %s17, 0
    loop: start=0, step=1, limit=4
    $region2: #{tpu_custom_call.1} parent=1 // loop_pre_header
      _
    $region3: #{tpu_custom_call.1} parent=1 // loop_header
      %s20 = sphi 0, %s24
      %p21 = scmp.ge.s32.totalorder %s20, 4
      %s30 = sphi 0, %s32
      %s33 = sphi 0, %s30
      %s34 = sphi 0, %s33
      %s50 = sphi 0, %s34
      %s54 = sphi 0, %s54
      %s56 = sphi 0, %s54
      %s57 = sphi 0, %s56
      %s71 = sphi 0, %s57
      %s75 = sphi 0, %s75
      %s77 = sphi 0, %s75
      %s78 = sphi 0, %s77
      %s92 = sphi 0, %s78
      %s96 = sphi 0, %s96
      %s98 = sphi 0, %s96
      %s99 = sphi 0, %s98
      %s113 = sphi 0, %s99
      %s117 = sphi 0, %s117
      %s119 = sphi 0, %s117
      %s120 = sphi 0, %s119
      %s134 = sphi 0, %s120
      %s138 = sphi 0, %s138
      %s140 = sphi 0, %s138
      %s141 = sphi 0, %s140
      %s155 = sphi 0, %s141
      %s159 = sphi 0, %s159
      %s161 = sphi 0, %s159
      %s162 = sphi 0, %s161
      %s176 = sphi 0, %s162
      %s180 = sphi 0, %s180
      %s182 = sphi 0, %s180
      %s183 = sphi 0, %s182
      %s197 = sphi 0, %s183
      %s201 = sphi 0, %s201
      %s203 = sphi 0, %s201
      %s204 = sphi 0, %s203
      %s218 = sphi 0, %s204
      %s224 = sphi 0, %s226
      %s227 = sphi 0, %s224
      %s228 = sphi 0, %s227
      %s244 = sphi 0, %s228
    $region4: #{tpu_custom_call.1} parent=1 // loop_header_branch
      %23 = sbr.rel (%p21) target = $region8
    $region5: #{tpu_custom_call.1} parent=1 // loop_body
      %s25 = ssub.s32 %s20, 1
      %s26 = ssub.s32 %s20, 2
      %s27 = sadd.s32 %s20, 1
      %s28 = ssub.s32 %s20, %s27
      %p29 = scmp.eq.s32.totalorder %s28, 0
      %s31 = sadd.s32 %s30, 1
      %s32 = scalar_select %p29, %s30, %s31
      %p35 = pneg %p29
      %p36 = scmp.eq.s32.totalorder %s20, 1
      %p37 = por %p35, %p36
      %p38 = scmp.ne.s32.totalorder %s30, %s33
      %p39 = scmp.eq.s32.totalorder %s20, 0
      %p40 = por %p38, %p39
      %p41 = scmp.ne.s32.totalorder %s30, %s33
      %p42 = scmp.eq.s32.totalorder %s25, 1
      %p43 = por %p41, %p42
      %p44 = scmp.ne.s32.totalorder %s33, %s34
      %p45 = scmp.eq.s32.totalorder %s25, 0
      %p46 = por %p44, %p45
      %p47 = scmp.ne.s32.totalorder %s33, %s34
      %p48 = scmp.eq.s32.totalorder %s26, 1
      %p49 = por %p47, %p48
      %p51 = scmp.ne.s32.totalorder %s34, %s50
      %p52 = scmp.eq.s32.totalorder %s26, 0
      %p53 = por %p51, %p52
      %s55 = sadd.s32 %s54, 1
      %p58 = scmp.eq.s32.totalorder %s20, 1
      %p59 = scmp.ne.s32.totalorder %s54, %s56
      %p60 = scmp.eq.s32.totalorder %s20, 0
      %p61 = por %p59, %p60
      %p62 = scmp.ne.s32.totalorder %s54, %s56
      %p63 = scmp.eq.s32.totalorder %s25, 1
      %p64 = por %p62, %p63
      %p65 = scmp.ne.s32.totalorder %s56, %s57
      %p66 = scmp.eq.s32.totalorder %s25, 0
      %p67 = por %p65, %p66
      %p68 = scmp.ne.s32.totalorder %s56, %s57
      %p69 = scmp.eq.s32.totalorder %s26, 1
      %p70 = por %p68, %p69
      %p72 = scmp.ne.s32.totalorder %s57, %s71
      %p73 = scmp.eq.s32.totalorder %s26, 0
      %p74 = por %p72, %p73
      %s76 = sadd.s32 %s75, 1
      %p79 = scmp.eq.s32.totalorder %s20, 1
      %p80 = scmp.ne.s32.totalorder %s75, %s77
      %p81 = scmp.eq.s32.totalorder %s20, 0
      %p82 = por %p80, %p81
      %p83 = scmp.ne.s32.totalorder %s75, %s77
      %p84 = scmp.eq.s32.totalorder %s25, 1
      %p85 = por %p83, %p84
      %p86 = scmp.ne.s32.totalorder %s77, %s78
      %p87 = scmp.eq.s32.totalorder %s25, 0
      %p88 = por %p86, %p87
      %p89 = scmp.ne.s32.totalorder %s77, %s78
      %p90 = scmp.eq.s32.totalorder %s26, 1
      %p91 = por %p89, %p90
      %p93 = scmp.ne.s32.totalorder %s78, %s92
      %p94 = scmp.eq.s32.totalorder %s26, 0
      %p95 = por %p93, %p94
      %s97 = sadd.s32 %s96, 1
      %p100 = scmp.eq.s32.totalorder %s20, 1
      %p101 = scmp.ne.s32.totalorder %s96, %s98
      %p102 = scmp.eq.s32.totalorder %s20, 0
      %p103 = por %p101, %p102
      %p104 = scmp.ne.s32.totalorder %s96, %s98
      %p105 = scmp.eq.s32.totalorder %s25, 1
      %p106 = por %p104, %p105
      %p107 = scmp.ne.s32.totalorder %s98, %s99
      %p108 = scmp.eq.s32.totalorder %s25, 0
      %p109 = por %p107, %p108
      %p110 = scmp.ne.s32.totalorder %s98, %s99
      %p111 = scmp.eq.s32.totalorder %s26, 1
      %p112 = por %p110, %p111
      %p114 = scmp.ne.s32.totalorder %s99, %s113
      %p115 = scmp.eq.s32.totalorder %s26, 0
      %p116 = por %p114, %p115
      %s118 = sadd.s32 %s117, 1
      %p121 = scmp.eq.s32.totalorder %s20, 1
      %p122 = scmp.ne.s32.totalorder %s117, %s119
      %p123 = scmp.eq.s32.totalorder %s20, 0
      %p124 = por %p122, %p123
      %p125 = scmp.ne.s32.totalorder %s117, %s119
      %p126 = scmp.eq.s32.totalorder %s25, 1
      %p127 = por %p125, %p126
      %p128 = scmp.ne.s32.totalorder %s119, %s120
      %p129 = scmp.eq.s32.totalorder %s25, 0
      %p130 = por %p128, %p129
      %p131 = scmp.ne.s32.totalorder %s119, %s120
      %p132 = scmp.eq.s32.totalorder %s26, 1
      %p133 = por %p131, %p132
      %p135 = scmp.ne.s32.totalorder %s120, %s134
      %p136 = scmp.eq.s32.totalorder %s26, 0
      %p137 = por %p135, %p136
      %s139 = sadd.s32 %s138, 1
      %p142 = scmp.eq.s32.totalorder %s20, 1
      %p143 = scmp.ne.s32.totalorder %s138, %s140
      %p144 = scmp.eq.s32.totalorder %s20, 0
      %p145 = por %p143, %p144
      %p146 = scmp.ne.s32.totalorder %s138, %s140
      %p147 = scmp.eq.s32.totalorder %s25, 1
      %p148 = por %p146, %p147
      %p149 = scmp.ne.s32.totalorder %s140, %s141
      %p150 = scmp.eq.s32.totalorder %s25, 0
      %p151 = por %p149, %p150
      %p152 = scmp.ne.s32.totalorder %s140, %s141
      %p153 = scmp.eq.s32.totalorder %s26, 1
      %p154 = por %p152, %p153
      %p156 = scmp.ne.s32.totalorder %s141, %s155
      %p157 = scmp.eq.s32.totalorder %s26, 0
      %p158 = por %p156, %p157
      %s160 = sadd.s32 %s159, 1
      %p163 = scmp.eq.s32.totalorder %s20, 1
      %p164 = scmp.ne.s32.totalorder %s159, %s161
      %p165 = scmp.eq.s32.totalorder %s20, 0
      %p166 = por %p164, %p165
      %p167 = scmp.ne.s32.totalorder %s159, %s161
      %p168 = scmp.eq.s32.totalorder %s25, 1
      %p169 = por %p167, %p168
      %p170 = scmp.ne.s32.totalorder %s161, %s162
      %p171 = scmp.eq.s32.totalorder %s25, 0
      %p172 = por %p170, %p171
      %p173 = scmp.ne.s32.totalorder %s161, %s162
      %p174 = scmp.eq.s32.totalorder %s26, 1
      %p175 = por %p173, %p174
      %p177 = scmp.ne.s32.totalorder %s162, %s176
      %p178 = scmp.eq.s32.totalorder %s26, 0
      %p179 = por %p177, %p178
      %s181 = sadd.s32 %s180, 1
      %p184 = scmp.eq.s32.totalorder %s20, 1
      %p185 = scmp.ne.s32.totalorder %s180, %s182
      %p186 = scmp.eq.s32.totalorder %s20, 0
      %p187 = por %p185, %p186
      %p188 = scmp.ne.s32.totalorder %s180, %s182
      %p189 = scmp.eq.s32.totalorder %s25, 1
      %p190 = por %p188, %p189
      %p191 = scmp.ne.s32.totalorder %s182, %s183
      %p192 = scmp.eq.s32.totalorder %s25, 0
      %p193 = por %p191, %p192
      %p194 = scmp.ne.s32.totalorder %s182, %s183
      %p195 = scmp.eq.s32.totalorder %s26, 1
      %p196 = por %p194, %p195
      %p198 = scmp.ne.s32.totalorder %s183, %s197
      %p199 = scmp.eq.s32.totalorder %s26, 0
      %p200 = por %p198, %p199
      %s202 = sadd.s32 %s201, 1
      %p205 = scmp.eq.s32.totalorder %s20, 1
      %p206 = scmp.ne.s32.totalorder %s201, %s203
      %p207 = scmp.eq.s32.totalorder %s20, 0
      %p208 = por %p206, %p207
      %p209 = scmp.ne.s32.totalorder %s201, %s203
      %p210 = scmp.eq.s32.totalorder %s25, 1
      %p211 = por %p209, %p210
      %p212 = scmp.ne.s32.totalorder %s203, %s204
      %p213 = scmp.eq.s32.totalorder %s25, 0
      %p214 = por %p212, %p213
      %p215 = scmp.ne.s32.totalorder %s203, %s204
      %p216 = scmp.eq.s32.totalorder %s26, 1
      %p217 = por %p215, %p216
      %p219 = scmp.ne.s32.totalorder %s204, %s218
      %p220 = scmp.eq.s32.totalorder %s26, 0
      %p221 = por %p219, %p220
      %s222 = ssub.s32 %s20, %s27
      %p223 = scmp.eq.s32.totalorder %s222, 0
      %s225 = sadd.s32 %s224, 1
      %s226 = scalar_select %p223, %s224, %s225
      %p229 = pneg %p223
      %p230 = scmp.eq.s32.totalorder %s20, 1
      %p231 = por %p229, %p230
      %p232 = scmp.ne.s32.totalorder %s224, %s227
      %p233 = scmp.eq.s32.totalorder %s20, 0
      %p234 = por %p232, %p233
      %p235 = scmp.ne.s32.totalorder %s224, %s227
      %p236 = scmp.eq.s32.totalorder %s25, 1
      %p237 = por %p235, %p236
      %p238 = scmp.ne.s32.totalorder %s227, %s228
      %p239 = scmp.eq.s32.totalorder %s25, 0
      %p240 = por %p238, %p239
      %p241 = scmp.ne.s32.totalorder %s227, %s228
      %p242 = scmp.eq.s32.totalorder %s26, 1
      %p243 = por %p241, %p242
      %p245 = scmp.ne.s32.totalorder %s228, %s244
      %p246 = scmp.eq.s32.totalorder %s26, 0
      %p247 = por %p245, %p246
      %p248 = scmp.le.s32.totalorder 1, %s20
      %p249 = scmp.lt.s32.totalorder %s20, 3
      %p250 = pnand %p248, %p249
      %p251 = pneg %p250
      // Predicated region
      $region9: #{tpu_custom_call.1} parent=5 // pred_check
        _
      $region10: #{tpu_custom_call.1} parent=5 // pred_check_branch
        %253 = sbr.rel (%p250) target = $region12
      $region11: #{tpu_custom_call.1} parent=5 // pred_region
        %s254 = ssub.s32 %s20, 1
        // Predicated region
        $region13: #{tpu_custom_call.1} parent=11 // pred_check
          %p255 = pneg %p67
        $region14: #{tpu_custom_call.1} parent=11 // pred_check_branch
          %257 = sbr.rel (%p255) target = $region16
        $region15: #{tpu_custom_call.1} parent=11 // pred_region
          _
        $region16: #{tpu_custom_call.1} parent=11 // pred_fallthru
          _
        // Predicated region
        $region17: #{tpu_custom_call.1} parent=11 // pred_check
          %p258 = pneg %p88
        $region18: #{tpu_custom_call.1} parent=11 // pred_check_branch
          %260 = sbr.rel (%p258) target = $region20
        $region19: #{tpu_custom_call.1} parent=11 // pred_region
          _
        $region20: #{tpu_custom_call.1} parent=11 // pred_fallthru
          _
        // Predicated region
        $region21: #{tpu_custom_call.1} parent=11 // pred_check
          %p261 = pneg %p109
        $region22: #{tpu_custom_call.1} parent=11 // pred_check_branch
          %263 = sbr.rel (%p261) target = $region24
        $region23: #{tpu_custom_call.1} parent=11 // pred_region
          _
        $region24: #{tpu_custom_call.1} parent=11 // pred_fallthru
          _
        // Predicated region
        $region25: #{tpu_custom_call.1} parent=11 // pred_check
          %p264 = pneg %p130
        $region26: #{tpu_custom_call.1} parent=11 // pred_check_branch
          %266 = sbr.rel (%p264) target = $region28
        $region27: #{tpu_custom_call.1} parent=11 // pred_region
          _
        $region28: #{tpu_custom_call.1} parent=11 // pred_fallthru
          _
        // Predicated region
        $region29: #{tpu_custom_call.1} parent=11 // pred_check
          %p267 = pneg %p151
        $region30: #{tpu_custom_call.1} parent=11 // pred_check_branch
          %269 = sbr.rel (%p267) target = $region32
        $region31: #{tpu_custom_call.1} parent=11 // pred_region
          _
        $region32: #{tpu_custom_call.1} parent=11 // pred_fallthru
          _
        // Predicated region
        $region33: #{tpu_custom_call.1} parent=11 // pred_check
          %p270 = pneg %p172
        $region34: #{tpu_custom_call.1} parent=11 // pred_check_branch
          %272 = sbr.rel (%p270) target = $region36
        $region35: #{tpu_custom_call.1} parent=11 // pred_region
          _
        $region36: #{tpu_custom_call.1} parent=11 // pred_fallthru
          _
        // Predicated region
        $region37: #{tpu_custom_call.1} parent=11 // pred_check
          %p273 = pneg %p193
        $region38: #{tpu_custom_call.1} parent=11 // pred_check_branch
          %275 = sbr.rel (%p273) target = $region40
        $region39: #{tpu_custom_call.1} parent=11 // pred_region
          _
        $region40: #{tpu_custom_call.1} parent=11 // pred_fallthru
          _
        // Predicated region
        $region41: #{tpu_custom_call.1} parent=11 // pred_check
          %p276 = pneg %p214
        $region42: #{tpu_custom_call.1} parent=11 // pred_check_branch
          %278 = sbr.rel (%p276) target = $region44
        $region43: #{tpu_custom_call.1} parent=11 // pred_region
          _
        $region44: #{tpu_custom_call.1} parent=11 // pred_fallthru
          _
      $region12: #{tpu_custom_call.1} parent=5 // pred_fallthru
        _
      %p279 = scmp.lt.s32.totalorder %s20, 2
      // Predicated region
      $region45: #{tpu_custom_call.1} parent=5 // pred_check
        %p280 = pneg %p279
      $region46: #{tpu_custom_call.1} parent=5 // pred_check_branch
        %282 = sbr.rel (%p280) target = $region48
      $region47: #{tpu_custom_call.1} parent=5 // pred_region
        // Predicated region
        $region49: #{tpu_custom_call.1} parent=47 // pred_check
          %p283 = pneg %p40
        $region50: #{tpu_custom_call.1} parent=47 // pred_check_branch
          %285 = sbr.rel (%p283) target = $region52
        $region51: #{tpu_custom_call.1} parent=47 // pred_region
          %p286 = scmp.lt.s32.totalorder %s20, 1
          %s287 = scalar_select %p286, %s20, 1
          %s288 = scalar_lea.vmem %s0, %s287
        $region52: #{tpu_custom_call.1} parent=47 // pred_fallthru
          _
      $region48: #{tpu_custom_call.1} parent=5 // pred_fallthru
        _
      %p289 = scmp.le.s32.totalorder 1, %s20
      %p290 = scmp.lt.s32.totalorder %s20, 3
      %p291 = pnand %p289, %p290
      %p292 = pneg %p291
      // Predicated region
      $region53: #{tpu_custom_call.1} parent=5 // pred_check
        _
      $region54: #{tpu_custom_call.1} parent=5 // pred_check_branch
        %294 = sbr.rel (%p291) target = $region56
      $region55: #{tpu_custom_call.1} parent=5 // pred_region
        %s295 = ssub.s32 %s20, 1
        %p296 = scmp.lt.s32.totalorder %s25, 1
        %s297 = scalar_select %p296, %s25, 1
        %s298 = scalar_lea.vmem %s0, %s297
        %p299 = pneg %p46
        %p300 = pneg %p43
        %p301 = pneg %p67
        %p302 = pneg %p64
        %p303 = pneg %p88
        %p304 = pneg %p85
        %p305 = pneg %p109
        %p306 = pneg %p106
        %p307 = pneg %p130
        %p308 = pneg %p127
        %p309 = pneg %p151
        %p310 = pneg %p148
        %p311 = pneg %p172
        %p312 = pneg %p169
        %p313 = pneg %p193
        %p314 = pneg %p190
        %p315 = pneg %p214
        %p316 = pneg %p211
        %p317 = pneg %p240
        %p318 = pneg %p237
        %s319 = sand.u32 %s227, 1
        %s320 = scalar_lea.sflag [#allocation4], %s319
        %s321 = sand.u32 %s227, 1
        %s322 = scalar_lea.vmem [#allocation3], %s321
        %p323 = scmp.lt.s32.totalorder %s25, 1
        %s324 = scalar_select %p323, %s25, 1
        %s325 = scalar_lea.vmem %s0, %s324
        %v326 = vld [vmem:[%s325] sm:$0x1]
        %v327 = vld [vmem:[%s1] sm:$0xff]
        %v328 = vld [vmem:[%s1 + $0x8] sm:$0x3]
        %330 = vset.pattern.permute.xlu0 0
        %331 = vperm.xlu0 %330, %v327
        %v332 = vpop.permute.xlu0 %331
        %335 = vset.pattern.permute.xlu0 0
        %336 = vperm.xlu0 %335, %v328
        %v337 = vpop.permute.xlu0 %336
        %v340 = vlaneseq
        %v341 = vshrl.u32 %v340, 7
        %v342 = vsub.s32 0, %v341
        %v343 = vrot.slane %v326, %v342
        %v345 = vmul.f32 %v332, %v343
        %v346 = vmul.f32 %v337, %v343
        %v347 = vld [vmem:[%s2] sm:$0xff]
        %v348 = vld [vmem:[%s2 + $0x8] sm:$0x3]
        %350 = vset.pattern.permute.xlu0 0
        %351 = vperm.xlu0 %350, %v347
        %v352 = vpop.permute.xlu0 %351
        %355 = vset.pattern.permute.xlu0 0
        %356 = vperm.xlu0 %355, %v348
        %v357 = vpop.permute.xlu0 %356
        %v359 = vadd.f32 %v345, %v352
        %v360 = vadd.f32 %v346, %v357
        %v361 = vmax.f32 %v359, 0.0
        %v362 = vmax.f32 %v360, 0.0
        %v363 = vld [vmem:[%s3] sm:$0xff]
        %v364 = vld [vmem:[%s3 + $0x8] sm:$0xff]
        %v365 = vld [vmem:[%s3 + $0x10] sm:$0xf]
        %v366 = vld [vmem:[%s4] sm:$0xff]
        %v367 = vld [vmem:[%s4 + $0x8] sm:$0xff]
        %v368 = vld [vmem:[%s4 + $0x10] sm:$0xf]
        %370 = vset.pattern.permute.xlu0 0
        %371 = vperm.xlu0 %370, %v366
        %v372 = vpop.permute.xlu0 %371
        %375 = vset.pattern.permute.xlu0 0
        %376 = vperm.xlu0 %375, %v367
        %v377 = vpop.permute.xlu0 %376
        %380 = vset.pattern.permute.xlu0 0
        %381 = vperm.xlu0 %380, %v368
        %v382 = vpop.permute.xlu0 %381
        %vm384 = vcmask 80896
        %v386 = vsel %vm384, %v363, 0
        %v389 = vsel %vm384, %v364, 0
        %v392 = vsel %vm384, %v365, 0
        %vm394 = vcmask 1041408
        %v396 = vsel %vm394, %v362, 0
        %398 = vmatprep.subr.mxu0 0.0
        %399 = vmatpush1.msra.mxu0 0.0
        %400 = vmatprep.subr.mxu0 0.0
        %401 = vmatpush1.msra.mxu0 0.0
        %402 = vmatprep.subr.mxu0 0.0
        %403 = vmatpush1.msra.mxu0 0.0
        %404 = vmatprep.subr.mxu0 0.0
        %405 = vmatpush1.msra.mxu0 0.0
        %406 = vmatprep.subr.mxu0 0.0
        %407 = vmatpush1.msra.mxu0 0.0
        %408 = vmatprep.subr.mxu0 0.0
        %409 = vmatpush1.msra.mxu0 0.0
        %410 = vmatprep.subr.mxu0 0.0
        %411 = vmatpush1.msra.mxu0 0.0
        %412 = vmatprep.subr.mxu0 0.0
        %413 = vmatpush1.msra.mxu0 0.0
        %414 = vmatprep.subr.mxu0 0.0
        %415 = vmatpush1.msra.mxu0 0.0
        %416 = vmatprep.subr.mxu0 0.0
        %417 = vmatpush1.msra.mxu0 0.0
        %418 = vmatprep.subr.mxu0 0.0
        %419 = vmatpush1.msra.mxu0 0.0
        %420 = vmatprep.subr.mxu0 0.0
        %421 = vmatpush1.msra.mxu0 0.0
        %422 = vmatprep.subr.mxu0 0.0
        %423 = vmatpush1.msra.mxu0 0.0
        %424 = vmatprep.subr.mxu0 0.0
        %425 = vmatpush1.msra.mxu0 0.0
        %426 = vmatprep.subr.mxu0 0.0
        %v427 = vand.u32 %v396, 4294901760
        %428 = vmatpush1.msra.mxu0 %v427
        %429 = vmatprep.subr.mxu0 0.0
        %v430 = vand.u32 %v361, 4294901760
        %431 = vmatpush1.msra.mxu0 %v430
        %432 = vmatprep.subr.mxu0 0.0
        %433 = vmatpush2.msra.mxu0 0.0
        %434 = vmatprep.subr.mxu0 0.0
        %435 = vmatpush2.msra.mxu0 0.0
        %436 = vmatprep.subr.mxu0 0.0
        %437 = vmatpush2.msra.mxu0 0.0
        %438 = vmatprep.subr.mxu0 0.0
        %439 = vmatpush2.msra.mxu0 0.0
        %440 = vmatprep.subr.mxu0 0.0
        %441 = vmatpush2.msra.mxu0 0.0
        %442 = vmatprep.subr.mxu0 0.0
        %443 = vmatpush2.msra.mxu0 0.0
        %444 = vmatprep.subr.mxu0 0.0
        %445 = vmatpush2.msra.mxu0 0.0
        %446 = vmatprep.subr.mxu0 0.0
        %447 = vmatpush2.msra.mxu0 0.0
        %448 = vmatprep.subr.mxu0 0.0
        %449 = vmatpush2.msra.mxu0 0.0
        %450 = vmatprep.subr.mxu0 0.0
        %451 = vmatpush2.msra.mxu0 0.0
        %452 = vmatprep.subr.mxu0 0.0
        %453 = vmatpush2.msra.mxu0 0.0
        %454 = vmatprep.subr.mxu0 0.0
        %455 = vmatpush2.msra.mxu0 0.0
        %456 = vmatprep.subr.mxu0 0.0
        %457 = vmatpush2.msra.mxu0 0.0
        %458 = vmatprep.subr.mxu0 0.0
        %459 = vmatpush2.msra.mxu0 0.0
        %460 = vmatprep.subr.mxu0 0.0
        %461 = vmatpush2.msra.mxu0 0.0
        %462 = vmatprep.subr.mxu0 0.0
        %463 = vmatpush2.msra.mxu0 0.0
        %464 = vmatprep.mubr.f32.mxu0 0.0
        %v465 = vand.u32 %v386, 4294901760
        %v466 = vsub.f32 %v386, %v465
        %v467 = vand.u32 %v466, 4294901760
        %v468 = vsub.f32 %v466, %v467
        %v469 = vand.u32 %v468, 4294901760
        %470 = vmatmul.mubr.f32.gmra.mxu0 %v469
        %v471 = vpop.f32.mrf.mxu0
        %v472 = vadd.f32 %v372, %v471
        %v473 = vpop.f32.mrf.mxu0
        %474 = vmatprep.mubr.f32.mxu0 0.0
        %v475 = vand.u32 %v389, 4294901760
        %v476 = vsub.f32 %v389, %v475
        %v477 = vand.u32 %v476, 4294901760
        %v478 = vsub.f32 %v476, %v477
        %v479 = vand.u32 %v478, 4294901760
        %480 = vmatmul.mubr.f32.gmra.mxu0 %v479
        %v481 = vpop.f32.mrf.mxu0
        %v482 = vadd.f32 %v377, %v481
        %v483 = vpop.f32.mrf.mxu0
        %484 = vmatprep.mubr.f32.mxu0 0.0
        %v485 = vand.u32 %v392, 4294901760
        %v486 = vsub.f32 %v392, %v485
        %v487 = vand.u32 %v486, 4294901760
        %v488 = vsub.f32 %v486, %v487
        %v489 = vand.u32 %v488, 4294901760
        %490 = vmatmul.mubr.f32.gmra.mxu0 %v489
        %v491 = vpop.f32.mrf.mxu0
        %v492 = vadd.f32 %v382, %v491
        %v493 = vpop.f32.mrf.mxu0
        %494 = vdwg.mxu0
        %495 = vmatprep.subr.mxu0 0.0
        %496 = vmatpush1.msra.mxu0 0.0
        %497 = vmatprep.subr.mxu0 0.0
        %498 = vmatpush1.msra.mxu0 0.0
        %499 = vmatprep.subr.mxu0 0.0
        %500 = vmatpush1.msra.mxu0 0.0
        %501 = vmatprep.subr.mxu0 0.0
        %502 = vmatpush1.msra.mxu0 0.0
        %503 = vmatprep.subr.mxu0 0.0
        %504 = vmatpush1.msra.mxu0 0.0
        %505 = vmatprep.subr.mxu0 0.0
        %506 = vmatpush1.msra.mxu0 0.0
        %507 = vmatprep.subr.mxu0 0.0
        %508 = vmatpush1.msra.mxu0 0.0
        %509 = vmatprep.subr.mxu0 0.0
        %510 = vmatpush1.msra.mxu0 0.0
        %511 = vmatprep.subr.mxu0 0.0
        %512 = vmatpush1.msra.mxu0 0.0
        %513 = vmatprep.subr.mxu0 0.0
        %514 = vmatpush1.msra.mxu0 0.0
        %515 = vmatprep.subr.mxu0 0.0
        %516 = vmatpush1.msra.mxu0 0.0
        %517 = vmatprep.subr.mxu0 0.0
        %518 = vmatpush1.msra.mxu0 0.0
        %519 = vmatprep.subr.mxu0 0.0
        %520 = vmatpush1.msra.mxu0 0.0
        %521 = vmatprep.subr.mxu0 0.0
        %522 = vmatpush1.msra.mxu0 0.0
        %523 = vmatprep.subr.mxu0 0.0
        %v524 = vand.u32 %v396, 4294901760
        %v525 = vsub.f32 %v396, %v524
        %v526 = vand.u32 %v525, 4294901760
        %v527 = vsub.f32 %v525, %v526
        %v528 = vand.u32 %v527, 4294901760
        %529 = vmatpush1.msra.mxu0 %v528
        %530 = vmatprep.subr.mxu0 0.0
        %v531 = vand.u32 %v361, 4294901760
        %v532 = vsub.f32 %v361, %v531
        %v533 = vand.u32 %v532, 4294901760
        %v534 = vsub.f32 %v532, %v533
        %v535 = vand.u32 %v534, 4294901760
        %536 = vmatpush1.msra.mxu0 %v535
        %537 = vmatprep.subr.mxu0 0.0
        %538 = vmatpush2.msra.mxu0 0.0
        %539 = vmatprep.subr.mxu0 0.0
        %540 = vmatpush2.msra.mxu0 0.0
        %541 = vmatprep.subr.mxu0 0.0
        %542 = vmatpush2.msra.mxu0 0.0
        %543 = vmatprep.subr.mxu0 0.0
        %544 = vmatpush2.msra.mxu0 0.0
        %545 = vmatprep.subr.mxu0 0.0
        %546 = vmatpush2.msra.mxu0 0.0
        %547 = vmatprep.subr.mxu0 0.0
        %548 = vmatpush2.msra.mxu0 0.0
        %549 = vmatprep.subr.mxu0 0.0
        %550 = vmatpush2.msra.mxu0 0.0
        %551 = vmatprep.subr.mxu0 0.0
        %552 = vmatpush2.msra.mxu0 0.0
        %553 = vmatprep.subr.mxu0 0.0
        %554 = vmatpush2.msra.mxu0 0.0
        %555 = vmatprep.subr.mxu0 0.0
        %556 = vmatpush2.msra.mxu0 0.0
        %557 = vmatprep.subr.mxu0 0.0
        %558 = vmatpush2.msra.mxu0 0.0
        %559 = vmatprep.subr.mxu0 0.0
        %560 = vmatpush2.msra.mxu0 0.0
        %561 = vmatprep.subr.mxu0 0.0
        %562 = vmatpush2.msra.mxu0 0.0
        %563 = vmatprep.subr.mxu0 0.0
        %564 = vmatpush2.msra.mxu0 0.0
        %565 = vmatprep.subr.mxu0 0.0
        %566 = vmatpush2.msra.mxu0 0.0
        %567 = vmatprep.subr.mxu0 0.0
        %568 = vmatpush2.msra.mxu0 0.0
        %569 = vmatprep.mubr.f32.mxu0 0.0
        %v570 = vand.u32 %v386, 4294901760
        %571 = vmatmul.mubr.f32.gmra.mxu0 %v570
        %v572 = vpop.f32.mrf.mxu0
        %v573 = vadd.f32 %v472, %v572
        %v574 = vpop.f32.mrf.mxu0
        %575 = vmatprep.mubr.f32.mxu0 0.0
        %v576 = vand.u32 %v389, 4294901760
        %577 = vmatmul.mubr.f32.gmra.mxu0 %v576
        %v578 = vpop.f32.mrf.mxu0
        %v579 = vadd.f32 %v482, %v578
        %v580 = vpop.f32.mrf.mxu0
        %581 = vmatprep.mubr.f32.mxu0 0.0
        %v582 = vand.u32 %v392, 4294901760
        %583 = vmatmul.mubr.f32.gmra.mxu0 %v582
        %v584 = vpop.f32.mrf.mxu0
        %v585 = vadd.f32 %v492, %v584
        %v586 = vpop.f32.mrf.mxu0
        %587 = vdwg.mxu0
        %588 = vmatprep.subr.mxu0 0.0
        %589 = vmatpush1.msra.mxu0 0.0
        %590 = vmatprep.subr.mxu0 0.0
        %591 = vmatpush1.msra.mxu0 0.0
        %592 = vmatprep.subr.mxu0 0.0
        %593 = vmatpush1.msra.mxu0 0.0
        %594 = vmatprep.subr.mxu0 0.0
        %595 = vmatpush1.msra.mxu0 0.0
        %596 = vmatprep.subr.mxu0 0.0
        %597 = vmatpush1.msra.mxu0 0.0
        %598 = vmatprep.subr.mxu0 0.0
        %599 = vmatpush1.msra.mxu0 0.0
        %600 = vmatprep.subr.mxu0 0.0
        %601 = vmatpush1.msra.mxu0 0.0
        %602 = vmatprep.subr.mxu0 0.0
        %603 = vmatpush1.msra.mxu0 0.0
        %604 = vmatprep.subr.mxu0 0.0
        %605 = vmatpush1.msra.mxu0 0.0
        %606 = vmatprep.subr.mxu0 0.0
        %607 = vmatpush1.msra.mxu0 0.0
        %608 = vmatprep.subr.mxu0 0.0
        %609 = vmatpush1.msra.mxu0 0.0
        %610 = vmatprep.subr.mxu0 0.0
        %611 = vmatpush1.msra.mxu0 0.0
        %612 = vmatprep.subr.mxu0 0.0
        %613 = vmatpush1.msra.mxu0 0.0
        %614 = vmatprep.subr.mxu0 0.0
        %615 = vmatpush1.msra.mxu0 0.0
        %616 = vmatprep.subr.mxu0 0.0
        %v617 = vand.u32 %v396, 4294901760
        %v618 = vsub.f32 %v396, %v617
        %619 = vmatpush1.msra.mxu0 %v618
        %620 = vmatprep.subr.mxu0 0.0
        %v621 = vand.u32 %v361, 4294901760
        %v622 = vsub.f32 %v361, %v621
        %623 = vmatpush1.msra.mxu0 %v622
        %624 = vmatprep.subr.mxu0 0.0
        %625 = vmatpush2.msra.mxu0 0.0
        %626 = vmatprep.subr.mxu0 0.0
        %627 = vmatpush2.msra.mxu0 0.0
        %628 = vmatprep.subr.mxu0 0.0
        %629 = vmatpush2.msra.mxu0 0.0
        %630 = vmatprep.subr.mxu0 0.0
        %631 = vmatpush2.msra.mxu0 0.0
        %632 = vmatprep.subr.mxu0 0.0
        %633 = vmatpush2.msra.mxu0 0.0
        %634 = vmatprep.subr.mxu0 0.0
        %635 = vmatpush2.msra.mxu0 0.0
        %636 = vmatprep.subr.mxu0 0.0
        %637 = vmatpush2.msra.mxu0 0.0
        %638 = vmatprep.subr.mxu0 0.0
        %639 = vmatpush2.msra.mxu0 0.0
        %640 = vmatprep.subr.mxu0 0.0
        %641 = vmatpush2.msra.mxu0 0.0
        %642 = vmatprep.subr.mxu0 0.0
        %643 = vmatpush2.msra.mxu0 0.0
        %644 = vmatprep.subr.mxu0 0.0
        %645 = vmatpush2.msra.mxu0 0.0
        %646 = vmatprep.subr.mxu0 0.0
        %647 = vmatpush2.msra.mxu0 0.0
        %648 = vmatprep.subr.mxu0 0.0
        %649 = vmatpush2.msra.mxu0 0.0
        %650 = vmatprep.subr.mxu0 0.0
        %651 = vmatpush2.msra.mxu0 0.0
        %652 = vmatprep.subr.mxu0 0.0
        %653 = vmatpush2.msra.mxu0 0.0
        %654 = vmatprep.subr.mxu0 0.0
        %655 = vmatpush2.msra.mxu0 0.0
        %656 = vmatprep.mubr.f32.mxu0 0.0
        %v657 = vand.u32 %v386, 4294901760
        %v658 = vsub.f32 %v386, %v657
        %659 = vmatmul.mubr.f32.gmra.mxu0 %v658
        %v660 = vpop.f32.mrf.mxu0
        %v661 = vadd.f32 %v573, %v660
        %v662 = vpop.f32.mrf.mxu0
        %663 = vmatprep.mubr.f32.mxu0 0.0
        %v664 = vand.u32 %v389, 4294901760
        %v665 = vsub.f32 %v389, %v664
        %666 = vmatmul.mubr.f32.gmra.mxu0 %v665
        %v667 = vpop.f32.mrf.mxu0
        %v668 = vadd.f32 %v579, %v667
        %v669 = vpop.f32.mrf.mxu0
        %670 = vmatprep.mubr.f32.mxu0 0.0
        %v671 = vand.u32 %v392, 4294901760
        %v672 = vsub.f32 %v392, %v671
        %673 = vmatmul.mubr.f32.gmra.mxu0 %v672
        %v674 = vpop.f32.mrf.mxu0
        %v675 = vadd.f32 %v585, %v674
        %v676 = vpop.f32.mrf.mxu0
        %677 = vdwg.mxu0
        %678 = vmatprep.subr.mxu0 0.0
        %679 = vmatpush1.msra.mxu0 0.0
        %680 = vmatprep.subr.mxu0 0.0
        %681 = vmatpush1.msra.mxu0 0.0
        %682 = vmatprep.subr.mxu0 0.0
        %683 = vmatpush1.msra.mxu0 0.0
        %684 = vmatprep.subr.mxu0 0.0
        %685 = vmatpush1.msra.mxu0 0.0
        %686 = vmatprep.subr.mxu0 0.0
        %687 = vmatpush1.msra.mxu0 0.0
        %688 = vmatprep.subr.mxu0 0.0
        %689 = vmatpush1.msra.mxu0 0.0
        %690 = vmatprep.subr.mxu0 0.0
        %691 = vmatpush1.msra.mxu0 0.0
        %692 = vmatprep.subr.mxu0 0.0
        %693 = vmatpush1.msra.mxu0 0.0
        %694 = vmatprep.subr.mxu0 0.0
        %695 = vmatpush1.msra.mxu0 0.0
        %696 = vmatprep.subr.mxu0 0.0
        %697 = vmatpush1.msra.mxu0 0.0
        %698 = vmatprep.subr.mxu0 0.0
        %699 = vmatpush1.msra.mxu0 0.0
        %700 = vmatprep.subr.mxu0 0.0
        %701 = vmatpush1.msra.mxu0 0.0
        %702 = vmatprep.subr.mxu0 0.0
        %703 = vmatpush1.msra.mxu0 0.0
        %704 = vmatprep.subr.mxu0 0.0
        %705 = vmatpush1.msra.mxu0 0.0
        %706 = vmatprep.subr.mxu0 0.0
        %v707 = vand.u32 %v396, 4294901760
        %708 = vmatpush1.msra.mxu0 %v707
        %709 = vmatprep.subr.mxu0 0.0
        %v710 = vand.u32 %v361, 4294901760
        %711 = vmatpush1.msra.mxu0 %v710
        %712 = vmatprep.subr.mxu0 0.0
        %713 = vmatpush2.msra.mxu0 0.0
        %714 = vmatprep.subr.mxu0 0.0
        %715 = vmatpush2.msra.mxu0 0.0
        %716 = vmatprep.subr.mxu0 0.0
        %717 = vmatpush2.msra.mxu0 0.0
        %718 = vmatprep.subr.mxu0 0.0
        %719 = vmatpush2.msra.mxu0 0.0
        %720 = vmatprep.subr.mxu0 0.0
        %721 = vmatpush2.msra.mxu0 0.0
        %722 = vmatprep.subr.mxu0 0.0
        %723 = vmatpush2.msra.mxu0 0.0
        %724 = vmatprep.subr.mxu0 0.0
        %725 = vmatpush2.msra.mxu0 0.0
        %726 = vmatprep.subr.mxu0 0.0
        %727 = vmatpush2.msra.mxu0 0.0
        %728 = vmatprep.subr.mxu0 0.0
        %729 = vmatpush2.msra.mxu0 0.0
        %730 = vmatprep.subr.mxu0 0.0
        %731 = vmatpush2.msra.mxu0 0.0
        %732 = vmatprep.subr.mxu0 0.0
        %733 = vmatpush2.msra.mxu0 0.0
        %734 = vmatprep.subr.mxu0 0.0
        %735 = vmatpush2.msra.mxu0 0.0
        %736 = vmatprep.subr.mxu0 0.0
        %737 = vmatpush2.msra.mxu0 0.0
        %738 = vmatprep.subr.mxu0 0.0
        %739 = vmatpush2.msra.mxu0 0.0
        %740 = vmatprep.subr.mxu0 0.0
        %741 = vmatpush2.msra.mxu0 0.0
        %742 = vmatprep.subr.mxu0 0.0
        %743 = vmatpush2.msra.mxu0 0.0
        %744 = vmatprep.mubr.f32.mxu0 0.0
        %v745 = vand.u32 %v386, 4294901760
        %v746 = vsub.f32 %v386, %v745
        %v747 = vand.u32 %v746, 4294901760
        %748 = vmatmul.mubr.f32.gmra.mxu0 %v747
        %v749 = vpop.f32.mrf.mxu0
        %v750 = vadd.f32 %v661, %v749
        %v751 = vpop.f32.mrf.mxu0
        %752 = vmatprep.mubr.f32.mxu0 0.0
        %v753 = vand.u32 %v389, 4294901760
        %v754 = vsub.f32 %v389, %v753
        %v755 = vand.u32 %v754, 4294901760
        %756 = vmatmul.mubr.f32.gmra.mxu0 %v755
        %v757 = vpop.f32.mrf.mxu0
        %v758 = vadd.f32 %v668, %v757
        %v759 = vpop.f32.mrf.mxu0
        %760 = vmatprep.mubr.f32.mxu0 0.0
        %v761 = vand.u32 %v392, 4294901760
        %v762 = vsub.f32 %v392, %v761
        %v763 = vand.u32 %v762, 4294901760
        %764 = vmatmul.mubr.f32.gmra.mxu0 %v763
        %v765 = vpop.f32.mrf.mxu0
        %v766 = vadd.f32 %v675, %v765
        %v767 = vpop.f32.mrf.mxu0
        %768 = vdwg.mxu0
        %769 = vmatprep.subr.mxu0 0.0
        %770 = vmatpush1.msra.mxu0 0.0
        %771 = vmatprep.subr.mxu0 0.0
        %772 = vmatpush1.msra.mxu0 0.0
        %773 = vmatprep.subr.mxu0 0.0
        %774 = vmatpush1.msra.mxu0 0.0
        %775 = vmatprep.subr.mxu0 0.0
        %776 = vmatpush1.msra.mxu0 0.0
        %777 = vmatprep.subr.mxu0 0.0
        %778 = vmatpush1.msra.mxu0 0.0
        %779 = vmatprep.subr.mxu0 0.0
        %780 = vmatpush1.msra.mxu0 0.0
        %781 = vmatprep.subr.mxu0 0.0
        %782 = vmatpush1.msra.mxu0 0.0
        %783 = vmatprep.subr.mxu0 0.0
        %784 = vmatpush1.msra.mxu0 0.0
        %785 = vmatprep.subr.mxu0 0.0
        %786 = vmatpush1.msra.mxu0 0.0
        %787 = vmatprep.subr.mxu0 0.0
        %788 = vmatpush1.msra.mxu0 0.0
        %789 = vmatprep.subr.mxu0 0.0
        %790 = vmatpush1.msra.mxu0 0.0
        %791 = vmatprep.subr.mxu0 0.0
        %792 = vmatpush1.msra.mxu0 0.0
        %793 = vmatprep.subr.mxu0 0.0
        %794 = vmatpush1.msra.mxu0 0.0
        %795 = vmatprep.subr.mxu0 0.0
        %796 = vmatpush1.msra.mxu0 0.0
        %797 = vmatprep.subr.mxu0 0.0
        %v798 = vand.u32 %v396, 4294901760
        %v799 = vsub.f32 %v396, %v798
        %v800 = vand.u32 %v799, 4294901760
        %801 = vmatpush1.msra.mxu0 %v800
        %802 = vmatprep.subr.mxu0 0.0
        %v803 = vand.u32 %v361, 4294901760
        %v804 = vsub.f32 %v361, %v803
        %v805 = vand.u32 %v804, 4294901760
        %806 = vmatpush1.msra.mxu0 %v805
        %807 = vmatprep.subr.mxu0 0.0
        %808 = vmatpush2.msra.mxu0 0.0
        %809 = vmatprep.subr.mxu0 0.0
        %810 = vmatpush2.msra.mxu0 0.0
        %811 = vmatprep.subr.mxu0 0.0
        %812 = vmatpush2.msra.mxu0 0.0
        %813 = vmatprep.subr.mxu0 0.0
        %814 = vmatpush2.msra.mxu0 0.0
        %815 = vmatprep.subr.mxu0 0.0
        %816 = vmatpush2.msra.mxu0 0.0
        %817 = vmatprep.subr.mxu0 0.0
        %818 = vmatpush2.msra.mxu0 0.0
        %819 = vmatprep.subr.mxu0 0.0
        %820 = vmatpush2.msra.mxu0 0.0
        %821 = vmatprep.subr.mxu0 0.0
        %822 = vmatpush2.msra.mxu0 0.0
        %823 = vmatprep.subr.mxu0 0.0
        %824 = vmatpush2.msra.mxu0 0.0
        %825 = vmatprep.subr.mxu0 0.0
        %826 = vmatpush2.msra.mxu0 0.0
        %827 = vmatprep.subr.mxu0 0.0
        %828 = vmatpush2.msra.mxu0 0.0
        %829 = vmatprep.subr.mxu0 0.0
        %830 = vmatpush2.msra.mxu0 0.0
        %831 = vmatprep.subr.mxu0 0.0
        %832 = vmatpush2.msra.mxu0 0.0
        %833 = vmatprep.subr.mxu0 0.0
        %834 = vmatpush2.msra.mxu0 0.0
        %835 = vmatprep.subr.mxu0 0.0
        %836 = vmatpush2.msra.mxu0 0.0
        %837 = vmatprep.subr.mxu0 0.0
        %838 = vmatpush2.msra.mxu0 0.0
        %839 = vmatprep.mubr.f32.mxu0 0.0
        %v840 = vand.u32 %v386, 4294901760
        %841 = vmatmul.mubr.f32.gmra.mxu0 %v840
        %v842 = vpop.f32.mrf.mxu0
        %v843 = vadd.f32 %v750, %v842
        %v844 = vpop.f32.mrf.mxu0
        %845 = vmatprep.mubr.f32.mxu0 0.0
        %v846 = vand.u32 %v389, 4294901760
        %847 = vmatmul.mubr.f32.gmra.mxu0 %v846
        %v848 = vpop.f32.mrf.mxu0
        %v849 = vadd.f32 %v758, %v848
        %v850 = vpop.f32.mrf.mxu0
        %851 = vmatprep.mubr.f32.mxu0 0.0
        %v852 = vand.u32 %v392, 4294901760
        %853 = vmatmul.mubr.f32.gmra.mxu0 %v852
        %v854 = vpop.f32.mrf.mxu0
        %v855 = vadd.f32 %v766, %v854
        %v856 = vpop.f32.mrf.mxu0
        %857 = vdwg.mxu0
        %858 = vmatprep.subr.mxu0 0.0
        %859 = vmatpush1.msra.mxu0 0.0
        %860 = vmatprep.subr.mxu0 0.0
        %861 = vmatpush1.msra.mxu0 0.0
        %862 = vmatprep.subr.mxu0 0.0
        %863 = vmatpush1.msra.mxu0 0.0
        %864 = vmatprep.subr.mxu0 0.0
        %865 = vmatpush1.msra.mxu0 0.0
        %866 = vmatprep.subr.mxu0 0.0
        %867 = vmatpush1.msra.mxu0 0.0
        %868 = vmatprep.subr.mxu0 0.0
        %869 = vmatpush1.msra.mxu0 0.0
        %870 = vmatprep.subr.mxu0 0.0
        %871 = vmatpush1.msra.mxu0 0.0
        %872 = vmatprep.subr.mxu0 0.0
        %873 = vmatpush1.msra.mxu0 0.0
        %874 = vmatprep.subr.mxu0 0.0
        %875 = vmatpush1.msra.mxu0 0.0
        %876 = vmatprep.subr.mxu0 0.0
        %877 = vmatpush1.msra.mxu0 0.0
        %878 = vmatprep.subr.mxu0 0.0
        %879 = vmatpush1.msra.mxu0 0.0
        %880 = vmatprep.subr.mxu0 0.0
        %881 = vmatpush1.msra.mxu0 0.0
        %882 = vmatprep.subr.mxu0 0.0
        %883 = vmatpush1.msra.mxu0 0.0
        %884 = vmatprep.subr.mxu0 0.0
        %885 = vmatpush1.msra.mxu0 0.0
        %886 = vmatprep.subr.mxu0 0.0
        %v887 = vand.u32 %v396, 4294901760
        %888 = vmatpush1.msra.mxu0 %v887
        %889 = vmatprep.subr.mxu0 0.0
        %v890 = vand.u32 %v361, 4294901760
        %891 = vmatpush1.msra.mxu0 %v890
        %892 = vmatprep.subr.mxu0 0.0
        %893 = vmatpush2.msra.mxu0 0.0
        %894 = vmatprep.subr.mxu0 0.0
        %895 = vmatpush2.msra.mxu0 0.0
        %896 = vmatprep.subr.mxu0 0.0
        %897 = vmatpush2.msra.mxu0 0.0
        %898 = vmatprep.subr.mxu0 0.0
        %899 = vmatpush2.msra.mxu0 0.0
        %900 = vmatprep.subr.mxu0 0.0
        %901 = vmatpush2.msra.mxu0 0.0
        %902 = vmatprep.subr.mxu0 0.0
        %903 = vmatpush2.msra.mxu0 0.0
        %904 = vmatprep.subr.mxu0 0.0
        %905 = vmatpush2.msra.mxu0 0.0
        %906 = vmatprep.subr.mxu0 0.0
        %907 = vmatpush2.msra.mxu0 0.0
        %908 = vmatprep.subr.mxu0 0.0
        %909 = vmatpush2.msra.mxu0 0.0
        %910 = vmatprep.subr.mxu0 0.0
        %911 = vmatpush2.msra.mxu0 0.0
        %912 = vmatprep.subr.mxu0 0.0
        %913 = vmatpush2.msra.mxu0 0.0
        %914 = vmatprep.subr.mxu0 0.0
        %915 = vmatpush2.msra.mxu0 0.0
        %916 = vmatprep.subr.mxu0 0.0
        %917 = vmatpush2.msra.mxu0 0.0
        %918 = vmatprep.subr.mxu0 0.0
        %919 = vmatpush2.msra.mxu0 0.0
        %920 = vmatprep.subr.mxu0 0.0
        %921 = vmatpush2.msra.mxu0 0.0
        %922 = vmatprep.subr.mxu0 0.0
        %923 = vmatpush2.msra.mxu0 0.0
        %924 = vmatprep.mubr.f32.mxu0 0.0
        %v925 = vand.u32 %v386, 4294901760
        %926 = vmatmul.mubr.f32.gmra.mxu0 %v925
        %v927 = vpop.f32.mrf.mxu0
        %v928 = vadd.f32 %v843, %v927
        %v929 = vpop.f32.mrf.mxu0
        %930 = vmatprep.mubr.f32.mxu0 0.0
        %v931 = vand.u32 %v389, 4294901760
        %932 = vmatmul.mubr.f32.gmra.mxu0 %v931
        %v933 = vpop.f32.mrf.mxu0
        %v934 = vadd.f32 %v849, %v933
        %v935 = vpop.f32.mrf.mxu0
        %936 = vmatprep.mubr.f32.mxu0 0.0
        %v937 = vand.u32 %v392, 4294901760
        %938 = vmatmul.mubr.f32.gmra.mxu0 %v937
        %v939 = vpop.f32.mrf.mxu0
        %v940 = vadd.f32 %v855, %v939
        %v941 = vpop.f32.mrf.mxu0
        %942 = vdwg.mxu0
        %v943 = vmax.f32 %v928, 0.0
        %v944 = vmax.f32 %v934, 0.0
        %v945 = vmax.f32 %v940, 0.0
        %v946 = vld [vmem:[%s5] sm:$0xff]
        %v947 = vld [vmem:[%s5 + $0x8] sm:$0x3]
        %v948 = vld [vmem:[%s6] sm:$0xff]
        %v949 = vld [vmem:[%s6 + $0x8] sm:$0x3]
        %951 = vset.pattern.permute.xlu0 0
        %952 = vperm.xlu0 %951, %v948
        %v953 = vpop.permute.xlu0 %952
        %956 = vset.pattern.permute.xlu0 0
        %957 = vperm.xlu0 %956, %v949
        %v958 = vpop.permute.xlu0 %957
        %vm960 = vcmask 162816
        %v962 = vsel %vm960, %v946, 0
        %v965 = vsel %vm960, %v947, 0
        %vm967 = vcmask 1043456
        %v969 = vsel %vm967, %v945, 0
        %971 = vmatprep.subr.mxu0 0.0
        %972 = vmatpush1.msra.mxu0 0.0
        %973 = vmatprep.subr.mxu0 0.0
        %974 = vmatpush1.msra.mxu0 0.0
        %975 = vmatprep.subr.mxu0 0.0
        %976 = vmatpush1.msra.mxu0 0.0
        %977 = vmatprep.subr.mxu0 0.0
        %978 = vmatpush1.msra.mxu0 0.0
        %979 = vmatprep.subr.mxu0 0.0
        %980 = vmatpush1.msra.mxu0 0.0
        %981 = vmatprep.subr.mxu0 0.0
        %982 = vmatpush1.msra.mxu0 0.0
        %983 = vmatprep.subr.mxu0 0.0
        %984 = vmatpush1.msra.mxu0 0.0
        %985 = vmatprep.subr.mxu0 0.0
        %986 = vmatpush1.msra.mxu0 0.0
        %987 = vmatprep.subr.mxu0 0.0
        %988 = vmatpush1.msra.mxu0 0.0
        %989 = vmatprep.subr.mxu0 0.0
        %990 = vmatpush1.msra.mxu0 0.0
        %991 = vmatprep.subr.mxu0 0.0
        %992 = vmatpush1.msra.mxu0 0.0
        %993 = vmatprep.subr.mxu0 0.0
        %994 = vmatpush1.msra.mxu0 0.0
        %995 = vmatprep.subr.mxu0 0.0
        %996 = vmatpush1.msra.mxu0 0.0
        %997 = vmatprep.subr.mxu0 0.0
        %v998 = vand.u32 %v969, 4294901760
        %999 = vmatpush1.msra.mxu0 %v998
        %1000 = vmatprep.subr.mxu0 0.0
        %v1001 = vand.u32 %v944, 4294901760
        %1002 = vmatpush1.msra.mxu0 %v1001
        %1003 = vmatprep.subr.mxu0 0.0
        %v1004 = vand.u32 %v943, 4294901760
        %1005 = vmatpush1.msra.mxu0 %v1004
        %1006 = vmatprep.subr.mxu0 0.0
        %1007 = vmatpush2.msra.mxu0 0.0
        %1008 = vmatprep.subr.mxu0 0.0
        %1009 = vmatpush2.msra.mxu0 0.0
        %1010 = vmatprep.subr.mxu0 0.0
        %1011 = vmatpush2.msra.mxu0 0.0
        %1012 = vmatprep.subr.mxu0 0.0
        %1013 = vmatpush2.msra.mxu0 0.0
        %1014 = vmatprep.subr.mxu0 0.0
        %1015 = vmatpush2.msra.mxu0 0.0
        %1016 = vmatprep.subr.mxu0 0.0
        %1017 = vmatpush2.msra.mxu0 0.0
        %1018 = vmatprep.subr.mxu0 0.0
        %1019 = vmatpush2.msra.mxu0 0.0
        %1020 = vmatprep.subr.mxu0 0.0
        %1021 = vmatpush2.msra.mxu0 0.0
        %1022 = vmatprep.subr.mxu0 0.0
        %1023 = vmatpush2.msra.mxu0 0.0
        %1024 = vmatprep.subr.mxu0 0.0
        %1025 = vmatpush2.msra.mxu0 0.0
        %1026 = vmatprep.subr.mxu0 0.0
        %1027 = vmatpush2.msra.mxu0 0.0
        %1028 = vmatprep.subr.mxu0 0.0
        %1029 = vmatpush2.msra.mxu0 0.0
        %1030 = vmatprep.subr.mxu0 0.0
        %1031 = vmatpush2.msra.mxu0 0.0
        %1032 = vmatprep.subr.mxu0 0.0
        %1033 = vmatpush2.msra.mxu0 0.0
        %1034 = vmatprep.subr.mxu0 0.0
        %1035 = vmatpush2.msra.mxu0 0.0
        %1036 = vmatprep.subr.mxu0 0.0
        %1037 = vmatpush2.msra.mxu0 0.0
        %1038 = vmatprep.mubr.f32.mxu0 0.0
        %v1039 = vand.u32 %v962, 4294901760
        %v1040 = vsub.f32 %v962, %v1039
        %v1041 = vand.u32 %v1040, 4294901760
        %v1042 = vsub.f32 %v1040, %v1041
        %v1043 = vand.u32 %v1042, 4294901760
        %1044 = vmatmul.mubr.f32.gmra.mxu0 %v1043
        %v1045 = vpop.f32.mrf.mxu0
        %v1046 = vadd.f32 %v953, %v1045
        %v1047 = vpop.f32.mrf.mxu0
        %1048 = vmatprep.mubr.f32.mxu0 0.0
        %v1049 = vand.u32 %v965, 4294901760
        %v1050 = vsub.f32 %v965, %v1049
        %v1051 = vand.u32 %v1050, 4294901760
        %v1052 = vsub.f32 %v1050, %v1051
        %v1053 = vand.u32 %v1052, 4294901760
        %1054 = vmatmul.mubr.f32.gmra.mxu0 %v1053
        %v1055 = vpop.f32.mrf.mxu0
        %v1056 = vadd.f32 %v958, %v1055
        %v1057 = vpop.f32.mrf.mxu0
        %1058 = vdwg.mxu0
        %1059 = vmatprep.subr.mxu0 0.0
        %1060 = vmatpush1.msra.mxu0 0.0
        %1061 = vmatprep.subr.mxu0 0.0
        %1062 = vmatpush1.msra.mxu0 0.0
        %1063 = vmatprep.subr.mxu0 0.0
        %1064 = vmatpush1.msra.mxu0 0.0
        %1065 = vmatprep.subr.mxu0 0.0
        %1066 = vmatpush1.msra.mxu0 0.0
        %1067 = vmatprep.subr.mxu0 0.0
        %1068 = vmatpush1.msra.mxu0 0.0
        %1069 = vmatprep.subr.mxu0 0.0
        %1070 = vmatpush1.msra.mxu0 0.0
        %1071 = vmatprep.subr.mxu0 0.0
        %1072 = vmatpush1.msra.mxu0 0.0
        %1073 = vmatprep.subr.mxu0 0.0
        %1074 = vmatpush1.msra.mxu0 0.0
        %1075 = vmatprep.subr.mxu0 0.0
        %1076 = vmatpush1.msra.mxu0 0.0
        %1077 = vmatprep.subr.mxu0 0.0
        %1078 = vmatpush1.msra.mxu0 0.0
        %1079 = vmatprep.subr.mxu0 0.0
        %1080 = vmatpush1.msra.mxu0 0.0
        %1081 = vmatprep.subr.mxu0 0.0
        %1082 = vmatpush1.msra.mxu0 0.0
        %1083 = vmatprep.subr.mxu0 0.0
        %1084 = vmatpush1.msra.mxu0 0.0
        %1085 = vmatprep.subr.mxu0 0.0
        %v1086 = vand.u32 %v969, 4294901760
        %v1087 = vsub.f32 %v969, %v1086
        %v1088 = vand.u32 %v1087, 4294901760
        %v1089 = vsub.f32 %v1087, %v1088
        %v1090 = vand.u32 %v1089, 4294901760
        %1091 = vmatpush1.msra.mxu0 %v1090
        %1092 = vmatprep.subr.mxu0 0.0
        %v1093 = vand.u32 %v944, 4294901760
        %v1094 = vsub.f32 %v944, %v1093
        %v1095 = vand.u32 %v1094, 4294901760
        %v1096 = vsub.f32 %v1094, %v1095
        %v1097 = vand.u32 %v1096, 4294901760
        %1098 = vmatpush1.msra.mxu0 %v1097
        %1099 = vmatprep.subr.mxu0 0.0
        %v1100 = vand.u32 %v943, 4294901760
        %v1101 = vsub.f32 %v943, %v1100
        %v1102 = vand.u32 %v1101, 4294901760
        %v1103 = vsub.f32 %v1101, %v1102
        %v1104 = vand.u32 %v1103, 4294901760
        %1105 = vmatpush1.msra.mxu0 %v1104
        %1106 = vmatprep.subr.mxu0 0.0
        %1107 = vmatpush2.msra.mxu0 0.0
        %1108 = vmatprep.subr.mxu0 0.0
        %1109 = vmatpush2.msra.mxu0 0.0
        %1110 = vmatprep.subr.mxu0 0.0
        %1111 = vmatpush2.msra.mxu0 0.0
        %1112 = vmatprep.subr.mxu0 0.0
        %1113 = vmatpush2.msra.mxu0 0.0
        %1114 = vmatprep.subr.mxu0 0.0
        %1115 = vmatpush2.msra.mxu0 0.0
        %1116 = vmatprep.subr.mxu0 0.0
        %1117 = vmatpush2.msra.mxu0 0.0
        %1118 = vmatprep.subr.mxu0 0.0
        %1119 = vmatpush2.msra.mxu0 0.0
        %1120 = vmatprep.subr.mxu0 0.0
        %1121 = vmatpush2.msra.mxu0 0.0
        %1122 = vmatprep.subr.mxu0 0.0
        %1123 = vmatpush2.msra.mxu0 0.0
        %1124 = vmatprep.subr.mxu0 0.0
        %1125 = vmatpush2.msra.mxu0 0.0
        %1126 = vmatprep.subr.mxu0 0.0
        %1127 = vmatpush2.msra.mxu0 0.0
        %1128 = vmatprep.subr.mxu0 0.0
        %1129 = vmatpush2.msra.mxu0 0.0
        %1130 = vmatprep.subr.mxu0 0.0
        %1131 = vmatpush2.msra.mxu0 0.0
        %1132 = vmatprep.subr.mxu0 0.0
        %1133 = vmatpush2.msra.mxu0 0.0
        %1134 = vmatprep.subr.mxu0 0.0
        %1135 = vmatpush2.msra.mxu0 0.0
        %1136 = vmatprep.subr.mxu0 0.0
        %1137 = vmatpush2.msra.mxu0 0.0
        %1138 = vmatprep.mubr.f32.mxu0 0.0
        %v1139 = vand.u32 %v962, 4294901760
        %1140 = vmatmul.mubr.f32.gmra.mxu0 %v1139
        %v1141 = vpop.f32.mrf.mxu0
        %v1142 = vadd.f32 %v1046, %v1141
        %v1143 = vpop.f32.mrf.mxu0
        %1144 = vmatprep.mubr.f32.mxu0 0.0
        %v1145 = vand.u32 %v965, 4294901760
        %1146 = vmatmul.mubr.f32.gmra.mxu0 %v1145
        %v1147 = vpop.f32.mrf.mxu0
        %v1148 = vadd.f32 %v1056, %v1147
        %v1149 = vpop.f32.mrf.mxu0
        %1150 = vdwg.mxu0
        %1151 = vmatprep.subr.mxu0 0.0
        %1152 = vmatpush1.msra.mxu0 0.0
        %1153 = vmatprep.subr.mxu0 0.0
        %1154 = vmatpush1.msra.mxu0 0.0
        %1155 = vmatprep.subr.mxu0 0.0
        %1156 = vmatpush1.msra.mxu0 0.0
        %1157 = vmatprep.subr.mxu0 0.0
        %1158 = vmatpush1.msra.mxu0 0.0
        %1159 = vmatprep.subr.mxu0 0.0
        %1160 = vmatpush1.msra.mxu0 0.0
        %1161 = vmatprep.subr.mxu0 0.0
        %1162 = vmatpush1.msra.mxu0 0.0
        %1163 = vmatprep.subr.mxu0 0.0
        %1164 = vmatpush1.msra.mxu0 0.0
        %1165 = vmatprep.subr.mxu0 0.0
        %1166 = vmatpush1.msra.mxu0 0.0
        %1167 = vmatprep.subr.mxu0 0.0
        %1168 = vmatpush1.msra.mxu0 0.0
        %1169 = vmatprep.subr.mxu0 0.0
        %1170 = vmatpush1.msra.mxu0 0.0
        %1171 = vmatprep.subr.mxu0 0.0
        %1172 = vmatpush1.msra.mxu0 0.0
        %1173 = vmatprep.subr.mxu0 0.0
        %1174 = vmatpush1.msra.mxu0 0.0
        %1175 = vmatprep.subr.mxu0 0.0
        %1176 = vmatpush1.msra.mxu0 0.0
        %1177 = vmatprep.subr.mxu0 0.0
        %v1178 = vand.u32 %v969, 4294901760
        %v1179 = vsub.f32 %v969, %v1178
        %1180 = vmatpush1.msra.mxu0 %v1179
        %1181 = vmatprep.subr.mxu0 0.0
        %v1182 = vand.u32 %v944, 4294901760
        %v1183 = vsub.f32 %v944, %v1182
        %1184 = vmatpush1.msra.mxu0 %v1183
        %1185 = vmatprep.subr.mxu0 0.0
        %v1186 = vand.u32 %v943, 4294901760
        %v1187 = vsub.f32 %v943, %v1186
        %1188 = vmatpush1.msra.mxu0 %v1187
        %1189 = vmatprep.subr.mxu0 0.0
        %1190 = vmatpush2.msra.mxu0 0.0
        %1191 = vmatprep.subr.mxu0 0.0
        %1192 = vmatpush2.msra.mxu0 0.0
        %1193 = vmatprep.subr.mxu0 0.0
        %1194 = vmatpush2.msra.mxu0 0.0
        %1195 = vmatprep.subr.mxu0 0.0
        %1196 = vmatpush2.msra.mxu0 0.0
        %1197 = vmatprep.subr.mxu0 0.0
        %1198 = vmatpush2.msra.mxu0 0.0
        %1199 = vmatprep.subr.mxu0 0.0
        %1200 = vmatpush2.msra.mxu0 0.0
        %1201 = vmatprep.subr.mxu0 0.0
        %1202 = vmatpush2.msra.mxu0 0.0
        %1203 = vmatprep.subr.mxu0 0.0
        %1204 = vmatpush2.msra.mxu0 0.0
        %1205 = vmatprep.subr.mxu0 0.0
        %1206 = vmatpush2.msra.mxu0 0.0
        %1207 = vmatprep.subr.mxu0 0.0
        %1208 = vmatpush2.msra.mxu0 0.0
        %1209 = vmatprep.subr.mxu0 0.0
        %1210 = vmatpush2.msra.mxu0 0.0
        %1211 = vmatprep.subr.mxu0 0.0
        %1212 = vmatpush2.msra.mxu0 0.0
        %1213 = vmatprep.subr.mxu0 0.0
        %1214 = vmatpush2.msra.mxu0 0.0
        %1215 = vmatprep.subr.mxu0 0.0
        %1216 = vmatpush2.msra.mxu0 0.0
        %1217 = vmatprep.subr.mxu0 0.0
        %1218 = vmatpush2.msra.mxu0 0.0
        %1219 = vmatprep.subr.mxu0 0.0
        %1220 = vmatpush2.msra.mxu0 0.0
        %1221 = vmatprep.mubr.f32.mxu0 0.0
        %v1222 = vand.u32 %v962, 4294901760
        %v1223 = vsub.f32 %v962, %v1222
        %1224 = vmatmul.mubr.f32.gmra.mxu0 %v1223
        %v1225 = vpop.f32.mrf.mxu0
        %v1226 = vadd.f32 %v1142, %v1225
        %v1227 = vpop.f32.mrf.mxu0
        %1228 = vmatprep.mubr.f32.mxu0 0.0
        %v1229 = vand.u32 %v965, 4294901760
        %v1230 = vsub.f32 %v965, %v1229
        %1231 = vmatmul.mubr.f32.gmra.mxu0 %v1230
        %v1232 = vpop.f32.mrf.mxu0
        %v1233 = vadd.f32 %v1148, %v1232
        %v1234 = vpop.f32.mrf.mxu0
        %1235 = vdwg.mxu0
        %1236 = vmatprep.subr.mxu0 0.0
        %1237 = vmatpush1.msra.mxu0 0.0
        %1238 = vmatprep.subr.mxu0 0.0
        %1239 = vmatpush1.msra.mxu0 0.0
        %1240 = vmatprep.subr.mxu0 0.0
        %1241 = vmatpush1.msra.mxu0 0.0
        %1242 = vmatprep.subr.mxu0 0.0
        %1243 = vmatpush1.msra.mxu0 0.0
        %1244 = vmatprep.subr.mxu0 0.0
        %1245 = vmatpush1.msra.mxu0 0.0
        %1246 = vmatprep.subr.mxu0 0.0
        %1247 = vmatpush1.msra.mxu0 0.0
        %1248 = vmatprep.subr.mxu0 0.0
        %1249 = vmatpush1.msra.mxu0 0.0
        %1250 = vmatprep.subr.mxu0 0.0
        %1251 = vmatpush1.msra.mxu0 0.0
        %1252 = vmatprep.subr.mxu0 0.0
        %1253 = vmatpush1.msra.mxu0 0.0
        %1254 = vmatprep.subr.mxu0 0.0
        %1255 = vmatpush1.msra.mxu0 0.0
        %1256 = vmatprep.subr.mxu0 0.0
        %1257 = vmatpush1.msra.mxu0 0.0
        %1258 = vmatprep.subr.mxu0 0.0
        %1259 = vmatpush1.msra.mxu0 0.0
        %1260 = vmatprep.subr.mxu0 0.0
        %1261 = vmatpush1.msra.mxu0 0.0
        %1262 = vmatprep.subr.mxu0 0.0
        %v1263 = vand.u32 %v969, 4294901760
        %1264 = vmatpush1.msra.mxu0 %v1263
        %1265 = vmatprep.subr.mxu0 0.0
        %v1266 = vand.u32 %v944, 4294901760
        %1267 = vmatpush1.msra.mxu0 %v1266
        %1268 = vmatprep.subr.mxu0 0.0
        %v1269 = vand.u32 %v943, 4294901760
        %1270 = vmatpush1.msra.mxu0 %v1269
        %1271 = vmatprep.subr.mxu0 0.0
        %1272 = vmatpush2.msra.mxu0 0.0
        %1273 = vmatprep.subr.mxu0 0.0
        %1274 = vmatpush2.msra.mxu0 0.0
        %1275 = vmatprep.subr.mxu0 0.0
        %1276 = vmatpush2.msra.mxu0 0.0
        %1277 = vmatprep.subr.mxu0 0.0
        %1278 = vmatpush2.msra.mxu0 0.0
        %1279 = vmatprep.subr.mxu0 0.0
        %1280 = vmatpush2.msra.mxu0 0.0
        %1281 = vmatprep.subr.mxu0 0.0
        %1282 = vmatpush2.msra.mxu0 0.0
        %1283 = vmatprep.subr.mxu0 0.0
        %1284 = vmatpush2.msra.mxu0 0.0
        %1285 = vmatprep.subr.mxu0 0.0
        %1286 = vmatpush2.msra.mxu0 0.0
        %1287 = vmatprep.subr.mxu0 0.0
        %1288 = vmatpush2.msra.mxu0 0.0
        %1289 = vmatprep.subr.mxu0 0.0
        %1290 = vmatpush2.msra.mxu0 0.0
        %1291 = vmatprep.subr.mxu0 0.0
        %1292 = vmatpush2.msra.mxu0 0.0
        %1293 = vmatprep.subr.mxu0 0.0
        %1294 = vmatpush2.msra.mxu0 0.0
        %1295 = vmatprep.subr.mxu0 0.0
        %1296 = vmatpush2.msra.mxu0 0.0
        %1297 = vmatprep.subr.mxu0 0.0
        %1298 = vmatpush2.msra.mxu0 0.0
        %1299 = vmatprep.subr.mxu0 0.0
        %1300 = vmatpush2.msra.mxu0 0.0
        %1301 = vmatprep.subr.mxu0 0.0
        %1302 = vmatpush2.msra.mxu0 0.0
        %1303 = vmatprep.mubr.f32.mxu0 0.0
        %v1304 = vand.u32 %v962, 4294901760
        %v1305 = vsub.f32 %v962, %v1304
        %v1306 = vand.u32 %v1305, 4294901760
        %1307 = vmatmul.mubr.f32.gmra.mxu0 %v1306
        %v1308 = vpop.f32.mrf.mxu0
        %v1309 = vadd.f32 %v1226, %v1308
        %v1310 = vpop.f32.mrf.mxu0
        %1311 = vmatprep.mubr.f32.mxu0 0.0
        %v1312 = vand.u32 %v965, 4294901760
        %v1313 = vsub.f32 %v965, %v1312
        %v1314 = vand.u32 %v1313, 4294901760
        %1315 = vmatmul.mubr.f32.gmra.mxu0 %v1314
        %v1316 = vpop.f32.mrf.mxu0
        %v1317 = vadd.f32 %v1233, %v1316
        %v1318 = vpop.f32.mrf.mxu0
        %1319 = vdwg.mxu0
        %1320 = vmatprep.subr.mxu0 0.0
        %1321 = vmatpush1.msra.mxu0 0.0
        %1322 = vmatprep.subr.mxu0 0.0
        %1323 = vmatpush1.msra.mxu0 0.0
        %1324 = vmatprep.subr.mxu0 0.0
        %1325 = vmatpush1.msra.mxu0 0.0
        %1326 = vmatprep.subr.mxu0 0.0
        %1327 = vmatpush1.msra.mxu0 0.0
        %1328 = vmatprep.subr.mxu0 0.0
        %1329 = vmatpush1.msra.mxu0 0.0
        %1330 = vmatprep.subr.mxu0 0.0
        %1331 = vmatpush1.msra.mxu0 0.0
        %1332 = vmatprep.subr.mxu0 0.0
        %1333 = vmatpush1.msra.mxu0 0.0
        %1334 = vmatprep.subr.mxu0 0.0
        %1335 = vmatpush1.msra.mxu0 0.0
        %1336 = vmatprep.subr.mxu0 0.0
        %1337 = vmatpush1.msra.mxu0 0.0
        %1338 = vmatprep.subr.mxu0 0.0
        %1339 = vmatpush1.msra.mxu0 0.0
        %1340 = vmatprep.subr.mxu0 0.0
        %1341 = vmatpush1.msra.mxu0 0.0
        %1342 = vmatprep.subr.mxu0 0.0
        %1343 = vmatpush1.msra.mxu0 0.0
        %1344 = vmatprep.subr.mxu0 0.0
        %1345 = vmatpush1.msra.mxu0 0.0
        %1346 = vmatprep.subr.mxu0 0.0
        %v1347 = vand.u32 %v969, 4294901760
        %v1348 = vsub.f32 %v969, %v1347
        %v1349 = vand.u32 %v1348, 4294901760
        %1350 = vmatpush1.msra.mxu0 %v1349
        %1351 = vmatprep.subr.mxu0 0.0
        %v1352 = vand.u32 %v944, 4294901760
        %v1353 = vsub.f32 %v944, %v1352
        %v1354 = vand.u32 %v1353, 4294901760
        %1355 = vmatpush1.msra.mxu0 %v1354
        %1356 = vmatprep.subr.mxu0 0.0
        %v1357 = vand.u32 %v943, 4294901760
        %v1358 = vsub.f32 %v943, %v1357
        %v1359 = vand.u32 %v1358, 4294901760
        %1360 = vmatpush1.msra.mxu0 %v1359
        %1361 = vmatprep.subr.mxu0 0.0
        %1362 = vmatpush2.msra.mxu0 0.0
        %1363 = vmatprep.subr.mxu0 0.0
        %1364 = vmatpush2.msra.mxu0 0.0
        %1365 = vmatprep.subr.mxu0 0.0
        %1366 = vmatpush2.msra.mxu0 0.0
        %1367 = vmatprep.subr.mxu0 0.0
        %1368 = vmatpush2.msra.mxu0 0.0
        %1369 = vmatprep.subr.mxu0 0.0
        %1370 = vmatpush2.msra.mxu0 0.0
        %1371 = vmatprep.subr.mxu0 0.0
        %1372 = vmatpush2.msra.mxu0 0.0
        %1373 = vmatprep.subr.mxu0 0.0
        %1374 = vmatpush2.msra.mxu0 0.0
        %1375 = vmatprep.subr.mxu0 0.0
        %1376 = vmatpush2.msra.mxu0 0.0
        %1377 = vmatprep.subr.mxu0 0.0
        %1378 = vmatpush2.msra.mxu0 0.0
        %1379 = vmatprep.subr.mxu0 0.0
        %1380 = vmatpush2.msra.mxu0 0.0
        %1381 = vmatprep.subr.mxu0 0.0
        %1382 = vmatpush2.msra.mxu0 0.0
        %1383 = vmatprep.subr.mxu0 0.0
        %1384 = vmatpush2.msra.mxu0 0.0
        %1385 = vmatprep.subr.mxu0 0.0
        %1386 = vmatpush2.msra.mxu0 0.0
        %1387 = vmatprep.subr.mxu0 0.0
        %1388 = vmatpush2.msra.mxu0 0.0
        %1389 = vmatprep.subr.mxu0 0.0
        %1390 = vmatpush2.msra.mxu0 0.0
        %1391 = vmatprep.subr.mxu0 0.0
        %1392 = vmatpush2.msra.mxu0 0.0
        %1393 = vmatprep.mubr.f32.mxu0 0.0
        %v1394 = vand.u32 %v962, 4294901760
        %1395 = vmatmul.mubr.f32.gmra.mxu0 %v1394
        %v1396 = vpop.f32.mrf.mxu0
        %v1397 = vadd.f32 %v1309, %v1396
        %v1398 = vpop.f32.mrf.mxu0
        %1399 = vmatprep.mubr.f32.mxu0 0.0
        %v1400 = vand.u32 %v965, 4294901760
        %1401 = vmatmul.mubr.f32.gmra.mxu0 %v1400
        %v1402 = vpop.f32.mrf.mxu0
        %v1403 = vadd.f32 %v1317, %v1402
        %v1404 = vpop.f32.mrf.mxu0
        %1405 = vdwg.mxu0
        %1406 = vmatprep.subr.mxu0 0.0
        %1407 = vmatpush1.msra.mxu0 0.0
        %1408 = vmatprep.subr.mxu0 0.0
        %1409 = vmatpush1.msra.mxu0 0.0
        %1410 = vmatprep.subr.mxu0 0.0
        %1411 = vmatpush1.msra.mxu0 0.0
        %1412 = vmatprep.subr.mxu0 0.0
        %1413 = vmatpush1.msra.mxu0 0.0
        %1414 = vmatprep.subr.mxu0 0.0
        %1415 = vmatpush1.msra.mxu0 0.0
        %1416 = vmatprep.subr.mxu0 0.0
        %1417 = vmatpush1.msra.mxu0 0.0
        %1418 = vmatprep.subr.mxu0 0.0
        %1419 = vmatpush1.msra.mxu0 0.0
        %1420 = vmatprep.subr.mxu0 0.0
        %1421 = vmatpush1.msra.mxu0 0.0
        %1422 = vmatprep.subr.mxu0 0.0
        %1423 = vmatpush1.msra.mxu0 0.0
        %1424 = vmatprep.subr.mxu0 0.0
        %1425 = vmatpush1.msra.mxu0 0.0
        %1426 = vmatprep.subr.mxu0 0.0
        %1427 = vmatpush1.msra.mxu0 0.0
        %1428 = vmatprep.subr.mxu0 0.0
        %1429 = vmatpush1.msra.mxu0 0.0
        %1430 = vmatprep.subr.mxu0 0.0
        %1431 = vmatpush1.msra.mxu0 0.0
        %1432 = vmatprep.subr.mxu0 0.0
        %v1433 = vand.u32 %v969, 4294901760
        %1434 = vmatpush1.msra.mxu0 %v1433
        %1435 = vmatprep.subr.mxu0 0.0
        %v1436 = vand.u32 %v944, 4294901760
        %1437 = vmatpush1.msra.mxu0 %v1436
        %1438 = vmatprep.subr.mxu0 0.0
        %v1439 = vand.u32 %v943, 4294901760
        %1440 = vmatpush1.msra.mxu0 %v1439
        %1441 = vmatprep.subr.mxu0 0.0
        %1442 = vmatpush2.msra.mxu0 0.0
        %1443 = vmatprep.subr.mxu0 0.0
        %1444 = vmatpush2.msra.mxu0 0.0
        %1445 = vmatprep.subr.mxu0 0.0
        %1446 = vmatpush2.msra.mxu0 0.0
        %1447 = vmatprep.subr.mxu0 0.0
        %1448 = vmatpush2.msra.mxu0 0.0
        %1449 = vmatprep.subr.mxu0 0.0
        %1450 = vmatpush2.msra.mxu0 0.0
        %1451 = vmatprep.subr.mxu0 0.0
        %1452 = vmatpush2.msra.mxu0 0.0
        %1453 = vmatprep.subr.mxu0 0.0
        %1454 = vmatpush2.msra.mxu0 0.0
        %1455 = vmatprep.subr.mxu0 0.0
        %1456 = vmatpush2.msra.mxu0 0.0
        %1457 = vmatprep.subr.mxu0 0.0
        %1458 = vmatpush2.msra.mxu0 0.0
        %1459 = vmatprep.subr.mxu0 0.0
        %1460 = vmatpush2.msra.mxu0 0.0
        %1461 = vmatprep.subr.mxu0 0.0
        %1462 = vmatpush2.msra.mxu0 0.0
        %1463 = vmatprep.subr.mxu0 0.0
        %1464 = vmatpush2.msra.mxu0 0.0
        %1465 = vmatprep.subr.mxu0 0.0
        %1466 = vmatpush2.msra.mxu0 0.0
        %1467 = vmatprep.subr.mxu0 0.0
        %1468 = vmatpush2.msra.mxu0 0.0
        %1469 = vmatprep.subr.mxu0 0.0
        %1470 = vmatpush2.msra.mxu0 0.0
        %1471 = vmatprep.subr.mxu0 0.0
        %1472 = vmatpush2.msra.mxu0 0.0
        %1473 = vmatprep.mubr.f32.mxu0 0.0
        %v1474 = vand.u32 %v962, 4294901760
        %1475 = vmatmul.mubr.f32.gmra.mxu0 %v1474
        %v1476 = vpop.f32.mrf.mxu0
        %v1477 = vadd.f32 %v1397, %v1476
        %v1478 = vpop.f32.mrf.mxu0
        %1479 = vmatprep.mubr.f32.mxu0 0.0
        %v1480 = vand.u32 %v965, 4294901760
        %1481 = vmatmul.mubr.f32.gmra.mxu0 %v1480
        %v1482 = vpop.f32.mrf.mxu0
        %v1483 = vadd.f32 %v1403, %v1482
        %v1484 = vpop.f32.mrf.mxu0
        %1485 = vdwg.mxu0
        %v1486 = vmax.f32 %v1477, 0.0
        %v1487 = vmax.f32 %v1483, 0.0
        %v1488 = vld [vmem:[%s7] sm:$0x1]
        %v1489 = vld [vmem:[#allocation2] sm:$0x1]
        %1491 = vset.pattern.permute.xlu0 0
        %1492 = vperm.xlu0 %1491, %v1489
        %v1493 = vpop.permute.xlu0 %1492
        %v1495 = vlaneseq
        %v1496 = vshrl.u32 %v1495, 7
        %v1497 = vsub.s32 0, %v1496
        %v1498 = vrot.slane %v1493, %v1497
        %v1500 = vsel %vm384, %v1488, 0
        %v1503 = vsel %vm394, %v1487, 0
        %1505 = vmatprep.subr.mxu0 0.0
        %1506 = vmatpush1.msra.mxu0 0.0
        %1507 = vmatprep.subr.mxu0 0.0
        %1508 = vmatpush1.msra.mxu0 0.0
        %1509 = vmatprep.subr.mxu0 0.0
        %1510 = vmatpush1.msra.mxu0 0.0
        %1511 = vmatprep.subr.mxu0 0.0
        %1512 = vmatpush1.msra.mxu0 0.0
        %1513 = vmatprep.subr.mxu0 0.0
        %1514 = vmatpush1.msra.mxu0 0.0
        %1515 = vmatprep.subr.mxu0 0.0
        %1516 = vmatpush1.msra.mxu0 0.0
        %1517 = vmatprep.subr.mxu0 0.0
        %1518 = vmatpush1.msra.mxu0 0.0
        %1519 = vmatprep.subr.mxu0 0.0
        %1520 = vmatpush1.msra.mxu0 0.0
        %1521 = vmatprep.subr.mxu0 0.0
        %1522 = vmatpush1.msra.mxu0 0.0
        %1523 = vmatprep.subr.mxu0 0.0
        %1524 = vmatpush1.msra.mxu0 0.0
        %1525 = vmatprep.subr.mxu0 0.0
        %1526 = vmatpush1.msra.mxu0 0.0
        %1527 = vmatprep.subr.mxu0 0.0
        %1528 = vmatpush1.msra.mxu0 0.0
        %1529 = vmatprep.subr.mxu0 0.0
        %1530 = vmatpush1.msra.mxu0 0.0
        %1531 = vmatprep.subr.mxu0 0.0
        %1532 = vmatpush1.msra.mxu0 0.0
        %1533 = vmatprep.subr.mxu0 0.0
        %v1534 = vand.u32 %v1503, 4294901760
        %1535 = vmatpush1.msra.mxu0 %v1534
        %1536 = vmatprep.subr.mxu0 0.0
        %v1537 = vand.u32 %v1486, 4294901760
        %1538 = vmatpush1.msra.mxu0 %v1537
        %1539 = vmatprep.subr.mxu0 0.0
        %1540 = vmatpush2.msra.mxu0 0.0
        %1541 = vmatprep.subr.mxu0 0.0
        %1542 = vmatpush2.msra.mxu0 0.0
        %1543 = vmatprep.subr.mxu0 0.0
        %1544 = vmatpush2.msra.mxu0 0.0
        %1545 = vmatprep.subr.mxu0 0.0
        %1546 = vmatpush2.msra.mxu0 0.0
        %1547 = vmatprep.subr.mxu0 0.0
        %1548 = vmatpush2.msra.mxu0 0.0
        %1549 = vmatprep.subr.mxu0 0.0
        %1550 = vmatpush2.msra.mxu0 0.0
        %1551 = vmatprep.subr.mxu0 0.0
        %1552 = vmatpush2.msra.mxu0 0.0
        %1553 = vmatprep.subr.mxu0 0.0
        %1554 = vmatpush2.msra.mxu0 0.0
        %1555 = vmatprep.subr.mxu0 0.0
        %1556 = vmatpush2.msra.mxu0 0.0
        %1557 = vmatprep.subr.mxu0 0.0
        %1558 = vmatpush2.msra.mxu0 0.0
        %1559 = vmatprep.subr.mxu0 0.0
        %1560 = vmatpush2.msra.mxu0 0.0
        %1561 = vmatprep.subr.mxu0 0.0
        %1562 = vmatpush2.msra.mxu0 0.0
        %1563 = vmatprep.subr.mxu0 0.0
        %1564 = vmatpush2.msra.mxu0 0.0
        %1565 = vmatprep.subr.mxu0 0.0
        %1566 = vmatpush2.msra.mxu0 0.0
        %1567 = vmatprep.subr.mxu0 0.0
        %1568 = vmatpush2.msra.mxu0 0.0
        %1569 = vmatprep.subr.mxu0 0.0
        %1570 = vmatpush2.msra.mxu0 0.0
        %1571 = vmatprep.mubr.f32.mxu0 0.0
        %v1572 = vand.u32 %v1500, 4294901760
        %v1573 = vsub.f32 %v1500, %v1572
        %v1574 = vand.u32 %v1573, 4294901760
        %v1575 = vsub.f32 %v1573, %v1574
        %v1576 = vand.u32 %v1575, 4294901760
        %1577 = vmatmul.mubr.f32.gmra.mxu0 %v1576
        %v1578 = vpop.f32.mrf.mxu0
        %v1579 = vadd.f32 %v1498, %v1578
        %v1580 = vpop.f32.mrf.mxu0
        %1581 = vdwg.mxu0
        %1582 = vmatprep.subr.mxu0 0.0
        %1583 = vmatpush1.msra.mxu0 0.0
        %1584 = vmatprep.subr.mxu0 0.0
        %1585 = vmatpush1.msra.mxu0 0.0
        %1586 = vmatprep.subr.mxu0 0.0
        %1587 = vmatpush1.msra.mxu0 0.0
        %1588 = vmatprep.subr.mxu0 0.0
        %1589 = vmatpush1.msra.mxu0 0.0
        %1590 = vmatprep.subr.mxu0 0.0
        %1591 = vmatpush1.msra.mxu0 0.0
        %1592 = vmatprep.subr.mxu0 0.0
        %1593 = vmatpush1.msra.mxu0 0.0
        %1594 = vmatprep.subr.mxu0 0.0
        %1595 = vmatpush1.msra.mxu0 0.0
        %1596 = vmatprep.subr.mxu0 0.0
        %1597 = vmatpush1.msra.mxu0 0.0
        %1598 = vmatprep.subr.mxu0 0.0
        %1599 = vmatpush1.msra.mxu0 0.0
        %1600 = vmatprep.subr.mxu0 0.0
        %1601 = vmatpush1.msra.mxu0 0.0
        %1602 = vmatprep.subr.mxu0 0.0
        %1603 = vmatpush1.msra.mxu0 0.0
        %1604 = vmatprep.subr.mxu0 0.0
        %1605 = vmatpush1.msra.mxu0 0.0
        %1606 = vmatprep.subr.mxu0 0.0
        %1607 = vmatpush1.msra.mxu0 0.0
        %1608 = vmatprep.subr.mxu0 0.0
        %1609 = vmatpush1.msra.mxu0 0.0
        %1610 = vmatprep.subr.mxu0 0.0
        %v1611 = vand.u32 %v1503, 4294901760
        %v1612 = vsub.f32 %v1503, %v1611
        %v1613 = vand.u32 %v1612, 4294901760
        %v1614 = vsub.f32 %v1612, %v1613
        %v1615 = vand.u32 %v1614, 4294901760
        %1616 = vmatpush1.msra.mxu0 %v1615
        %1617 = vmatprep.subr.mxu0 0.0
        %v1618 = vand.u32 %v1486, 4294901760
        %v1619 = vsub.f32 %v1486, %v1618
        %v1620 = vand.u32 %v1619, 4294901760
        %v1621 = vsub.f32 %v1619, %v1620
        %v1622 = vand.u32 %v1621, 4294901760
        %1623 = vmatpush1.msra.mxu0 %v1622
        %1624 = vmatprep.subr.mxu0 0.0
        %1625 = vmatpush2.msra.mxu0 0.0
        %1626 = vmatprep.subr.mxu0 0.0
        %1627 = vmatpush2.msra.mxu0 0.0
        %1628 = vmatprep.subr.mxu0 0.0
        %1629 = vmatpush2.msra.mxu0 0.0
        %1630 = vmatprep.subr.mxu0 0.0
        %1631 = vmatpush2.msra.mxu0 0.0
        %1632 = vmatprep.subr.mxu0 0.0
        %1633 = vmatpush2.msra.mxu0 0.0
        %1634 = vmatprep.subr.mxu0 0.0
        %1635 = vmatpush2.msra.mxu0 0.0
        %1636 = vmatprep.subr.mxu0 0.0
        %1637 = vmatpush2.msra.mxu0 0.0
        %1638 = vmatprep.subr.mxu0 0.0
        %1639 = vmatpush2.msra.mxu0 0.0
        %1640 = vmatprep.subr.mxu0 0.0
        %1641 = vmatpush2.msra.mxu0 0.0
        %1642 = vmatprep.subr.mxu0 0.0
        %1643 = vmatpush2.msra.mxu0 0.0
        %1644 = vmatprep.subr.mxu0 0.0
        %1645 = vmatpush2.msra.mxu0 0.0
        %1646 = vmatprep.subr.mxu0 0.0
        %1647 = vmatpush2.msra.mxu0 0.0
        %1648 = vmatprep.subr.mxu0 0.0
        %1649 = vmatpush2.msra.mxu0 0.0
        %1650 = vmatprep.subr.mxu0 0.0
        %1651 = vmatpush2.msra.mxu0 0.0
        %1652 = vmatprep.subr.mxu0 0.0
        %1653 = vmatpush2.msra.mxu0 0.0
        %1654 = vmatprep.subr.mxu0 0.0
        %1655 = vmatpush2.msra.mxu0 0.0
        %1656 = vmatprep.mubr.f32.mxu0 0.0
        %v1657 = vand.u32 %v1500, 4294901760
        %1658 = vmatmul.mubr.f32.gmra.mxu0 %v1657
        %v1659 = vpop.f32.mrf.mxu0
        %v1660 = vadd.f32 %v1579, %v1659
        %v1661 = vpop.f32.mrf.mxu0
        %1662 = vdwg.mxu0
        %1663 = vmatprep.subr.mxu0 0.0
        %1664 = vmatpush1.msra.mxu0 0.0
        %1665 = vmatprep.subr.mxu0 0.0
        %1666 = vmatpush1.msra.mxu0 0.0
        %1667 = vmatprep.subr.mxu0 0.0
        %1668 = vmatpush1.msra.mxu0 0.0
        %1669 = vmatprep.subr.mxu0 0.0
        %1670 = vmatpush1.msra.mxu0 0.0
        %1671 = vmatprep.subr.mxu0 0.0
        %1672 = vmatpush1.msra.mxu0 0.0
        %1673 = vmatprep.subr.mxu0 0.0
        %1674 = vmatpush1.msra.mxu0 0.0
        %1675 = vmatprep.subr.mxu0 0.0
        %1676 = vmatpush1.msra.mxu0 0.0
        %1677 = vmatprep.subr.mxu0 0.0
        %1678 = vmatpush1.msra.mxu0 0.0
        %1679 = vmatprep.subr.mxu0 0.0
        %1680 = vmatpush1.msra.mxu0 0.0
        %1681 = vmatprep.subr.mxu0 0.0
        %1682 = vmatpush1.msra.mxu0 0.0
        %1683 = vmatprep.subr.mxu0 0.0
        %1684 = vmatpush1.msra.mxu0 0.0
        %1685 = vmatprep.subr.mxu0 0.0
        %1686 = vmatpush1.msra.mxu0 0.0
        %1687 = vmatprep.subr.mxu0 0.0
        %1688 = vmatpush1.msra.mxu0 0.0
        %1689 = vmatprep.subr.mxu0 0.0
        %1690 = vmatpush1.msra.mxu0 0.0
        %1691 = vmatprep.subr.mxu0 0.0
        %v1692 = vand.u32 %v1503, 4294901760
        %v1693 = vsub.f32 %v1503, %v1692
        %1694 = vmatpush1.msra.mxu0 %v1693
        %1695 = vmatprep.subr.mxu0 0.0
        %v1696 = vand.u32 %v1486, 4294901760
        %v1697 = vsub.f32 %v1486, %v1696
        %1698 = vmatpush1.msra.mxu0 %v1697
        %1699 = vmatprep.subr.mxu0 0.0
        %1700 = vmatpush2.msra.mxu0 0.0
        %1701 = vmatprep.subr.mxu0 0.0
        %1702 = vmatpush2.msra.mxu0 0.0
        %1703 = vmatprep.subr.mxu0 0.0
        %1704 = vmatpush2.msra.mxu0 0.0
        %1705 = vmatprep.subr.mxu0 0.0
        %1706 = vmatpush2.msra.mxu0 0.0
        %1707 = vmatprep.subr.mxu0 0.0
        %1708 = vmatpush2.msra.mxu0 0.0
        %1709 = vmatprep.subr.mxu0 0.0
        %1710 = vmatpush2.msra.mxu0 0.0
        %1711 = vmatprep.subr.mxu0 0.0
        %1712 = vmatpush2.msra.mxu0 0.0
        %1713 = vmatprep.subr.mxu0 0.0
        %1714 = vmatpush2.msra.mxu0 0.0
        %1715 = vmatprep.subr.mxu0 0.0
        %1716 = vmatpush2.msra.mxu0 0.0
        %1717 = vmatprep.subr.mxu0 0.0
        %1718 = vmatpush2.msra.mxu0 0.0
        %1719 = vmatprep.subr.mxu0 0.0
        %1720 = vmatpush2.msra.mxu0 0.0
        %1721 = vmatprep.subr.mxu0 0.0
        %1722 = vmatpush2.msra.mxu0 0.0
        %1723 = vmatprep.subr.mxu0 0.0
        %1724 = vmatpush2.msra.mxu0 0.0
        %1725 = vmatprep.subr.mxu0 0.0
        %1726 = vmatpush2.msra.mxu0 0.0
        %1727 = vmatprep.subr.mxu0 0.0
        %1728 = vmatpush2.msra.mxu0 0.0
        %1729 = vmatprep.subr.mxu0 0.0
        %1730 = vmatpush2.msra.mxu0 0.0
        %1731 = vmatprep.mubr.f32.mxu0 0.0
        %v1732 = vand.u32 %v1500, 4294901760
        %v1733 = vsub.f32 %v1500, %v1732
        %1734 = vmatmul.mubr.f32.gmra.mxu0 %v1733
        %v1735 = vpop.f32.mrf.mxu0
        %v1736 = vadd.f32 %v1660, %v1735
        %v1737 = vpop.f32.mrf.mxu0
        %1738 = vdwg.mxu0
        %1739 = vmatprep.subr.mxu0 0.0
        %1740 = vmatpush1.msra.mxu0 0.0
        %1741 = vmatprep.subr.mxu0 0.0
        %1742 = vmatpush1.msra.mxu0 0.0
        %1743 = vmatprep.subr.mxu0 0.0
        %1744 = vmatpush1.msra.mxu0 0.0
        %1745 = vmatprep.subr.mxu0 0.0
        %1746 = vmatpush1.msra.mxu0 0.0
        %1747 = vmatprep.subr.mxu0 0.0
        %1748 = vmatpush1.msra.mxu0 0.0
        %1749 = vmatprep.subr.mxu0 0.0
        %1750 = vmatpush1.msra.mxu0 0.0
        %1751 = vmatprep.subr.mxu0 0.0
        %1752 = vmatpush1.msra.mxu0 0.0
        %1753 = vmatprep.subr.mxu0 0.0
        %1754 = vmatpush1.msra.mxu0 0.0
        %1755 = vmatprep.subr.mxu0 0.0
        %1756 = vmatpush1.msra.mxu0 0.0
        %1757 = vmatprep.subr.mxu0 0.0
        %1758 = vmatpush1.msra.mxu0 0.0
        %1759 = vmatprep.subr.mxu0 0.0
        %1760 = vmatpush1.msra.mxu0 0.0
        %1761 = vmatprep.subr.mxu0 0.0
        %1762 = vmatpush1.msra.mxu0 0.0
        %1763 = vmatprep.subr.mxu0 0.0
        %1764 = vmatpush1.msra.mxu0 0.0
        %1765 = vmatprep.subr.mxu0 0.0
        %1766 = vmatpush1.msra.mxu0 0.0
        %1767 = vmatprep.subr.mxu0 0.0
        %v1768 = vand.u32 %v1503, 4294901760
        %1769 = vmatpush1.msra.mxu0 %v1768
        %1770 = vmatprep.subr.mxu0 0.0
        %v1771 = vand.u32 %v1486, 4294901760
        %1772 = vmatpush1.msra.mxu0 %v1771
        %1773 = vmatprep.subr.mxu0 0.0
        %1774 = vmatpush2.msra.mxu0 0.0
        %1775 = vmatprep.subr.mxu0 0.0
        %1776 = vmatpush2.msra.mxu0 0.0
        %1777 = vmatprep.subr.mxu0 0.0
        %1778 = vmatpush2.msra.mxu0 0.0
        %1779 = vmatprep.subr.mxu0 0.0
        %1780 = vmatpush2.msra.mxu0 0.0
        %1781 = vmatprep.subr.mxu0 0.0
        %1782 = vmatpush2.msra.mxu0 0.0
        %1783 = vmatprep.subr.mxu0 0.0
        %1784 = vmatpush2.msra.mxu0 0.0
        %1785 = vmatprep.subr.mxu0 0.0
        %1786 = vmatpush2.msra.mxu0 0.0
        %1787 = vmatprep.subr.mxu0 0.0
        %1788 = vmatpush2.msra.mxu0 0.0
        %1789 = vmatprep.subr.mxu0 0.0
        %1790 = vmatpush2.msra.mxu0 0.0
        %1791 = vmatprep.subr.mxu0 0.0
        %1792 = vmatpush2.msra.mxu0 0.0
        %1793 = vmatprep.subr.mxu0 0.0
        %1794 = vmatpush2.msra.mxu0 0.0
        %1795 = vmatprep.subr.mxu0 0.0
        %1796 = vmatpush2.msra.mxu0 0.0
        %1797 = vmatprep.subr.mxu0 0.0
        %1798 = vmatpush2.msra.mxu0 0.0
        %1799 = vmatprep.subr.mxu0 0.0
        %1800 = vmatpush2.msra.mxu0 0.0
        %1801 = vmatprep.subr.mxu0 0.0
        %1802 = vmatpush2.msra.mxu0 0.0
        %1803 = vmatprep.subr.mxu0 0.0
        %1804 = vmatpush2.msra.mxu0 0.0
        %1805 = vmatprep.mubr.f32.mxu0 0.0
        %v1806 = vand.u32 %v1500, 4294901760
        %v1807 = vsub.f32 %v1500, %v1806
        %v1808 = vand.u32 %v1807, 4294901760
        %1809 = vmatmul.mubr.f32.gmra.mxu0 %v1808
        %v1810 = vpop.f32.mrf.mxu0
        %v1811 = vadd.f32 %v1736, %v1810
        %v1812 = vpop.f32.mrf.mxu0
        %1813 = vdwg.mxu0
        %1814 = vmatprep.subr.mxu0 0.0
        %1815 = vmatpush1.msra.mxu0 0.0
        %1816 = vmatprep.subr.mxu0 0.0
        %1817 = vmatpush1.msra.mxu0 0.0
        %1818 = vmatprep.subr.mxu0 0.0
        %1819 = vmatpush1.msra.mxu0 0.0
        %1820 = vmatprep.subr.mxu0 0.0
        %1821 = vmatpush1.msra.mxu0 0.0
        %1822 = vmatprep.subr.mxu0 0.0
        %1823 = vmatpush1.msra.mxu0 0.0
        %1824 = vmatprep.subr.mxu0 0.0
        %1825 = vmatpush1.msra.mxu0 0.0
        %1826 = vmatprep.subr.mxu0 0.0
        %1827 = vmatpush1.msra.mxu0 0.0
        %1828 = vmatprep.subr.mxu0 0.0
        %1829 = vmatpush1.msra.mxu0 0.0
        %1830 = vmatprep.subr.mxu0 0.0
        %1831 = vmatpush1.msra.mxu0 0.0
        %1832 = vmatprep.subr.mxu0 0.0
        %1833 = vmatpush1.msra.mxu0 0.0
        %1834 = vmatprep.subr.mxu0 0.0
        %1835 = vmatpush1.msra.mxu0 0.0
        %1836 = vmatprep.subr.mxu0 0.0
        %1837 = vmatpush1.msra.mxu0 0.0
        %1838 = vmatprep.subr.mxu0 0.0
        %1839 = vmatpush1.msra.mxu0 0.0
        %1840 = vmatprep.subr.mxu0 0.0
        %1841 = vmatpush1.msra.mxu0 0.0
        %1842 = vmatprep.subr.mxu0 0.0
        %v1843 = vand.u32 %v1503, 4294901760
        %v1844 = vsub.f32 %v1503, %v1843
        %v1845 = vand.u32 %v1844, 4294901760
        %1846 = vmatpush1.msra.mxu0 %v1845
        %1847 = vmatprep.subr.mxu0 0.0
        %v1848 = vand.u32 %v1486, 4294901760
        %v1849 = vsub.f32 %v1486, %v1848
        %v1850 = vand.u32 %v1849, 4294901760
        %1851 = vmatpush1.msra.mxu0 %v1850
        %1852 = vmatprep.subr.mxu0 0.0
        %1853 = vmatpush2.msra.mxu0 0.0
        %1854 = vmatprep.subr.mxu0 0.0
        %1855 = vmatpush2.msra.mxu0 0.0
        %1856 = vmatprep.subr.mxu0 0.0
        %1857 = vmatpush2.msra.mxu0 0.0
        %1858 = vmatprep.subr.mxu0 0.0
        %1859 = vmatpush2.msra.mxu0 0.0
        %1860 = vmatprep.subr.mxu0 0.0
        %1861 = vmatpush2.msra.mxu0 0.0
        %1862 = vmatprep.subr.mxu0 0.0
        %1863 = vmatpush2.msra.mxu0 0.0
        %1864 = vmatprep.subr.mxu0 0.0
        %1865 = vmatpush2.msra.mxu0 0.0
        %1866 = vmatprep.subr.mxu0 0.0
        %1867 = vmatpush2.msra.mxu0 0.0
        %1868 = vmatprep.subr.mxu0 0.0
        %1869 = vmatpush2.msra.mxu0 0.0
        %1870 = vmatprep.subr.mxu0 0.0
        %1871 = vmatpush2.msra.mxu0 0.0
        %1872 = vmatprep.subr.mxu0 0.0
        %1873 = vmatpush2.msra.mxu0 0.0
        %1874 = vmatprep.subr.mxu0 0.0
        %1875 = vmatpush2.msra.mxu0 0.0
        %1876 = vmatprep.subr.mxu0 0.0
        %1877 = vmatpush2.msra.mxu0 0.0
        %1878 = vmatprep.subr.mxu0 0.0
        %1879 = vmatpush2.msra.mxu0 0.0
        %1880 = vmatprep.subr.mxu0 0.0
        %1881 = vmatpush2.msra.mxu0 0.0
        %1882 = vmatprep.subr.mxu0 0.0
        %1883 = vmatpush2.msra.mxu0 0.0
        %1884 = vmatprep.mubr.f32.mxu0 0.0
        %v1885 = vand.u32 %v1500, 4294901760
        %1886 = vmatmul.mubr.f32.gmra.mxu0 %v1885
        %v1887 = vpop.f32.mrf.mxu0
        %v1888 = vadd.f32 %v1811, %v1887
        %v1889 = vpop.f32.mrf.mxu0
        %1890 = vdwg.mxu0
        %1891 = vmatprep.subr.mxu0 0.0
        %1892 = vmatpush1.msra.mxu0 0.0
        %1893 = vmatprep.subr.mxu0 0.0
        %1894 = vmatpush1.msra.mxu0 0.0
        %1895 = vmatprep.subr.mxu0 0.0
        %1896 = vmatpush1.msra.mxu0 0.0
        %1897 = vmatprep.subr.mxu0 0.0
        %1898 = vmatpush1.msra.mxu0 0.0
        %1899 = vmatprep.subr.mxu0 0.0
        %1900 = vmatpush1.msra.mxu0 0.0
        %1901 = vmatprep.subr.mxu0 0.0
        %1902 = vmatpush1.msra.mxu0 0.0
        %1903 = vmatprep.subr.mxu0 0.0
        %1904 = vmatpush1.msra.mxu0 0.0
        %1905 = vmatprep.subr.mxu0 0.0
        %1906 = vmatpush1.msra.mxu0 0.0
        %1907 = vmatprep.subr.mxu0 0.0
        %1908 = vmatpush1.msra.mxu0 0.0
        %1909 = vmatprep.subr.mxu0 0.0
        %1910 = vmatpush1.msra.mxu0 0.0
        %1911 = vmatprep.subr.mxu0 0.0
        %1912 = vmatpush1.msra.mxu0 0.0
        %1913 = vmatprep.subr.mxu0 0.0
        %1914 = vmatpush1.msra.mxu0 0.0
        %1915 = vmatprep.subr.mxu0 0.0
        %1916 = vmatpush1.msra.mxu0 0.0
        %1917 = vmatprep.subr.mxu0 0.0
        %1918 = vmatpush1.msra.mxu0 0.0
        %1919 = vmatprep.subr.mxu0 0.0
        %v1920 = vand.u32 %v1503, 4294901760
        %1921 = vmatpush1.msra.mxu0 %v1920
        %1922 = vmatprep.subr.mxu0 0.0
        %v1923 = vand.u32 %v1486, 4294901760
        %1924 = vmatpush1.msra.mxu0 %v1923
        %1925 = vmatprep.subr.mxu0 0.0
        %1926 = vmatpush2.msra.mxu0 0.0
        %1927 = vmatprep.subr.mxu0 0.0
        %1928 = vmatpush2.msra.mxu0 0.0
        %1929 = vmatprep.subr.mxu0 0.0
        %1930 = vmatpush2.msra.mxu0 0.0
        %1931 = vmatprep.subr.mxu0 0.0
        %1932 = vmatpush2.msra.mxu0 0.0
        %1933 = vmatprep.subr.mxu0 0.0
        %1934 = vmatpush2.msra.mxu0 0.0
        %1935 = vmatprep.subr.mxu0 0.0
        %1936 = vmatpush2.msra.mxu0 0.0
        %1937 = vmatprep.subr.mxu0 0.0
        %1938 = vmatpush2.msra.mxu0 0.0
        %1939 = vmatprep.subr.mxu0 0.0
        %1940 = vmatpush2.msra.mxu0 0.0
        %1941 = vmatprep.subr.mxu0 0.0
        %1942 = vmatpush2.msra.mxu0 0.0
        %1943 = vmatprep.subr.mxu0 0.0
        %1944 = vmatpush2.msra.mxu0 0.0
        %1945 = vmatprep.subr.mxu0 0.0
        %1946 = vmatpush2.msra.mxu0 0.0
        %1947 = vmatprep.subr.mxu0 0.0
        %1948 = vmatpush2.msra.mxu0 0.0
        %1949 = vmatprep.subr.mxu0 0.0
        %1950 = vmatpush2.msra.mxu0 0.0
        %1951 = vmatprep.subr.mxu0 0.0
        %1952 = vmatpush2.msra.mxu0 0.0
        %1953 = vmatprep.subr.mxu0 0.0
        %1954 = vmatpush2.msra.mxu0 0.0
        %1955 = vmatprep.subr.mxu0 0.0
        %1956 = vmatpush2.msra.mxu0 0.0
        %1957 = vmatprep.mubr.f32.mxu0 0.0
        %v1958 = vand.u32 %v1500, 4294901760
        %1959 = vmatmul.mubr.f32.gmra.mxu0 %v1958
        %v1960 = vpop.f32.mrf.mxu0
        %v1961 = vadd.f32 %v1888, %v1960
        %v1962 = vpop.f32.mrf.mxu0
        %1963 = vdwg.mxu0
        %1964 = vst [vmem:[%s322] sm:$0x1] %v1961
        %s1965 = sand.u32 %s227, 1
        %s1966 = scalar_lea.sflag [#allocation4], %s1965
        %s1967 = sand.u32 %s227, 1
        %s1968 = scalar_lea.vmem [#allocation3], %s1967
        // Predicated region
        $region57: #{tpu_custom_call.1} parent=55 // pred_check
          %p1969 = pneg %p237
        $region58: #{tpu_custom_call.1} parent=55 // pred_check_branch
          %1971 = sbr.rel (%p1969) target = $region60
        $region59: #{tpu_custom_call.1} parent=55 // pred_region
          %s1973 = ssub.s32 16, 16
          %1974 = vsyncadd %s1966, %s1973
          %s1975 = smul.addr %s25, 16
          %s1976 = scalar_lea.hbm %s9, %s1975
          %s1978 = sshll.u32 %s1968, 4
          %s1979 = int_to_ptr.vmem [resolvable:$true] %s1978
          %1981 = dma.vmem_to_hbm [thread:$0]  %s1979, 16, %s1976, %s1966
        $region60: #{tpu_custom_call.1} parent=55 // pred_fallthru
          _
      $region56: #{tpu_custom_call.1} parent=5 // pred_fallthru
        _
      %p1982 = scmp.le.s32.totalorder 2, %s20
      // Predicated region
      $region61: #{tpu_custom_call.1} parent=5 // pred_check
        %p1983 = pneg %p1982
      $region62: #{tpu_custom_call.1} parent=5 // pred_check_branch
        %1985 = sbr.rel (%p1983) target = $region64
      $region63: #{tpu_custom_call.1} parent=5 // pred_region
        %s1986 = ssub.s32 %s20, 2
        // Predicated region
        $region65: #{tpu_custom_call.1} parent=63 // pred_check
          %p1987 = pneg %p243
        $region66: #{tpu_custom_call.1} parent=63 // pred_check_branch
          %1989 = sbr.rel (%p1987) target = $region68
        $region67: #{tpu_custom_call.1} parent=63 // pred_region
          %s1990 = sand.u32 %s228, 1
          %s1991 = scalar_lea.sflag [#allocation4], %s1990
          %s1992 = sand.u32 %s228, 1
          %s1993 = scalar_lea.vmem [#allocation3], %s1992
          %1994 = dma.done %s1991, 16
        $region68: #{tpu_custom_call.1} parent=63 // pred_fallthru
          _
      $region64: #{tpu_custom_call.1} parent=5 // pred_fallthru
        _
    $region6: #{tpu_custom_call.1} parent=1 // loop_footer
      %s24 = sadd.s32 1, %s20
    $region7: #{tpu_custom_call.1} parent=1 // loop_footer_branch
      %19 = sbr.rel target = $region3
    $region8: #{tpu_custom_call.1} parent=1 // loop_exit
      _
    %1995 = vsyncpa [#allocation4], 1
    %s1996 = scalar_lea.sflag [#allocation4], 1
    %1997 = vsyncpa %s1996, 1

// kernel: tpu_custom_call.1
$region0: #{tpu_custom_call.1}
  #allocation0 [shape = 'u32[]', space=smem, size = 0x4, offset = 0x4, fixed_abs, tag = 'smem constant byte address 0x4 - core index']
  #allocation1 [shape = 'u32[144,128]{1,0:T(1,128)}', space=vmem, size = 0x12000, scoped, tag = 'internal scratch']
  #allocation2 [shape = 'f32[1,1]{1,0:T(1,128)S(1)}', space=vmem, size = 0x200, scoped, tag = 'scoped memory for tpu_custom_call.1']
  %s0 = inlined_call_operand.vmem [shape: f32[1,200], index: 0, kind: input, shape index: {}]
  %s1 = inlined_call_operand.vmem [shape: f32[10,1], index: 1, kind: input, shape index: {}]
  %s2 = inlined_call_operand.vmem [shape: f32[10,1], index: 2, kind: input, shape index: {}]
  %s3 = inlined_call_operand.vmem [shape: f32[20,10], index: 3, kind: input, shape index: {}]
  %s4 = inlined_call_operand.vmem [shape: f32[20,1], index: 4, kind: input, shape index: {}]
  %s5 = inlined_call_operand.vmem [shape: f32[10,20], index: 5, kind: input, shape index: {}]
  %s6 = inlined_call_operand.vmem [shape: f32[10,1], index: 6, kind: input, shape index: {}]
  %s7 = inlined_call_operand.vmem [shape: f32[1,10], index: 7, kind: input, shape index: {}]
  %s8 = inlined_call_operand.<no memory space> [shape: f32[1,1], index: 8, kind: input, shape index: {}]
  %s9 = inlined_call_operand.hbm [shape: f32[1,200], index: 9, kind: output, shape index: {}]
  %s10 = sld [smem:[#allocation0]]
  $region69: #{tpu_custom_call.1} parent=0
    _
  %s12 = ssub.s32 1, %s10
  %s13 = scalar_select 0, %s12, %s10
  %v14 = vstv %s8
  %15 = vst [vmem:[#allocation2] sm:$0x1] %v14
  $region1: #{tpu_custom_call.1} parent=0
    #allocation3 [shape = 'u8[1024]{0}', space=vmem, size = 0x400, scoped, tag = 'output window, operand 0']
    #allocation4 [shape = 's32[2]{0}', space=sflag, size = 0x8, scoped, tag = 'scoped memory for tpu_custom_call.1']
    %16 = vsyncpa [#allocation4], 0
    %s17 = scalar_lea.sflag [#allocation4], 1
    %18 = vsyncpa %s17, 0
    loop: start=0, step=1, limit=4
    $region2: #{tpu_custom_call.1} parent=1 // loop_pre_header
      _
    $region3: #{tpu_custom_call.1} parent=1 // loop_header
      %s20 = sphi 0, %s24
      %p21 = scmp.ge.s32.totalorder %s20, 4
      %s30 = sphi 0, %s32
      %s33 = sphi 0, %s30
      %s34 = sphi 0, %s33
      %s50 = sphi 0, %s34
      %s54 = sphi 0, %s54
      %s56 = sphi 0, %s54
      %s57 = sphi 0, %s56
      %s71 = sphi 0, %s57
      %s75 = sphi 0, %s75
      %s77 = sphi 0, %s75
      %s78 = sphi 0, %s77
      %s92 = sphi 0, %s78
      %s96 = sphi 0, %s96
      %s98 = sphi 0, %s96
      %s99 = sphi 0, %s98
      %s113 = sphi 0, %s99
      %s117 = sphi 0, %s117
      %s119 = sphi 0, %s117
      %s120 = sphi 0, %s119
      %s134 = sphi 0, %s120
      %s138 = sphi 0, %s138
      %s140 = sphi 0, %s138
      %s141 = sphi 0, %s140
      %s155 = sphi 0, %s141
      %s159 = sphi 0, %s159
      %s161 = sphi 0, %s159
      %s162 = sphi 0, %s161
      %s176 = sphi 0, %s162
      %s180 = sphi 0, %s180
      %s182 = sphi 0, %s180
      %s183 = sphi 0, %s182
      %s197 = sphi 0, %s183
      %s201 = sphi 0, %s201
      %s203 = sphi 0, %s201
      %s204 = sphi 0, %s203
      %s218 = sphi 0, %s204
      %s224 = sphi 0, %s226
      %s227 = sphi 0, %s224
      %s228 = sphi 0, %s227
      %s244 = sphi 0, %s228
    $region4: #{tpu_custom_call.1} parent=1 // loop_header_branch
      %23 = sbr.rel (%p21) target = $region8
    $region5: #{tpu_custom_call.1} parent=1 // loop_body
      %s25 = ssub.s32 %s20, 1
      %s26 = ssub.s32 %s20, 2
      %s27 = sadd.s32 %s20, 1
      %s28 = ssub.s32 %s20, %s27
      %p29 = scmp.eq.s32.totalorder %s28, 0
      %s31 = sadd.s32 %s30, 1
      %s32 = scalar_select %p29, %s30, %s31
      %p35 = pneg %p29
      %p36 = scmp.eq.s32.totalorder %s20, 1
      %p37 = por %p35, %p36
      %p38 = scmp.ne.s32.totalorder %s30, %s33
      %p39 = scmp.eq.s32.totalorder %s20, 0
      %p40 = por %p38, %p39
      %p41 = scmp.ne.s32.totalorder %s30, %s33
      %p42 = scmp.eq.s32.totalorder %s25, 1
      %p43 = por %p41, %p42
      %p44 = scmp.ne.s32.totalorder %s33, %s34
      %p45 = scmp.eq.s32.totalorder %s25, 0
      %p46 = por %p44, %p45
      %p47 = scmp.ne.s32.totalorder %s33, %s34
      %p48 = scmp.eq.s32.totalorder %s26, 1
      %p49 = por %p47, %p48
      %p51 = scmp.ne.s32.totalorder %s34, %s50
      %p52 = scmp.eq.s32.totalorder %s26, 0
      %p53 = por %p51, %p52
      %s55 = sadd.s32 %s54, 1
      %p58 = scmp.eq.s32.totalorder %s20, 1
      %p59 = scmp.ne.s32.totalorder %s54, %s56
      %p60 = scmp.eq.s32.totalorder %s20, 0
      %p61 = por %p59, %p60
      %p62 = scmp.ne.s32.totalorder %s54, %s56
      %p63 = scmp.eq.s32.totalorder %s25, 1
      %p64 = por %p62, %p63
      %p65 = scmp.ne.s32.totalorder %s56, %s57
      %p66 = scmp.eq.s32.totalorder %s25, 0
      %p67 = por %p65, %p66
      %p68 = scmp.ne.s32.totalorder %s56, %s57
      %p69 = scmp.eq.s32.totalorder %s26, 1
      %p70 = por %p68, %p69
      %p72 = scmp.ne.s32.totalorder %s57, %s71
      %p73 = scmp.eq.s32.totalorder %s26, 0
      %p74 = por %p72, %p73
      %s76 = sadd.s32 %s75, 1
      %p79 = scmp.eq.s32.totalorder %s20, 1
      %p80 = scmp.ne.s32.totalorder %s75, %s77
      %p81 = scmp.eq.s32.totalorder %s20, 0
      %p82 = por %p80, %p81
      %p83 = scmp.ne.s32.totalorder %s75, %s77
      %p84 = scmp.eq.s32.totalorder %s25, 1
      %p85 = por %p83, %p84
      %p86 = scmp.ne.s32.totalorder %s77, %s78
      %p87 = scmp.eq.s32.totalorder %s25, 0
      %p88 = por %p86, %p87
      %p89 = scmp.ne.s32.totalorder %s77, %s78
      %p90 = scmp.eq.s32.totalorder %s26, 1
      %p91 = por %p89, %p90
      %p93 = scmp.ne.s32.totalorder %s78, %s92
      %p94 = scmp.eq.s32.totalorder %s26, 0
      %p95 = por %p93, %p94
      %s97 = sadd.s32 %s96, 1
      %p100 = scmp.eq.s32.totalorder %s20, 1
      %p101 = scmp.ne.s32.totalorder %s96, %s98
      %p102 = scmp.eq.s32.totalorder %s20, 0
      %p103 = por %p101, %p102
      %p104 = scmp.ne.s32.totalorder %s96, %s98
      %p105 = scmp.eq.s32.totalorder %s25, 1
      %p106 = por %p104, %p105
      %p107 = scmp.ne.s32.totalorder %s98, %s99
      %p108 = scmp.eq.s32.totalorder %s25, 0
      %p109 = por %p107, %p108
      %p110 = scmp.ne.s32.totalorder %s98, %s99
      %p111 = scmp.eq.s32.totalorder %s26, 1
      %p112 = por %p110, %p111
      %p114 = scmp.ne.s32.totalorder %s99, %s113
      %p115 = scmp.eq.s32.totalorder %s26, 0
      %p116 = por %p114, %p115
      %s118 = sadd.s32 %s117, 1
      %p121 = scmp.eq.s32.totalorder %s20, 1
      %p122 = scmp.ne.s32.totalorder %s117, %s119
      %p123 = scmp.eq.s32.totalorder %s20, 0
      %p124 = por %p122, %p123
      %p125 = scmp.ne.s32.totalorder %s117, %s119
      %p126 = scmp.eq.s32.totalorder %s25, 1
      %p127 = por %p125, %p126
      %p128 = scmp.ne.s32.totalorder %s119, %s120
      %p129 = scmp.eq.s32.totalorder %s25, 0
      %p130 = por %p128, %p129
      %p131 = scmp.ne.s32.totalorder %s119, %s120
      %p132 = scmp.eq.s32.totalorder %s26, 1
      %p133 = por %p131, %p132
      %p135 = scmp.ne.s32.totalorder %s120, %s134
      %p136 = scmp.eq.s32.totalorder %s26, 0
      %p137 = por %p135, %p136
      %s139 = sadd.s32 %s138, 1
      %p142 = scmp.eq.s32.totalorder %s20, 1
      %p143 = scmp.ne.s32.totalorder %s138, %s140
      %p144 = scmp.eq.s32.totalorder %s20, 0
      %p145 = por %p143, %p144
      %p146 = scmp.ne.s32.totalorder %s138, %s140
      %p147 = scmp.eq.s32.totalorder %s25, 1
      %p148 = por %p146, %p147
      %p149 = scmp.ne.s32.totalorder %s140, %s141
      %p150 = scmp.eq.s32.totalorder %s25, 0
      %p151 = por %p149, %p150
      %p152 = scmp.ne.s32.totalorder %s140, %s141
      %p153 = scmp.eq.s32.totalorder %s26, 1
      %p154 = por %p152, %p153
      %p156 = scmp.ne.s32.totalorder %s141, %s155
      %p157 = scmp.eq.s32.totalorder %s26, 0
      %p158 = por %p156, %p157
      %s160 = sadd.s32 %s159, 1
      %p163 = scmp.eq.s32.totalorder %s20, 1
      %p164 = scmp.ne.s32.totalorder %s159, %s161
      %p165 = scmp.eq.s32.totalorder %s20, 0
      %p166 = por %p164, %p165
      %p167 = scmp.ne.s32.totalorder %s159, %s161
      %p168 = scmp.eq.s32.totalorder %s25, 1
      %p169 = por %p167, %p168
      %p170 = scmp.ne.s32.totalorder %s161, %s162
      %p171 = scmp.eq.s32.totalorder %s25, 0
      %p172 = por %p170, %p171
      %p173 = scmp.ne.s32.totalorder %s161, %s162
      %p174 = scmp.eq.s32.totalorder %s26, 1
      %p175 = por %p173, %p174
      %p177 = scmp.ne.s32.totalorder %s162, %s176
      %p178 = scmp.eq.s32.totalorder %s26, 0
      %p179 = por %p177, %p178
      %s181 = sadd.s32 %s180, 1
      %p184 = scmp.eq.s32.totalorder %s20, 1
      %p185 = scmp.ne.s32.totalorder %s180, %s182
      %p186 = scmp.eq.s32.totalorder %s20, 0
      %p187 = por %p185, %p186
      %p188 = scmp.ne.s32.totalorder %s180, %s182
      %p189 = scmp.eq.s32.totalorder %s25, 1
      %p190 = por %p188, %p189
      %p191 = scmp.ne.s32.totalorder %s182, %s183
      %p192 = scmp.eq.s32.totalorder %s25, 0
      %p193 = por %p191, %p192
      %p194 = scmp.ne.s32.totalorder %s182, %s183
      %p195 = scmp.eq.s32.totalorder %s26, 1
      %p196 = por %p194, %p195
      %p198 = scmp.ne.s32.totalorder %s183, %s197
      %p199 = scmp.eq.s32.totalorder %s26, 0
      %p200 = por %p198, %p199
      %s202 = sadd.s32 %s201, 1
      %p205 = scmp.eq.s32.totalorder %s20, 1
      %p206 = scmp.ne.s32.totalorder %s201, %s203
      %p207 = scmp.eq.s32.totalorder %s20, 0
      %p208 = por %p206, %p207
      %p209 = scmp.ne.s32.totalorder %s201, %s203
      %p210 = scmp.eq.s32.totalorder %s25, 1
      %p211 = por %p209, %p210
      %p212 = scmp.ne.s32.totalorder %s203, %s204
      %p213 = scmp.eq.s32.totalorder %s25, 0
      %p214 = por %p212, %p213
      %p215 = scmp.ne.s32.totalorder %s203, %s204
      %p216 = scmp.eq.s32.totalorder %s26, 1
      %p217 = por %p215, %p216
      %p219 = scmp.ne.s32.totalorder %s204, %s218
      %p220 = scmp.eq.s32.totalorder %s26, 0
      %p221 = por %p219, %p220
      %s222 = ssub.s32 %s20, %s27
      %p223 = scmp.eq.s32.totalorder %s222, 0
      %s225 = sadd.s32 %s224, 1
      %s226 = scalar_select %p223, %s224, %s225
      %p229 = pneg %p223
      %p230 = scmp.eq.s32.totalorder %s20, 1
      %p231 = por %p229, %p230
      %p232 = scmp.ne.s32.totalorder %s224, %s227
      %p233 = scmp.eq.s32.totalorder %s20, 0
      %p234 = por %p232, %p233
      %p235 = scmp.ne.s32.totalorder %s224, %s227
      %p236 = scmp.eq.s32.totalorder %s25, 1
      %p237 = por %p235, %p236
      %p238 = scmp.ne.s32.totalorder %s227, %s228
      %p239 = scmp.eq.s32.totalorder %s25, 0
      %p240 = por %p238, %p239
      %p241 = scmp.ne.s32.totalorder %s227, %s228
      %p242 = scmp.eq.s32.totalorder %s26, 1
      %p243 = por %p241, %p242
      %p245 = scmp.ne.s32.totalorder %s228, %s244
      %p246 = scmp.eq.s32.totalorder %s26, 0
      %p247 = por %p245, %p246
      %p248 = scmp.le.s32.totalorder 1, %s20
      %p249 = scmp.lt.s32.totalorder %s20, 3
      %p250 = pnand %p248, %p249
      %p251 = pneg %p250
      // Predicated region
      $region9: #{tpu_custom_call.1} parent=5 // pred_check
        _
      $region10: #{tpu_custom_call.1} parent=5 // pred_check_branch
        %253 = sbr.rel (%p250) target = $region12
      $region11: #{tpu_custom_call.1} parent=5 // pred_region
        %s254 = ssub.s32 %s20, 1
        // Predicated region
        $region13: #{tpu_custom_call.1} parent=11 // pred_check
          %p255 = pneg %p67
        $region14: #{tpu_custom_call.1} parent=11 // pred_check_branch
          %257 = sbr.rel (%p255) target = $region16
        $region15: #{tpu_custom_call.1} parent=11 // pred_region
          _
        $region16: #{tpu_custom_call.1} parent=11 // pred_fallthru
          _
        // Predicated region
        $region17: #{tpu_custom_call.1} parent=11 // pred_check
          %p258 = pneg %p88
        $region18: #{tpu_custom_call.1} parent=11 // pred_check_branch
          %260 = sbr.rel (%p258) target = $region20
        $region19: #{tpu_custom_call.1} parent=11 // pred_region
          _
        $region20: #{tpu_custom_call.1} parent=11 // pred_fallthru
          _
        // Predicated region
        $region21: #{tpu_custom_call.1} parent=11 // pred_check
          %p261 = pneg %p109
        $region22: #{tpu_custom_call.1} parent=11 // pred_check_branch
          %263 = sbr.rel (%p261) target = $region24
        $region23: #{tpu_custom_call.1} parent=11 // pred_region
          _
        $region24: #{tpu_custom_call.1} parent=11 // pred_fallthru
          _
        // Predicated region
        $region25: #{tpu_custom_call.1} parent=11 // pred_check
          %p264 = pneg %p130
        $region26: #{tpu_custom_call.1} parent=11 // pred_check_branch
          %266 = sbr.rel (%p264) target = $region28
        $region27: #{tpu_custom_call.1} parent=11 // pred_region
          _
        $region28: #{tpu_custom_call.1} parent=11 // pred_fallthru
          _
        // Predicated region
        $region29: #{tpu_custom_call.1} parent=11 // pred_check
          %p267 = pneg %p151
        $region30: #{tpu_custom_call.1} parent=11 // pred_check_branch
          %269 = sbr.rel (%p267) target = $region32
        $region31: #{tpu_custom_call.1} parent=11 // pred_region
          _
        $region32: #{tpu_custom_call.1} parent=11 // pred_fallthru
          _
        // Predicated region
        $region33: #{tpu_custom_call.1} parent=11 // pred_check
          %p270 = pneg %p172
        $region34: #{tpu_custom_call.1} parent=11 // pred_check_branch
          %272 = sbr.rel (%p270) target = $region36
        $region35: #{tpu_custom_call.1} parent=11 // pred_region
          _
        $region36: #{tpu_custom_call.1} parent=11 // pred_fallthru
          _
        // Predicated region
        $region37: #{tpu_custom_call.1} parent=11 // pred_check
          %p273 = pneg %p193
        $region38: #{tpu_custom_call.1} parent=11 // pred_check_branch
          %275 = sbr.rel (%p273) target = $region40
        $region39: #{tpu_custom_call.1} parent=11 // pred_region
          _
        $region40: #{tpu_custom_call.1} parent=11 // pred_fallthru
          _
        // Predicated region
        $region41: #{tpu_custom_call.1} parent=11 // pred_check
          %p276 = pneg %p214
        $region42: #{tpu_custom_call.1} parent=11 // pred_check_branch
          %278 = sbr.rel (%p276) target = $region44
        $region43: #{tpu_custom_call.1} parent=11 // pred_region
          _
        $region44: #{tpu_custom_call.1} parent=11 // pred_fallthru
          _
      $region12: #{tpu_custom_call.1} parent=5 // pred_fallthru
        _
      %p279 = scmp.lt.s32.totalorder %s20, 2
      // Predicated region
      $region45: #{tpu_custom_call.1} parent=5 // pred_check
        %p280 = pneg %p279
      $region46: #{tpu_custom_call.1} parent=5 // pred_check_branch
        %282 = sbr.rel (%p280) target = $region48
      $region47: #{tpu_custom_call.1} parent=5 // pred_region
        // Predicated region
        $region49: #{tpu_custom_call.1} parent=47 // pred_check
          %p283 = pneg %p40
        $region50: #{tpu_custom_call.1} parent=47 // pred_check_branch
          %285 = sbr.rel (%p283) target = $region52
        $region51: #{tpu_custom_call.1} parent=47 // pred_region
          %p286 = scmp.lt.s32.totalorder %s20, 1
          %s287 = scalar_select %p286, %s20, 1
          %s288 = scalar_lea.vmem %s0, %s287
        $region52: #{tpu_custom_call.1} parent=47 // pred_fallthru
          _
      $region48: #{tpu_custom_call.1} parent=5 // pred_fallthru
        _
      %p289 = scmp.le.s32.totalorder 1, %s20
      %p290 = scmp.lt.s32.totalorder %s20, 3
      %p291 = pnand %p289, %p290
      %p292 = pneg %p291
      // Predicated region
      $region53: #{tpu_custom_call.1} parent=5 // pred_check
        _
      $region54: #{tpu_custom_call.1} parent=5 // pred_check_branch
        %294 = sbr.rel (%p291) target = $region56
      $region55: #{tpu_custom_call.1} parent=5 // pred_region
        %s295 = ssub.s32 %s20, 1
        %p296 = scmp.lt.s32.totalorder %s25, 1
        %s297 = scalar_select %p296, %s25, 1
        %s298 = scalar_lea.vmem %s0, %s297
        %p299 = pneg %p46
        %p300 = pneg %p43
        %p301 = pneg %p67
        %p302 = pneg %p64
        %p303 = pneg %p88
        %p304 = pneg %p85
        %p305 = pneg %p109
        %p306 = pneg %p106
        %p307 = pneg %p130
        %p308 = pneg %p127
        %p309 = pneg %p151
        %p310 = pneg %p148
        %p311 = pneg %p172
        %p312 = pneg %p169
        %p313 = pneg %p193
        %p314 = pneg %p190
        %p315 = pneg %p214
        %p316 = pneg %p211
        %p317 = pneg %p240
        %p318 = pneg %p237
        %s319 = sand.u32 %s227, 1
        %s320 = scalar_lea.sflag [#allocation4], %s319
        %s321 = sand.u32 %s227, 1
        %s322 = scalar_lea.vmem [#allocation3], %s321
        %p323 = scmp.lt.s32.totalorder %s25, 1
        %s324 = scalar_select %p323, %s25, 1
        %s325 = scalar_lea.vmem %s0, %s324
        %v326 = vld [vmem:[%s325] sm:$0x1]
        %v327 = vld [vmem:[%s1] sm:$0xff]
        %v328 = vld [vmem:[%s1 + $0x8] sm:$0x3]
        %330 = vset.pattern.permute.xlu0 0
        %331 = vperm.xlu0 %330, %v327
        %v332 = vpop.permute.xlu0 %331
        %335 = vset.pattern.permute.xlu0 0
        %336 = vperm.xlu0 %335, %v328
        %v337 = vpop.permute.xlu0 %336
        %v340 = vlaneseq
        %v341 = vshrl.u32 %v340, 7
        %v342 = vsub.s32 0, %v341
        %v343 = vrot.slane %v326, %v342
        %v345 = vmul.f32 %v332, %v343
        %v346 = vmul.f32 %v337, %v343
        %v347 = vld [vmem:[%s2] sm:$0xff]
        %v348 = vld [vmem:[%s2 + $0x8] sm:$0x3]
        %350 = vset.pattern.permute.xlu0 0
        %351 = vperm.xlu0 %350, %v347
        %v352 = vpop.permute.xlu0 %351
        %355 = vset.pattern.permute.xlu0 0
        %356 = vperm.xlu0 %355, %v348
        %v357 = vpop.permute.xlu0 %356
        %v359 = vadd.f32 %v345, %v352
        %v360 = vadd.f32 %v346, %v357
        %v361 = vmax.f32 %v359, 0.0
        %v362 = vmax.f32 %v360, 0.0
        %v363 = vld [vmem:[%s3] sm:$0xff]
        %v364 = vld [vmem:[%s3 + $0x8] sm:$0xff]
        %v365 = vld [vmem:[%s3 + $0x10] sm:$0xf]
        %v366 = vld [vmem:[%s4] sm:$0xff]
        %v367 = vld [vmem:[%s4 + $0x8] sm:$0xff]
        %v368 = vld [vmem:[%s4 + $0x10] sm:$0xf]
        %370 = vset.pattern.permute.xlu0 0
        %371 = vperm.xlu0 %370, %v366
        %v372 = vpop.permute.xlu0 %371
        %375 = vset.pattern.permute.xlu0 0
        %376 = vperm.xlu0 %375, %v367
        %v377 = vpop.permute.xlu0 %376
        %380 = vset.pattern.permute.xlu0 0
        %381 = vperm.xlu0 %380, %v368
        %v382 = vpop.permute.xlu0 %381
        %vm384 = vcmask 80896
        %v386 = vsel %vm384, %v363, 0
        %v389 = vsel %vm384, %v364, 0
        %v392 = vsel %vm384, %v365, 0
        %vm394 = vcmask 1041408
        %v396 = vsel %vm394, %v362, 0
        %398 = vmatprep.subr.mxu0 0.0
        %399 = vmatpush1.msra.mxu0 0.0
        %400 = vmatprep.subr.mxu0 0.0
        %401 = vmatpush1.msra.mxu0 0.0
        %402 = vmatprep.subr.mxu0 0.0
        %403 = vmatpush1.msra.mxu0 0.0
        %404 = vmatprep.subr.mxu0 0.0
        %405 = vmatpush1.msra.mxu0 0.0
        %406 = vmatprep.subr.mxu0 0.0
        %407 = vmatpush1.msra.mxu0 0.0
        %408 = vmatprep.subr.mxu0 0.0
        %409 = vmatpush1.msra.mxu0 0.0
        %410 = vmatprep.subr.mxu0 0.0
        %411 = vmatpush1.msra.mxu0 0.0
        %412 = vmatprep.subr.mxu0 0.0
        %413 = vmatpush1.msra.mxu0 0.0
        %414 = vmatprep.subr.mxu0 0.0
        %415 = vmatpush1.msra.mxu0 0.0
        %416 = vmatprep.subr.mxu0 0.0
        %417 = vmatpush1.msra.mxu0 0.0
        %418 = vmatprep.subr.mxu0 0.0
        %419 = vmatpush1.msra.mxu0 0.0
        %420 = vmatprep.subr.mxu0 0.0
        %421 = vmatpush1.msra.mxu0 0.0
        %422 = vmatprep.subr.mxu0 0.0
        %423 = vmatpush1.msra.mxu0 0.0
        %424 = vmatprep.subr.mxu0 0.0
        %425 = vmatpush1.msra.mxu0 0.0
        %426 = vmatprep.subr.mxu0 0.0
        %v427 = vand.u32 %v396, 4294901760
        %428 = vmatpush1.msra.mxu0 %v427
        %429 = vmatprep.subr.mxu0 0.0
        %v430 = vand.u32 %v361, 4294901760
        %431 = vmatpush1.msra.mxu0 %v430
        %432 = vmatprep.subr.mxu0 0.0
        %433 = vmatpush2.msra.mxu0 0.0
        %434 = vmatprep.subr.mxu0 0.0
        %435 = vmatpush2.msra.mxu0 0.0
        %436 = vmatprep.subr.mxu0 0.0
        %437 = vmatpush2.msra.mxu0 0.0
        %438 = vmatprep.subr.mxu0 0.0
        %439 = vmatpush2.msra.mxu0 0.0
        %440 = vmatprep.subr.mxu0 0.0
        %441 = vmatpush2.msra.mxu0 0.0
        %442 = vmatprep.subr.mxu0 0.0
        %443 = vmatpush2.msra.mxu0 0.0
        %444 = vmatprep.subr.mxu0 0.0
        %445 = vmatpush2.msra.mxu0 0.0
        %446 = vmatprep.subr.mxu0 0.0
        %447 = vmatpush2.msra.mxu0 0.0
        %448 = vmatprep.subr.mxu0 0.0
        %449 = vmatpush2.msra.mxu0 0.0
        %450 = vmatprep.subr.mxu0 0.0
        %451 = vmatpush2.msra.mxu0 0.0
        %452 = vmatprep.subr.mxu0 0.0
        %453 = vmatpush2.msra.mxu0 0.0
        %454 = vmatprep.subr.mxu0 0.0
        %455 = vmatpush2.msra.mxu0 0.0
        %456 = vmatprep.subr.mxu0 0.0
        %457 = vmatpush2.msra.mxu0 0.0
        %458 = vmatprep.subr.mxu0 0.0
        %459 = vmatpush2.msra.mxu0 0.0
        %460 = vmatprep.subr.mxu0 0.0
        %461 = vmatpush2.msra.mxu0 0.0
        %462 = vmatprep.subr.mxu0 0.0
        %463 = vmatpush2.msra.mxu0 0.0
        %464 = vmatprep.mubr.f32.mxu0 0.0
        %v465 = vand.u32 %v386, 4294901760
        %v466 = vsub.f32 %v386, %v465
        %v467 = vand.u32 %v466, 4294901760
        %v468 = vsub.f32 %v466, %v467
        %v469 = vand.u32 %v468, 4294901760
        %470 = vmatmul.mubr.f32.gmra.mxu0 %v469
        %v471 = vpop.f32.mrf.mxu0
        %v472 = vadd.f32 %v372, %v471
        %v473 = vpop.f32.mrf.mxu0
        %474 = vmatprep.mubr.f32.mxu0 0.0
        %v475 = vand.u32 %v389, 4294901760
        %v476 = vsub.f32 %v389, %v475
        %v477 = vand.u32 %v476, 4294901760
        %v478 = vsub.f32 %v476, %v477
        %v479 = vand.u32 %v478, 4294901760
        %480 = vmatmul.mubr.f32.gmra.mxu0 %v479
        %v481 = vpop.f32.mrf.mxu0
        %v482 = vadd.f32 %v377, %v481
        %v483 = vpop.f32.mrf.mxu0
        %484 = vmatprep.mubr.f32.mxu0 0.0
        %v485 = vand.u32 %v392, 4294901760
        %v486 = vsub.f32 %v392, %v485
        %v487 = vand.u32 %v486, 4294901760
        %v488 = vsub.f32 %v486, %v487
        %v489 = vand.u32 %v488, 4294901760
        %490 = vmatmul.mubr.f32.gmra.mxu0 %v489
        %v491 = vpop.f32.mrf.mxu0
        %v492 = vadd.f32 %v382, %v491
        %v493 = vpop.f32.mrf.mxu0
        %494 = vdwg.mxu0
        %495 = vmatprep.subr.mxu0 0.0
        %496 = vmatpush1.msra.mxu0 0.0
        %497 = vmatprep.subr.mxu0 0.0
        %498 = vmatpush1.msra.mxu0 0.0
        %499 = vmatprep.subr.mxu0 0.0
        %500 = vmatpush1.msra.mxu0 0.0
        %501 = vmatprep.subr.mxu0 0.0
        %502 = vmatpush1.msra.mxu0 0.0
        %503 = vmatprep.subr.mxu0 0.0
        %504 = vmatpush1.msra.mxu0 0.0
        %505 = vmatprep.subr.mxu0 0.0
        %506 = vmatpush1.msra.mxu0 0.0
        %507 = vmatprep.subr.mxu0 0.0
        %508 = vmatpush1.msra.mxu0 0.0
        %509 = vmatprep.subr.mxu0 0.0
        %510 = vmatpush1.msra.mxu0 0.0
        %511 = vmatprep.subr.mxu0 0.0
        %512 = vmatpush1.msra.mxu0 0.0
        %513 = vmatprep.subr.mxu0 0.0
        %514 = vmatpush1.msra.mxu0 0.0
        %515 = vmatprep.subr.mxu0 0.0
        %516 = vmatpush1.msra.mxu0 0.0
        %517 = vmatprep.subr.mxu0 0.0
        %518 = vmatpush1.msra.mxu0 0.0
        %519 = vmatprep.subr.mxu0 0.0
        %520 = vmatpush1.msra.mxu0 0.0
        %521 = vmatprep.subr.mxu0 0.0
        %522 = vmatpush1.msra.mxu0 0.0
        %523 = vmatprep.subr.mxu0 0.0
        %v524 = vand.u32 %v396, 4294901760
        %v525 = vsub.f32 %v396, %v524
        %v526 = vand.u32 %v525, 4294901760
        %v527 = vsub.f32 %v525, %v526
        %v528 = vand.u32 %v527, 4294901760
        %529 = vmatpush1.msra.mxu0 %v528
        %530 = vmatprep.subr.mxu0 0.0
        %v531 = vand.u32 %v361, 4294901760
        %v532 = vsub.f32 %v361, %v531
        %v533 = vand.u32 %v532, 4294901760
        %v534 = vsub.f32 %v532, %v533
        %v535 = vand.u32 %v534, 4294901760
        %536 = vmatpush1.msra.mxu0 %v535
        %537 = vmatprep.subr.mxu0 0.0
        %538 = vmatpush2.msra.mxu0 0.0
        %539 = vmatprep.subr.mxu0 0.0
        %540 = vmatpush2.msra.mxu0 0.0
        %541 = vmatprep.subr.mxu0 0.0
        %542 = vmatpush2.msra.mxu0 0.0
        %543 = vmatprep.subr.mxu0 0.0
        %544 = vmatpush2.msra.mxu0 0.0
        %545 = vmatprep.subr.mxu0 0.0
        %546 = vmatpush2.msra.mxu0 0.0
        %547 = vmatprep.subr.mxu0 0.0
        %548 = vmatpush2.msra.mxu0 0.0
        %549 = vmatprep.subr.mxu0 0.0
        %550 = vmatpush2.msra.mxu0 0.0
        %551 = vmatprep.subr.mxu0 0.0
        %552 = vmatpush2.msra.mxu0 0.0
        %553 = vmatprep.subr.mxu0 0.0
        %554 = vmatpush2.msra.mxu0 0.0
        %555 = vmatprep.subr.mxu0 0.0
        %556 = vmatpush2.msra.mxu0 0.0
        %557 = vmatprep.subr.mxu0 0.0
        %558 = vmatpush2.msra.mxu0 0.0
        %559 = vmatprep.subr.mxu0 0.0
        %560 = vmatpush2.msra.mxu0 0.0
        %561 = vmatprep.subr.mxu0 0.0
        %562 = vmatpush2.msra.mxu0 0.0
        %563 = vmatprep.subr.mxu0 0.0
        %564 = vmatpush2.msra.mxu0 0.0
        %565 = vmatprep.subr.mxu0 0.0
        %566 = vmatpush2.msra.mxu0 0.0
        %567 = vmatprep.subr.mxu0 0.0
        %568 = vmatpush2.msra.mxu0 0.0
        %569 = vmatprep.mubr.f32.mxu0 0.0
        %v570 = vand.u32 %v386, 4294901760
        %571 = vmatmul.mubr.f32.gmra.mxu0 %v570
        %v572 = vpop.f32.mrf.mxu0
        %v573 = vadd.f32 %v472, %v572
        %v574 = vpop.f32.mrf.mxu0
        %575 = vmatprep.mubr.f32.mxu0 0.0
        %v576 = vand.u32 %v389, 4294901760
        %577 = vmatmul.mubr.f32.gmra.mxu0 %v576
        %v578 = vpop.f32.mrf.mxu0
        %v579 = vadd.f32 %v482, %v578
        %v580 = vpop.f32.mrf.mxu0
        %581 = vmatprep.mubr.f32.mxu0 0.0
        %v582 = vand.u32 %v392, 4294901760
        %583 = vmatmul.mubr.f32.gmra.mxu0 %v582
        %v584 = vpop.f32.mrf.mxu0
        %v585 = vadd.f32 %v492, %v584
        %v586 = vpop.f32.mrf.mxu0
        %587 = vdwg.mxu0
        %588 = vmatprep.subr.mxu0 0.0
        %589 = vmatpush1.msra.mxu0 0.0
        %590 = vmatprep.subr.mxu0 0.0
        %591 = vmatpush1.msra.mxu0 0.0
        %592 = vmatprep.subr.mxu0 0.0
        %593 = vmatpush1.msra.mxu0 0.0
        %594 = vmatprep.subr.mxu0 0.0
        %595 = vmatpush1.msra.mxu0 0.0
        %596 = vmatprep.subr.mxu0 0.0
        %597 = vmatpush1.msra.mxu0 0.0
        %598 = vmatprep.subr.mxu0 0.0
        %599 = vmatpush1.msra.mxu0 0.0
        %600 = vmatprep.subr.mxu0 0.0
        %601 = vmatpush1.msra.mxu0 0.0
        %602 = vmatprep.subr.mxu0 0.0
        %603 = vmatpush1.msra.mxu0 0.0
        %604 = vmatprep.subr.mxu0 0.0
        %605 = vmatpush1.msra.mxu0 0.0
        %606 = vmatprep.subr.mxu0 0.0
        %607 = vmatpush1.msra.mxu0 0.0
        %608 = vmatprep.subr.mxu0 0.0
        %609 = vmatpush1.msra.mxu0 0.0
        %610 = vmatprep.subr.mxu0 0.0
        %611 = vmatpush1.msra.mxu0 0.0
        %612 = vmatprep.subr.mxu0 0.0
        %613 = vmatpush1.msra.mxu0 0.0
        %614 = vmatprep.subr.mxu0 0.0
        %615 = vmatpush1.msra.mxu0 0.0
        %616 = vmatprep.subr.mxu0 0.0
        %v617 = vand.u32 %v396, 4294901760
        %v618 = vsub.f32 %v396, %v617
        %619 = vmatpush1.msra.mxu0 %v618
        %620 = vmatprep.subr.mxu0 0.0
        %v621 = vand.u32 %v361, 4294901760
        %v622 = vsub.f32 %v361, %v621
        %623 = vmatpush1.msra.mxu0 %v622
        %624 = vmatprep.subr.mxu0 0.0
        %625 = vmatpush2.msra.mxu0 0.0
        %626 = vmatprep.subr.mxu0 0.0
        %627 = vmatpush2.msra.mxu0 0.0
        %628 = vmatprep.subr.mxu0 0.0
        %629 = vmatpush2.msra.mxu0 0.0
        %630 = vmatprep.subr.mxu0 0.0
        %631 = vmatpush2.msra.mxu0 0.0
        %632 = vmatprep.subr.mxu0 0.0
        %633 = vmatpush2.msra.mxu0 0.0
        %634 = vmatprep.subr.mxu0 0.0
        %635 = vmatpush2.msra.mxu0 0.0
        %636 = vmatprep.subr.mxu0 0.0
        %637 = vmatpush2.msra.mxu0 0.0
        %638 = vmatprep.subr.mxu0 0.0
        %639 = vmatpush2.msra.mxu0 0.0
        %640 = vmatprep.subr.mxu0 0.0
        %641 = vmatpush2.msra.mxu0 0.0
        %642 = vmatprep.subr.mxu0 0.0
        %643 = vmatpush2.msra.mxu0 0.0
        %644 = vmatprep.subr.mxu0 0.0
        %645 = vmatpush2.msra.mxu0 0.0
        %646 = vmatprep.subr.mxu0 0.0
        %647 = vmatpush2.msra.mxu0 0.0
        %648 = vmatprep.subr.mxu0 0.0
        %649 = vmatpush2.msra.mxu0 0.0
        %650 = vmatprep.subr.mxu0 0.0
        %651 = vmatpush2.msra.mxu0 0.0
        %652 = vmatprep.subr.mxu0 0.0
        %653 = vmatpush2.msra.mxu0 0.0
        %654 = vmatprep.subr.mxu0 0.0
        %655 = vmatpush2.msra.mxu0 0.0
        %656 = vmatprep.mubr.f32.mxu0 0.0
        %v657 = vand.u32 %v386, 4294901760
        %v658 = vsub.f32 %v386, %v657
        %659 = vmatmul.mubr.f32.gmra.mxu0 %v658
        %v660 = vpop.f32.mrf.mxu0
        %v661 = vadd.f32 %v573, %v660
        %v662 = vpop.f32.mrf.mxu0
        %663 = vmatprep.mubr.f32.mxu0 0.0
        %v664 = vand.u32 %v389, 4294901760
        %v665 = vsub.f32 %v389, %v664
        %666 = vmatmul.mubr.f32.gmra.mxu0 %v665
        %v667 = vpop.f32.mrf.mxu0
        %v668 = vadd.f32 %v579, %v667
        %v669 = vpop.f32.mrf.mxu0
        %670 = vmatprep.mubr.f32.mxu0 0.0
        %v671 = vand.u32 %v392, 4294901760
        %v672 = vsub.f32 %v392, %v671
        %673 = vmatmul.mubr.f32.gmra.mxu0 %v672
        %v674 = vpop.f32.mrf.mxu0
        %v675 = vadd.f32 %v585, %v674
        %v676 = vpop.f32.mrf.mxu0
        %677 = vdwg.mxu0
        %678 = vmatprep.subr.mxu0 0.0
        %679 = vmatpush1.msra.mxu0 0.0
        %680 = vmatprep.subr.mxu0 0.0
        %681 = vmatpush1.msra.mxu0 0.0
        %682 = vmatprep.subr.mxu0 0.0
        %683 = vmatpush1.msra.mxu0 0.0
        %684 = vmatprep.subr.mxu0 0.0
        %685 = vmatpush1.msra.mxu0 0.0
        %686 = vmatprep.subr.mxu0 0.0
        %687 = vmatpush1.msra.mxu0 0.0
        %688 = vmatprep.subr.mxu0 0.0
        %689 = vmatpush1.msra.mxu0 0.0
        %690 = vmatprep.subr.mxu0 0.0
        %691 = vmatpush1.msra.mxu0 0.0
        %692 = vmatprep.subr.mxu0 0.0
        %693 = vmatpush1.msra.mxu0 0.0
        %694 = vmatprep.subr.mxu0 0.0
        %695 = vmatpush1.msra.mxu0 0.0
        %696 = vmatprep.subr.mxu0 0.0
        %697 = vmatpush1.msra.mxu0 0.0
        %698 = vmatprep.subr.mxu0 0.0
        %699 = vmatpush1.msra.mxu0 0.0
        %700 = vmatprep.subr.mxu0 0.0
        %701 = vmatpush1.msra.mxu0 0.0
        %702 = vmatprep.subr.mxu0 0.0
        %703 = vmatpush1.msra.mxu0 0.0
        %704 = vmatprep.subr.mxu0 0.0
        %705 = vmatpush1.msra.mxu0 0.0
        %706 = vmatprep.subr.mxu0 0.0
        %v707 = vand.u32 %v396, 4294901760
        %708 = vmatpush1.msra.mxu0 %v707
        %709 = vmatprep.subr.mxu0 0.0
        %v710 = vand.u32 %v361, 4294901760
        %711 = vmatpush1.msra.mxu0 %v710
        %712 = vmatprep.subr.mxu0 0.0
        %713 = vmatpush2.msra.mxu0 0.0
        %714 = vmatprep.subr.mxu0 0.0
        %715 = vmatpush2.msra.mxu0 0.0
        %716 = vmatprep.subr.mxu0 0.0
        %717 = vmatpush2.msra.mxu0 0.0
        %718 = vmatprep.subr.mxu0 0.0
        %719 = vmatpush2.msra.mxu0 0.0
        %720 = vmatprep.subr.mxu0 0.0
        %721 = vmatpush2.msra.mxu0 0.0
        %722 = vmatprep.subr.mxu0 0.0
        %723 = vmatpush2.msra.mxu0 0.0
        %724 = vmatprep.subr.mxu0 0.0
        %725 = vmatpush2.msra.mxu0 0.0
        %726 = vmatprep.subr.mxu0 0.0
        %727 = vmatpush2.msra.mxu0 0.0
        %728 = vmatprep.subr.mxu0 0.0
        %729 = vmatpush2.msra.mxu0 0.0
        %730 = vmatprep.subr.mxu0 0.0
        %731 = vmatpush2.msra.mxu0 0.0
        %732 = vmatprep.subr.mxu0 0.0
        %733 = vmatpush2.msra.mxu0 0.0
        %734 = vmatprep.subr.mxu0 0.0
        %735 = vmatpush2.msra.mxu0 0.0
        %736 = vmatprep.subr.mxu0 0.0
        %737 = vmatpush2.msra.mxu0 0.0
        %738 = vmatprep.subr.mxu0 0.0
        %739 = vmatpush2.msra.mxu0 0.0
        %740 = vmatprep.subr.mxu0 0.0
        %741 = vmatpush2.msra.mxu0 0.0
        %742 = vmatprep.subr.mxu0 0.0
        %743 = vmatpush2.msra.mxu0 0.0
        %744 = vmatprep.mubr.f32.mxu0 0.0
        %v745 = vand.u32 %v386, 4294901760
        %v746 = vsub.f32 %v386, %v745
        %v747 = vand.u32 %v746, 4294901760
        %748 = vmatmul.mubr.f32.gmra.mxu0 %v747
        %v749 = vpop.f32.mrf.mxu0
        %v750 = vadd.f32 %v661, %v749
        %v751 = vpop.f32.mrf.mxu0
        %752 = vmatprep.mubr.f32.mxu0 0.0
        %v753 = vand.u32 %v389, 4294901760
        %v754 = vsub.f32 %v389, %v753
        %v755 = vand.u32 %v754, 4294901760
        %756 = vmatmul.mubr.f32.gmra.mxu0 %v755
        %v757 = vpop.f32.mrf.mxu0
        %v758 = vadd.f32 %v668, %v757
        %v759 = vpop.f32.mrf.mxu0
        %760 = vmatprep.mubr.f32.mxu0 0.0
        %v761 = vand.u32 %v392, 4294901760
        %v762 = vsub.f32 %v392, %v761
        %v763 = vand.u32 %v762, 4294901760
        %764 = vmatmul.mubr.f32.gmra.mxu0 %v763
        %v765 = vpop.f32.mrf.mxu0
        %v766 = vadd.f32 %v675, %v765
        %v767 = vpop.f32.mrf.mxu0
        %768 = vdwg.mxu0
        %769 = vmatprep.subr.mxu0 0.0
        %770 = vmatpush1.msra.mxu0 0.0
        %771 = vmatprep.subr.mxu0 0.0
        %772 = vmatpush1.msra.mxu0 0.0
        %773 = vmatprep.subr.mxu0 0.0
        %774 = vmatpush1.msra.mxu0 0.0
        %775 = vmatprep.subr.mxu0 0.0
        %776 = vmatpush1.msra.mxu0 0.0
        %777 = vmatprep.subr.mxu0 0.0
        %778 = vmatpush1.msra.mxu0 0.0
        %779 = vmatprep.subr.mxu0 0.0
        %780 = vmatpush1.msra.mxu0 0.0
        %781 = vmatprep.subr.mxu0 0.0
        %782 = vmatpush1.msra.mxu0 0.0
        %783 = vmatprep.subr.mxu0 0.0
        %784 = vmatpush1.msra.mxu0 0.0
        %785 = vmatprep.subr.mxu0 0.0
        %786 = vmatpush1.msra.mxu0 0.0
        %787 = vmatprep.subr.mxu0 0.0
        %788 = vmatpush1.msra.mxu0 0.0
        %789 = vmatprep.subr.mxu0 0.0
        %790 = vmatpush1.msra.mxu0 0.0
        %791 = vmatprep.subr.mxu0 0.0
        %792 = vmatpush1.msra.mxu0 0.0
        %793 = vmatprep.subr.mxu0 0.0
        %794 = vmatpush1.msra.mxu0 0.0
        %795 = vmatprep.subr.mxu0 0.0
        %796 = vmatpush1.msra.mxu0 0.0
        %797 = vmatprep.subr.mxu0 0.0
        %v798 = vand.u32 %v396, 4294901760
        %v799 = vsub.f32 %v396, %v798
        %v800 = vand.u32 %v799, 4294901760
        %801 = vmatpush1.msra.mxu0 %v800
        %802 = vmatprep.subr.mxu0 0.0
        %v803 = vand.u32 %v361, 4294901760
        %v804 = vsub.f32 %v361, %v803
        %v805 = vand.u32 %v804, 4294901760
        %806 = vmatpush1.msra.mxu0 %v805
        %807 = vmatprep.subr.mxu0 0.0
        %808 = vmatpush2.msra.mxu0 0.0
        %809 = vmatprep.subr.mxu0 0.0
        %810 = vmatpush2.msra.mxu0 0.0
        %811 = vmatprep.subr.mxu0 0.0
        %812 = vmatpush2.msra.mxu0 0.0
        %813 = vmatprep.subr.mxu0 0.0
        %814 = vmatpush2.msra.mxu0 0.0
        %815 = vmatprep.subr.mxu0 0.0
        %816 = vmatpush2.msra.mxu0 0.0
        %817 = vmatprep.subr.mxu0 0.0
        %818 = vmatpush2.msra.mxu0 0.0
        %819 = vmatprep.subr.mxu0 0.0
        %820 = vmatpush2.msra.mxu0 0.0
        %821 = vmatprep.subr.mxu0 0.0
        %822 = vmatpush2.msra.mxu0 0.0
        %823 = vmatprep.subr.mxu0 0.0
        %824 = vmatpush2.msra.mxu0 0.0
        %825 = vmatprep.subr.mxu0 0.0
        %826 = vmatpush2.msra.mxu0 0.0
        %827 = vmatprep.subr.mxu0 0.0
        %828 = vmatpush2.msra.mxu0 0.0
        %829 = vmatprep.subr.mxu0 0.0
        %830 = vmatpush2.msra.mxu0 0.0
        %831 = vmatprep.subr.mxu0 0.0
        %832 = vmatpush2.msra.mxu0 0.0
        %833 = vmatprep.subr.mxu0 0.0
        %834 = vmatpush2.msra.mxu0 0.0
        %835 = vmatprep.subr.mxu0 0.0
        %836 = vmatpush2.msra.mxu0 0.0
        %837 = vmatprep.subr.mxu0 0.0
        %838 = vmatpush2.msra.mxu0 0.0
        %839 = vmatprep.mubr.f32.mxu0 0.0
        %v840 = vand.u32 %v386, 4294901760
        %841 = vmatmul.mubr.f32.gmra.mxu0 %v840
        %v842 = vpop.f32.mrf.mxu0
        %v843 = vadd.f32 %v750, %v842
        %v844 = vpop.f32.mrf.mxu0
        %845 = vmatprep.mubr.f32.mxu0 0.0
        %v846 = vand.u32 %v389, 4294901760
        %847 = vmatmul.mubr.f32.gmra.mxu0 %v846
        %v848 = vpop.f32.mrf.mxu0
        %v849 = vadd.f32 %v758, %v848
        %v850 = vpop.f32.mrf.mxu0
        %851 = vmatprep.mubr.f32.mxu0 0.0
        %v852 = vand.u32 %v392, 4294901760
        %853 = vmatmul.mubr.f32.gmra.mxu0 %v852
        %v854 = vpop.f32.mrf.mxu0
        %v855 = vadd.f32 %v766, %v854
        %v856 = vpop.f32.mrf.mxu0
        %857 = vdwg.mxu0
        %858 = vmatprep.subr.mxu0 0.0
        %859 = vmatpush1.msra.mxu0 0.0
        %860 = vmatprep.subr.mxu0 0.0
        %861 = vmatpush1.msra.mxu0 0.0
        %862 = vmatprep.subr.mxu0 0.0
        %863 = vmatpush1.msra.mxu0 0.0
        %864 = vmatprep.subr.mxu0 0.0
        %865 = vmatpush1.msra.mxu0 0.0
        %866 = vmatprep.subr.mxu0 0.0
        %867 = vmatpush1.msra.mxu0 0.0
        %868 = vmatprep.subr.mxu0 0.0
        %869 = vmatpush1.msra.mxu0 0.0
        %870 = vmatprep.subr.mxu0 0.0
        %871 = vmatpush1.msra.mxu0 0.0
        %872 = vmatprep.subr.mxu0 0.0
        %873 = vmatpush1.msra.mxu0 0.0
        %874 = vmatprep.subr.mxu0 0.0
        %875 = vmatpush1.msra.mxu0 0.0
        %876 = vmatprep.subr.mxu0 0.0
        %877 = vmatpush1.msra.mxu0 0.0
        %878 = vmatprep.subr.mxu0 0.0
        %879 = vmatpush1.msra.mxu0 0.0
        %880 = vmatprep.subr.mxu0 0.0
        %881 = vmatpush1.msra.mxu0 0.0
        %882 = vmatprep.subr.mxu0 0.0
        %883 = vmatpush1.msra.mxu0 0.0
        %884 = vmatprep.subr.mxu0 0.0
        %885 = vmatpush1.msra.mxu0 0.0
        %886 = vmatprep.subr.mxu0 0.0
        %v887 = vand.u32 %v396, 4294901760
        %888 = vmatpush1.msra.mxu0 %v887
        %889 = vmatprep.subr.mxu0 0.0
        %v890 = vand.u32 %v361, 4294901760
        %891 = vmatpush1.msra.mxu0 %v890
        %892 = vmatprep.subr.mxu0 0.0
        %893 = vmatpush2.msra.mxu0 0.0
        %894 = vmatprep.subr.mxu0 0.0
        %895 = vmatpush2.msra.mxu0 0.0
        %896 = vmatprep.subr.mxu0 0.0
        %897 = vmatpush2.msra.mxu0 0.0
        %898 = vmatprep.subr.mxu0 0.0
        %899 = vmatpush2.msra.mxu0 0.0
        %900 = vmatprep.subr.mxu0 0.0
        %901 = vmatpush2.msra.mxu0 0.0
        %902 = vmatprep.subr.mxu0 0.0
        %903 = vmatpush2.msra.mxu0 0.0
        %904 = vmatprep.subr.mxu0 0.0
        %905 = vmatpush2.msra.mxu0 0.0
        %906 = vmatprep.subr.mxu0 0.0
        %907 = vmatpush2.msra.mxu0 0.0
        %908 = vmatprep.subr.mxu0 0.0
        %909 = vmatpush2.msra.mxu0 0.0
        %910 = vmatprep.subr.mxu0 0.0
        %911 = vmatpush2.msra.mxu0 0.0
        %912 = vmatprep.subr.mxu0 0.0
        %913 = vmatpush2.msra.mxu0 0.0
        %914 = vmatprep.subr.mxu0 0.0
        %915 = vmatpush2.msra.mxu0 0.0
        %916 = vmatprep.subr.mxu0 0.0
        %917 = vmatpush2.msra.mxu0 0.0
        %918 = vmatprep.subr.mxu0 0.0
        %919 = vmatpush2.msra.mxu0 0.0
        %920 = vmatprep.subr.mxu0 0.0
        %921 = vmatpush2.msra.mxu0 0.0
        %922 = vmatprep.subr.mxu0 0.0
        %923 = vmatpush2.msra.mxu0 0.0
        %924 = vmatprep.mubr.f32.mxu0 0.0
        %v925 = vand.u32 %v386, 4294901760
        %926 = vmatmul.mubr.f32.gmra.mxu0 %v925
        %v927 = vpop.f32.mrf.mxu0
        %v928 = vadd.f32 %v843, %v927
        %v929 = vpop.f32.mrf.mxu0
        %930 = vmatprep.mubr.f32.mxu0 0.0
        %v931 = vand.u32 %v389, 4294901760
        %932 = vmatmul.mubr.f32.gmra.mxu0 %v931
        %v933 = vpop.f32.mrf.mxu0
        %v934 = vadd.f32 %v849, %v933
        %v935 = vpop.f32.mrf.mxu0
        %936 = vmatprep.mubr.f32.mxu0 0.0
        %v937 = vand.u32 %v392, 4294901760
        %938 = vmatmul.mubr.f32.gmra.mxu0 %v937
        %v939 = vpop.f32.mrf.mxu0
        %v940 = vadd.f32 %v855, %v939
        %v941 = vpop.f32.mrf.mxu0
        %942 = vdwg.mxu0
        %v943 = vmax.f32 %v928, 0.0
        %v944 = vmax.f32 %v934, 0.0
        %v945 = vmax.f32 %v940, 0.0
        %v946 = vld [vmem:[%s5] sm:$0xff]
        %v947 = vld [vmem:[%s5 + $0x8] sm:$0x3]
        %v948 = vld [vmem:[%s6] sm:$0xff]
        %v949 = vld [vmem:[%s6 + $0x8] sm:$0x3]
        %951 = vset.pattern.permute.xlu0 0
        %952 = vperm.xlu0 %951, %v948
        %v953 = vpop.permute.xlu0 %952
        %956 = vset.pattern.permute.xlu0 0
        %957 = vperm.xlu0 %956, %v949
        %v958 = vpop.permute.xlu0 %957
        %vm960 = vcmask 162816
        %v962 = vsel %vm960, %v946, 0
        %v965 = vsel %vm960, %v947, 0
        %vm967 = vcmask 1043456
        %v969 = vsel %vm967, %v945, 0
        %971 = vmatprep.subr.mxu0 0.0
        %972 = vmatpush1.msra.mxu0 0.0
        %973 = vmatprep.subr.mxu0 0.0
        %974 = vmatpush1.msra.mxu0 0.0
        %975 = vmatprep.subr.mxu0 0.0
        %976 = vmatpush1.msra.mxu0 0.0
        %977 = vmatprep.subr.mxu0 0.0
        %978 = vmatpush1.msra.mxu0 0.0
        %979 = vmatprep.subr.mxu0 0.0
        %980 = vmatpush1.msra.mxu0 0.0
        %981 = vmatprep.subr.mxu0 0.0
        %982 = vmatpush1.msra.mxu0 0.0
        %983 = vmatprep.subr.mxu0 0.0
        %984 = vmatpush1.msra.mxu0 0.0
        %985 = vmatprep.subr.mxu0 0.0
        %986 = vmatpush1.msra.mxu0 0.0
        %987 = vmatprep.subr.mxu0 0.0
        %988 = vmatpush1.msra.mxu0 0.0
        %989 = vmatprep.subr.mxu0 0.0
        %990 = vmatpush1.msra.mxu0 0.0
        %991 = vmatprep.subr.mxu0 0.0
        %992 = vmatpush1.msra.mxu0 0.0
        %993 = vmatprep.subr.mxu0 0.0
        %994 = vmatpush1.msra.mxu0 0.0
        %995 = vmatprep.subr.mxu0 0.0
        %996 = vmatpush1.msra.mxu0 0.0
        %997 = vmatprep.subr.mxu0 0.0
        %v998 = vand.u32 %v969, 4294901760
        %999 = vmatpush1.msra.mxu0 %v998
        %1000 = vmatprep.subr.mxu0 0.0
        %v1001 = vand.u32 %v944, 4294901760
        %1002 = vmatpush1.msra.mxu0 %v1001
        %1003 = vmatprep.subr.mxu0 0.0
        %v1004 = vand.u32 %v943, 4294901760
        %1005 = vmatpush1.msra.mxu0 %v1004
        %1006 = vmatprep.subr.mxu0 0.0
        %1007 = vmatpush2.msra.mxu0 0.0
        %1008 = vmatprep.subr.mxu0 0.0
        %1009 = vmatpush2.msra.mxu0 0.0
        %1010 = vmatprep.subr.mxu0 0.0
        %1011 = vmatpush2.msra.mxu0 0.0
        %1012 = vmatprep.subr.mxu0 0.0
        %1013 = vmatpush2.msra.mxu0 0.0
        %1014 = vmatprep.subr.mxu0 0.0
        %1015 = vmatpush2.msra.mxu0 0.0
        %1016 = vmatprep.subr.mxu0 0.0
        %1017 = vmatpush2.msra.mxu0 0.0
        %1018 = vmatprep.subr.mxu0 0.0
        %1019 = vmatpush2.msra.mxu0 0.0
        %1020 = vmatprep.subr.mxu0 0.0
        %1021 = vmatpush2.msra.mxu0 0.0
        %1022 = vmatprep.subr.mxu0 0.0
        %1023 = vmatpush2.msra.mxu0 0.0
        %1024 = vmatprep.subr.mxu0 0.0
        %1025 = vmatpush2.msra.mxu0 0.0
        %1026 = vmatprep.subr.mxu0 0.0
        %1027 = vmatpush2.msra.mxu0 0.0
        %1028 = vmatprep.subr.mxu0 0.0
        %1029 = vmatpush2.msra.mxu0 0.0
        %1030 = vmatprep.subr.mxu0 0.0
        %1031 = vmatpush2.msra.mxu0 0.0
        %1032 = vmatprep.subr.mxu0 0.0
        %1033 = vmatpush2.msra.mxu0 0.0
        %1034 = vmatprep.subr.mxu0 0.0
        %1035 = vmatpush2.msra.mxu0 0.0
        %1036 = vmatprep.subr.mxu0 0.0
        %1037 = vmatpush2.msra.mxu0 0.0
        %1038 = vmatprep.mubr.f32.mxu0 0.0
        %v1039 = vand.u32 %v962, 4294901760
        %v1040 = vsub.f32 %v962, %v1039
        %v1041 = vand.u32 %v1040, 4294901760
        %v1042 = vsub.f32 %v1040, %v1041
        %v1043 = vand.u32 %v1042, 4294901760
        %1044 = vmatmul.mubr.f32.gmra.mxu0 %v1043
        %v1045 = vpop.f32.mrf.mxu0
        %v1046 = vadd.f32 %v953, %v1045
        %v1047 = vpop.f32.mrf.mxu0
        %1048 = vmatprep.mubr.f32.mxu0 0.0
        %v1049 = vand.u32 %v965, 4294901760
        %v1050 = vsub.f32 %v965, %v1049
        %v1051 = vand.u32 %v1050, 4294901760
        %v1052 = vsub.f32 %v1050, %v1051
        %v1053 = vand.u32 %v1052, 4294901760
        %1054 = vmatmul.mubr.f32.gmra.mxu0 %v1053
        %v1055 = vpop.f32.mrf.mxu0
        %v1056 = vadd.f32 %v958, %v1055
        %v1057 = vpop.f32.mrf.mxu0
        %1058 = vdwg.mxu0
        %1059 = vmatprep.subr.mxu0 0.0
        %1060 = vmatpush1.msra.mxu0 0.0
        %1061 = vmatprep.subr.mxu0 0.0
        %1062 = vmatpush1.msra.mxu0 0.0
        %1063 = vmatprep.subr.mxu0 0.0
        %1064 = vmatpush1.msra.mxu0 0.0
        %1065 = vmatprep.subr.mxu0 0.0
        %1066 = vmatpush1.msra.mxu0 0.0
        %1067 = vmatprep.subr.mxu0 0.0
        %1068 = vmatpush1.msra.mxu0 0.0
        %1069 = vmatprep.subr.mxu0 0.0
        %1070 = vmatpush1.msra.mxu0 0.0
        %1071 = vmatprep.subr.mxu0 0.0
        %1072 = vmatpush1.msra.mxu0 0.0
        %1073 = vmatprep.subr.mxu0 0.0
        %1074 = vmatpush1.msra.mxu0 0.0
        %1075 = vmatprep.subr.mxu0 0.0
        %1076 = vmatpush1.msra.mxu0 0.0
        %1077 = vmatprep.subr.mxu0 0.0
        %1078 = vmatpush1.msra.mxu0 0.0
        %1079 = vmatprep.subr.mxu0 0.0
        %1080 = vmatpush1.msra.mxu0 0.0
        %1081 = vmatprep.subr.mxu0 0.0
        %1082 = vmatpush1.msra.mxu0 0.0
        %1083 = vmatprep.subr.mxu0 0.0
        %1084 = vmatpush1.msra.mxu0 0.0
        %1085 = vmatprep.subr.mxu0 0.0
        %v1086 = vand.u32 %v969, 4294901760
        %v1087 = vsub.f32 %v969, %v1086
        %v1088 = vand.u32 %v1087, 4294901760
        %v1089 = vsub.f32 %v1087, %v1088
        %v1090 = vand.u32 %v1089, 4294901760
        %1091 = vmatpush1.msra.mxu0 %v1090
        %1092 = vmatprep.subr.mxu0 0.0
        %v1093 = vand.u32 %v944, 4294901760
        %v1094 = vsub.f32 %v944, %v1093
        %v1095 = vand.u32 %v1094, 4294901760
        %v1096 = vsub.f32 %v1094, %v1095
        %v1097 = vand.u32 %v1096, 4294901760
        %1098 = vmatpush1.msra.mxu0 %v1097
        %1099 = vmatprep.subr.mxu0 0.0
        %v1100 = vand.u32 %v943, 4294901760
        %v1101 = vsub.f32 %v943, %v1100
        %v1102 = vand.u32 %v1101, 4294901760
        %v1103 = vsub.f32 %v1101, %v1102
        %v1104 = vand.u32 %v1103, 4294901760
        %1105 = vmatpush1.msra.mxu0 %v1104
        %1106 = vmatprep.subr.mxu0 0.0
        %1107 = vmatpush2.msra.mxu0 0.0
        %1108 = vmatprep.subr.mxu0 0.0
        %1109 = vmatpush2.msra.mxu0 0.0
        %1110 = vmatprep.subr.mxu0 0.0
        %1111 = vmatpush2.msra.mxu0 0.0
        %1112 = vmatprep.subr.mxu0 0.0
        %1113 = vmatpush2.msra.mxu0 0.0
        %1114 = vmatprep.subr.mxu0 0.0
        %1115 = vmatpush2.msra.mxu0 0.0
        %1116 = vmatprep.subr.mxu0 0.0
        %1117 = vmatpush2.msra.mxu0 0.0
        %1118 = vmatprep.subr.mxu0 0.0
        %1119 = vmatpush2.msra.mxu0 0.0
        %1120 = vmatprep.subr.mxu0 0.0
        %1121 = vmatpush2.msra.mxu0 0.0
        %1122 = vmatprep.subr.mxu0 0.0
        %1123 = vmatpush2.msra.mxu0 0.0
        %1124 = vmatprep.subr.mxu0 0.0
        %1125 = vmatpush2.msra.mxu0 0.0
        %1126 = vmatprep.subr.mxu0 0.0
        %1127 = vmatpush2.msra.mxu0 0.0
        %1128 = vmatprep.subr.mxu0 0.0
        %1129 = vmatpush2.msra.mxu0 0.0
        %1130 = vmatprep.subr.mxu0 0.0
        %1131 = vmatpush2.msra.mxu0 0.0
        %1132 = vmatprep.subr.mxu0 0.0
        %1133 = vmatpush2.msra.mxu0 0.0
        %1134 = vmatprep.subr.mxu0 0.0
        %1135 = vmatpush2.msra.mxu0 0.0
        %1136 = vmatprep.subr.mxu0 0.0
        %1137 = vmatpush2.msra.mxu0 0.0
        %1138 = vmatprep.mubr.f32.mxu0 0.0
        %v1139 = vand.u32 %v962, 4294901760
        %1140 = vmatmul.mubr.f32.gmra.mxu0 %v1139
        %v1141 = vpop.f32.mrf.mxu0
        %v1142 = vadd.f32 %v1046, %v1141
        %v1143 = vpop.f32.mrf.mxu0
        %1144 = vmatprep.mubr.f32.mxu0 0.0
        %v1145 = vand.u32 %v965, 4294901760
        %1146 = vmatmul.mubr.f32.gmra.mxu0 %v1145
        %v1147 = vpop.f32.mrf.mxu0
        %v1148 = vadd.f32 %v1056, %v1147
        %v1149 = vpop.f32.mrf.mxu0
        %1150 = vdwg.mxu0
        %1151 = vmatprep.subr.mxu0 0.0
        %1152 = vmatpush1.msra.mxu0 0.0
        %1153 = vmatprep.subr.mxu0 0.0
        %1154 = vmatpush1.msra.mxu0 0.0
        %1155 = vmatprep.subr.mxu0 0.0
        %1156 = vmatpush1.msra.mxu0 0.0
        %1157 = vmatprep.subr.mxu0 0.0
        %1158 = vmatpush1.msra.mxu0 0.0
        %1159 = vmatprep.subr.mxu0 0.0
        %1160 = vmatpush1.msra.mxu0 0.0
        %1161 = vmatprep.subr.mxu0 0.0
        %1162 = vmatpush1.msra.mxu0 0.0
        %1163 = vmatprep.subr.mxu0 0.0
        %1164 = vmatpush1.msra.mxu0 0.0
        %1165 = vmatprep.subr.mxu0 0.0
        %1166 = vmatpush1.msra.mxu0 0.0
        %1167 = vmatprep.subr.mxu0 0.0
        %1168 = vmatpush1.msra.mxu0 0.0
        %1169 = vmatprep.subr.mxu0 0.0
        %1170 = vmatpush1.msra.mxu0 0.0
        %1171 = vmatprep.subr.mxu0 0.0
        %1172 = vmatpush1.msra.mxu0 0.0
        %1173 = vmatprep.subr.mxu0 0.0
        %1174 = vmatpush1.msra.mxu0 0.0
        %1175 = vmatprep.subr.mxu0 0.0
        %1176 = vmatpush1.msra.mxu0 0.0
        %1177 = vmatprep.subr.mxu0 0.0
        %v1178 = vand.u32 %v969, 4294901760
        %v1179 = vsub.f32 %v969, %v1178
        %1180 = vmatpush1.msra.mxu0 %v1179
        %1181 = vmatprep.subr.mxu0 0.0
        %v1182 = vand.u32 %v944, 4294901760
        %v1183 = vsub.f32 %v944, %v1182
        %1184 = vmatpush1.msra.mxu0 %v1183
        %1185 = vmatprep.subr.mxu0 0.0
        %v1186 = vand.u32 %v943, 4294901760
        %v1187 = vsub.f32 %v943, %v1186
        %1188 = vmatpush1.msra.mxu0 %v1187
        %1189 = vmatprep.subr.mxu0 0.0
        %1190 = vmatpush2.msra.mxu0 0.0
        %1191 = vmatprep.subr.mxu0 0.0
        %1192 = vmatpush2.msra.mxu0 0.0
        %1193 = vmatprep.subr.mxu0 0.0
        %1194 = vmatpush2.msra.mxu0 0.0
        %1195 = vmatprep.subr.mxu0 0.0
        %1196 = vmatpush2.msra.mxu0 0.0
        %1197 = vmatprep.subr.mxu0 0.0
        %1198 = vmatpush2.msra.mxu0 0.0
        %1199 = vmatprep.subr.mxu0 0.0
        %1200 = vmatpush2.msra.mxu0 0.0
        %1201 = vmatprep.subr.mxu0 0.0
        %1202 = vmatpush2.msra.mxu0 0.0
        %1203 = vmatprep.subr.mxu0 0.0
        %1204 = vmatpush2.msra.mxu0 0.0
        %1205 = vmatprep.subr.mxu0 0.0
        %1206 = vmatpush2.msra.mxu0 0.0
        %1207 = vmatprep.subr.mxu0 0.0
        %1208 = vmatpush2.msra.mxu0 0.0
        %1209 = vmatprep.subr.mxu0 0.0
        %1210 = vmatpush2.msra.mxu0 0.0
        %1211 = vmatprep.subr.mxu0 0.0
        %1212 = vmatpush2.msra.mxu0 0.0
        %1213 = vmatprep.subr.mxu0 0.0
        %1214 = vmatpush2.msra.mxu0 0.0
        %1215 = vmatprep.subr.mxu0 0.0
        %1216 = vmatpush2.msra.mxu0 0.0
        %1217 = vmatprep.subr.mxu0 0.0
        %1218 = vmatpush2.msra.mxu0 0.0
        %1219 = vmatprep.subr.mxu0 0.0
        %1220 = vmatpush2.msra.mxu0 0.0
        %1221 = vmatprep.mubr.f32.mxu0 0.0
        %v1222 = vand.u32 %v962, 4294901760
        %v1223 = vsub.f32 %v962, %v1222
        %1224 = vmatmul.mubr.f32.gmra.mxu0 %v1223
        %v1225 = vpop.f32.mrf.mxu0
        %v1226 = vadd.f32 %v1142, %v1225
        %v1227 = vpop.f32.mrf.mxu0
        %1228 = vmatprep.mubr.f32.mxu0 0.0
        %v1229 = vand.u32 %v965, 4294901760
        %v1230 = vsub.f32 %v965, %v1229
        %1231 = vmatmul.mubr.f32.gmra.mxu0 %v1230
        %v1232 = vpop.f32.mrf.mxu0
        %v1233 = vadd.f32 %v1148, %v1232
        %v1234 = vpop.f32.mrf.mxu0
        %1235 = vdwg.mxu0
        %1236 = vmatprep.subr.mxu0 0.0
        %1237 = vmatpush1.msra.mxu0 0.0
        %1238 = vmatprep.subr.mxu0 0.0
        %1239 = vmatpush1.msra.mxu0 0.0
        %1240 = vmatprep.subr.mxu0 0.0
        %1241 = vmatpush1.msra.mxu0 0.0
        %1242 = vmatprep.subr.mxu0 0.0
        %1243 = vmatpush1.msra.mxu0 0.0
        %1244 = vmatprep.subr.mxu0 0.0
        %1245 = vmatpush1.msra.mxu0 0.0
        %1246 = vmatprep.subr.mxu0 0.0
        %1247 = vmatpush1.msra.mxu0 0.0
        %1248 = vmatprep.subr.mxu0 0.0
        %1249 = vmatpush1.msra.mxu0 0.0
        %1250 = vmatprep.subr.mxu0 0.0
        %1251 = vmatpush1.msra.mxu0 0.0
        %1252 = vmatprep.subr.mxu0 0.0
        %1253 = vmatpush1.msra.mxu0 0.0
        %1254 = vmatprep.subr.mxu0 0.0
        %1255 = vmatpush1.msra.mxu0 0.0
        %1256 = vmatprep.subr.mxu0 0.0
        %1257 = vmatpush1.msra.mxu0 0.0
        %1258 = vmatprep.subr.mxu0 0.0
        %1259 = vmatpush1.msra.mxu0 0.0
        %1260 = vmatprep.subr.mxu0 0.0
        %1261 = vmatpush1.msra.mxu0 0.0
        %1262 = vmatprep.subr.mxu0 0.0
        %v1263 = vand.u32 %v969, 4294901760
        %1264 = vmatpush1.msra.mxu0 %v1263
        %1265 = vmatprep.subr.mxu0 0.0
        %v1266 = vand.u32 %v944, 4294901760
        %1267 = vmatpush1.msra.mxu0 %v1266
        %1268 = vmatprep.subr.mxu0 0.0
        %v1269 = vand.u32 %v943, 4294901760
        %1270 = vmatpush1.msra.mxu0 %v1269
        %1271 = vmatprep.subr.mxu0 0.0
        %1272 = vmatpush2.msra.mxu0 0.0
        %1273 = vmatprep.subr.mxu0 0.0
        %1274 = vmatpush2.msra.mxu0 0.0
        %1275 = vmatprep.subr.mxu0 0.0
        %1276 = vmatpush2.msra.mxu0 0.0
        %1277 = vmatprep.subr.mxu0 0.0
        %1278 = vmatpush2.msra.mxu0 0.0
        %1279 = vmatprep.subr.mxu0 0.0
        %1280 = vmatpush2.msra.mxu0 0.0
        %1281 = vmatprep.subr.mxu0 0.0
        %1282 = vmatpush2.msra.mxu0 0.0
        %1283 = vmatprep.subr.mxu0 0.0
        %1284 = vmatpush2.msra.mxu0 0.0
        %1285 = vmatprep.subr.mxu0 0.0
        %1286 = vmatpush2.msra.mxu0 0.0
        %1287 = vmatprep.subr.mxu0 0.0
        %1288 = vmatpush2.msra.mxu0 0.0
        %1289 = vmatprep.subr.mxu0 0.0
        %1290 = vmatpush2.msra.mxu0 0.0
        %1291 = vmatprep.subr.mxu0 0.0
        %1292 = vmatpush2.msra.mxu0 0.0
        %1293 = vmatprep.subr.mxu0 0.0
        %1294 = vmatpush2.msra.mxu0 0.0
        %1295 = vmatprep.subr.mxu0 0.0
        %1296 = vmatpush2.msra.mxu0 0.0
        %1297 = vmatprep.subr.mxu0 0.0
        %1298 = vmatpush2.msra.mxu0 0.0
        %1299 = vmatprep.subr.mxu0 0.0
        %1300 = vmatpush2.msra.mxu0 0.0
        %1301 = vmatprep.subr.mxu0 0.0
        %1302 = vmatpush2.msra.mxu0 0.0
        %1303 = vmatprep.mubr.f32.mxu0 0.0
        %v1304 = vand.u32 %v962, 4294901760
        %v1305 = vsub.f32 %v962, %v1304
        %v1306 = vand.u32 %v1305, 4294901760
        %1307 = vmatmul.mubr.f32.gmra.mxu0 %v1306
        %v1308 = vpop.f32.mrf.mxu0
        %v1309 = vadd.f32 %v1226, %v1308
        %v1310 = vpop.f32.mrf.mxu0
        %1311 = vmatprep.mubr.f32.mxu0 0.0
        %v1312 = vand.u32 %v965, 4294901760
        %v1313 = vsub.f32 %v965, %v1312
        %v1314 = vand.u32 %v1313, 4294901760
        %1315 = vmatmul.mubr.f32.gmra.mxu0 %v1314
        %v1316 = vpop.f32.mrf.mxu0
        %v1317 = vadd.f32 %v1233, %v1316
        %v1318 = vpop.f32.mrf.mxu0
        %1319 = vdwg.mxu0
        %1320 = vmatprep.subr.mxu0 0.0
        %1321 = vmatpush1.msra.mxu0 0.0
        %1322 = vmatprep.subr.mxu0 0.0
        %1323 = vmatpush1.msra.mxu0 0.0
        %1324 = vmatprep.subr.mxu0 0.0
        %1325 = vmatpush1.msra.mxu0 0.0
        %1326 = vmatprep.subr.mxu0 0.0
        %1327 = vmatpush1.msra.mxu0 0.0
        %1328 = vmatprep.subr.mxu0 0.0
        %1329 = vmatpush1.msra.mxu0 0.0
        %1330 = vmatprep.subr.mxu0 0.0
        %1331 = vmatpush1.msra.mxu0 0.0
        %1332 = vmatprep.subr.mxu0 0.0
        %1333 = vmatpush1.msra.mxu0 0.0
        %1334 = vmatprep.subr.mxu0 0.0
        %1335 = vmatpush1.msra.mxu0 0.0
        %1336 = vmatprep.subr.mxu0 0.0
        %1337 = vmatpush1.msra.mxu0 0.0
        %1338 = vmatprep.subr.mxu0 0.0
        %1339 = vmatpush1.msra.mxu0 0.0
        %1340 = vmatprep.subr.mxu0 0.0
        %1341 = vmatpush1.msra.mxu0 0.0
        %1342 = vmatprep.subr.mxu0 0.0
        %1343 = vmatpush1.msra.mxu0 0.0
        %1344 = vmatprep.subr.mxu0 0.0
        %1345 = vmatpush1.msra.mxu0 0.0
        %1346 = vmatprep.subr.mxu0 0.0
        %v1347 = vand.u32 %v969, 4294901760
        %v1348 = vsub.f32 %v969, %v1347
        %v1349 = vand.u32 %v1348, 4294901760
        %1350 = vmatpush1.msra.mxu0 %v1349
        %1351 = vmatprep.subr.mxu0 0.0
        %v1352 = vand.u32 %v944, 4294901760
        %v1353 = vsub.f32 %v944, %v1352
        %v1354 = vand.u32 %v1353, 4294901760
        %1355 = vmatpush1.msra.mxu0 %v1354
        %1356 = vmatprep.subr.mxu0 0.0
        %v1357 = vand.u32 %v943, 4294901760
        %v1358 = vsub.f32 %v943, %v1357
        %v1359 = vand.u32 %v1358, 4294901760
        %1360 = vmatpush1.msra.mxu0 %v1359
        %1361 = vmatprep.subr.mxu0 0.0
        %1362 = vmatpush2.msra.mxu0 0.0
        %1363 = vmatprep.subr.mxu0 0.0
        %1364 = vmatpush2.msra.mxu0 0.0
        %1365 = vmatprep.subr.mxu0 0.0
        %1366 = vmatpush2.msra.mxu0 0.0
        %1367 = vmatprep.subr.mxu0 0.0
        %1368 = vmatpush2.msra.mxu0 0.0
        %1369 = vmatprep.subr.mxu0 0.0
        %1370 = vmatpush2.msra.mxu0 0.0
        %1371 = vmatprep.subr.mxu0 0.0
        %1372 = vmatpush2.msra.mxu0 0.0
        %1373 = vmatprep.subr.mxu0 0.0
        %1374 = vmatpush2.msra.mxu0 0.0
        %1375 = vmatprep.subr.mxu0 0.0
        %1376 = vmatpush2.msra.mxu0 0.0
        %1377 = vmatprep.subr.mxu0 0.0
        %1378 = vmatpush2.msra.mxu0 0.0
        %1379 = vmatprep.subr.mxu0 0.0
        %1380 = vmatpush2.msra.mxu0 0.0
        %1381 = vmatprep.subr.mxu0 0.0
        %1382 = vmatpush2.msra.mxu0 0.0
        %1383 = vmatprep.subr.mxu0 0.0
        %1384 = vmatpush2.msra.mxu0 0.0
        %1385 = vmatprep.subr.mxu0 0.0
        %1386 = vmatpush2.msra.mxu0 0.0
        %1387 = vmatprep.subr.mxu0 0.0
        %1388 = vmatpush2.msra.mxu0 0.0
        %1389 = vmatprep.subr.mxu0 0.0
        %1390 = vmatpush2.msra.mxu0 0.0
        %1391 = vmatprep.subr.mxu0 0.0
        %1392 = vmatpush2.msra.mxu0 0.0
        %1393 = vmatprep.mubr.f32.mxu0 0.0
        %v1394 = vand.u32 %v962, 4294901760
        %1395 = vmatmul.mubr.f32.gmra.mxu0 %v1394
        %v1396 = vpop.f32.mrf.mxu0
        %v1397 = vadd.f32 %v1309, %v1396
        %v1398 = vpop.f32.mrf.mxu0
        %1399 = vmatprep.mubr.f32.mxu0 0.0
        %v1400 = vand.u32 %v965, 4294901760
        %1401 = vmatmul.mubr.f32.gmra.mxu0 %v1400
        %v1402 = vpop.f32.mrf.mxu0
        %v1403 = vadd.f32 %v1317, %v1402
        %v1404 = vpop.f32.mrf.mxu0
        %1405 = vdwg.mxu0
        %1406 = vmatprep.subr.mxu0 0.0
        %1407 = vmatpush1.msra.mxu0 0.0
        %1408 = vmatprep.subr.mxu0 0.0
        %1409 = vmatpush1.msra.mxu0 0.0
        %1410 = vmatprep.subr.mxu0 0.0
        %1411 = vmatpush1.msra.mxu0 0.0
        %1412 = vmatprep.subr.mxu0 0.0
        %1413 = vmatpush1.msra.mxu0 0.0
        %1414 = vmatprep.subr.mxu0 0.0
        %1415 = vmatpush1.msra.mxu0 0.0
        %1416 = vmatprep.subr.mxu0 0.0
        %1417 = vmatpush1.msra.mxu0 0.0
        %1418 = vmatprep.subr.mxu0 0.0
        %1419 = vmatpush1.msra.mxu0 0.0
        %1420 = vmatprep.subr.mxu0 0.0
        %1421 = vmatpush1.msra.mxu0 0.0
        %1422 = vmatprep.subr.mxu0 0.0
        %1423 = vmatpush1.msra.mxu0 0.0
        %1424 = vmatprep.subr.mxu0 0.0
        %1425 = vmatpush1.msra.mxu0 0.0
        %1426 = vmatprep.subr.mxu0 0.0
        %1427 = vmatpush1.msra.mxu0 0.0
        %1428 = vmatprep.subr.mxu0 0.0
        %1429 = vmatpush1.msra.mxu0 0.0
        %1430 = vmatprep.subr.mxu0 0.0
        %1431 = vmatpush1.msra.mxu0 0.0
        %1432 = vmatprep.subr.mxu0 0.0
        %v1433 = vand.u32 %v969, 4294901760
        %1434 = vmatpush1.msra.mxu0 %v1433
        %1435 = vmatprep.subr.mxu0 0.0
        %v1436 = vand.u32 %v944, 4294901760
        %1437 = vmatpush1.msra.mxu0 %v1436
        %1438 = vmatprep.subr.mxu0 0.0
        %v1439 = vand.u32 %v943, 4294901760
        %1440 = vmatpush1.msra.mxu0 %v1439
        %1441 = vmatprep.subr.mxu0 0.0
        %1442 = vmatpush2.msra.mxu0 0.0
        %1443 = vmatprep.subr.mxu0 0.0
        %1444 = vmatpush2.msra.mxu0 0.0
        %1445 = vmatprep.subr.mxu0 0.0
        %1446 = vmatpush2.msra.mxu0 0.0
        %1447 = vmatprep.subr.mxu0 0.0
        %1448 = vmatpush2.msra.mxu0 0.0
        %1449 = vmatprep.subr.mxu0 0.0
        %1450 = vmatpush2.msra.mxu0 0.0
        %1451 = vmatprep.subr.mxu0 0.0
        %1452 = vmatpush2.msra.mxu0 0.0
        %1453 = vmatprep.subr.mxu0 0.0
        %1454 = vmatpush2.msra.mxu0 0.0
        %1455 = vmatprep.subr.mxu0 0.0
        %1456 = vmatpush2.msra.mxu0 0.0
        %1457 = vmatprep.subr.mxu0 0.0
        %1458 = vmatpush2.msra.mxu0 0.0
        %1459 = vmatprep.subr.mxu0 0.0
        %1460 = vmatpush2.msra.mxu0 0.0
        %1461 = vmatprep.subr.mxu0 0.0
        %1462 = vmatpush2.msra.mxu0 0.0
        %1463 = vmatprep.subr.mxu0 0.0
        %1464 = vmatpush2.msra.mxu0 0.0
        %1465 = vmatprep.subr.mxu0 0.0
        %1466 = vmatpush2.msra.mxu0 0.0
        %1467 = vmatprep.subr.mxu0 0.0
        %1468 = vmatpush2.msra.mxu0 0.0
        %1469 = vmatprep.subr.mxu0 0.0
        %1470 = vmatpush2.msra.mxu0 0.0
        %1471 = vmatprep.subr.mxu0 0.0
        %1472 = vmatpush2.msra.mxu0 0.0
        %1473 = vmatprep.mubr.f32.mxu0 0.0
        %v1474 = vand.u32 %v962, 4294901760
        %1475 = vmatmul.mubr.f32.gmra.mxu0 %v1474
        %v1476 = vpop.f32.mrf.mxu0
        %v1477 = vadd.f32 %v1397, %v1476
        %v1478 = vpop.f32.mrf.mxu0
        %1479 = vmatprep.mubr.f32.mxu0 0.0
        %v1480 = vand.u32 %v965, 4294901760
        %1481 = vmatmul.mubr.f32.gmra.mxu0 %v1480
        %v1482 = vpop.f32.mrf.mxu0
        %v1483 = vadd.f32 %v1403, %v1482
        %v1484 = vpop.f32.mrf.mxu0
        %1485 = vdwg.mxu0
        %v1486 = vmax.f32 %v1477, 0.0
        %v1487 = vmax.f32 %v1483, 0.0
        %v1488 = vld [vmem:[%s7] sm:$0x1]
        %v1489 = vld [vmem:[#allocation2] sm:$0x1]
        %1491 = vset.pattern.permute.xlu0 0
        %1492 = vperm.xlu0 %1491, %v1489
        %v1493 = vpop.permute.xlu0 %1492
        %v1495 = vlaneseq
        %v1496 = vshrl.u32 %v1495, 7
        %v1497 = vsub.s32 0, %v1496
        %v1498 = vrot.slane %v1493, %v1497
        %v1500 = vsel %vm384, %v1488, 0
        %v1503 = vsel %vm394, %v1487, 0
        %1505 = vmatprep.subr.mxu0 0.0
        %1506 = vmatpush1.msra.mxu0 0.0
        %1507 = vmatprep.subr.mxu0 0.0
        %1508 = vmatpush1.msra.mxu0 0.0
        %1509 = vmatprep.subr.mxu0 0.0
        %1510 = vmatpush1.msra.mxu0 0.0
        %1511 = vmatprep.subr.mxu0 0.0
        %1512 = vmatpush1.msra.mxu0 0.0
        %1513 = vmatprep.subr.mxu0 0.0
        %1514 = vmatpush1.msra.mxu0 0.0
        %1515 = vmatprep.subr.mxu0 0.0
        %1516 = vmatpush1.msra.mxu0 0.0
        %1517 = vmatprep.subr.mxu0 0.0
        %1518 = vmatpush1.msra.mxu0 0.0
        %1519 = vmatprep.subr.mxu0 0.0
        %1520 = vmatpush1.msra.mxu0 0.0
        %1521 = vmatprep.subr.mxu0 0.0
        %1522 = vmatpush1.msra.mxu0 0.0
        %1523 = vmatprep.subr.mxu0 0.0
        %1524 = vmatpush1.msra.mxu0 0.0
        %1525 = vmatprep.subr.mxu0 0.0
        %1526 = vmatpush1.msra.mxu0 0.0
        %1527 = vmatprep.subr.mxu0 0.0
        %1528 = vmatpush1.msra.mxu0 0.0
        %1529 = vmatprep.subr.mxu0 0.0
        %1530 = vmatpush1.msra.mxu0 0.0
        %1531 = vmatprep.subr.mxu0 0.0
        %1532 = vmatpush1.msra.mxu0 0.0
        %1533 = vmatprep.subr.mxu0 0.0
        %v1534 = vand.u32 %v1503, 4294901760
        %1535 = vmatpush1.msra.mxu0 %v1534
        %1536 = vmatprep.subr.mxu0 0.0
        %v1537 = vand.u32 %v1486, 4294901760
        %1538 = vmatpush1.msra.mxu0 %v1537
        %1539 = vmatprep.subr.mxu0 0.0
        %1540 = vmatpush2.msra.mxu0 0.0
        %1541 = vmatprep.subr.mxu0 0.0
        %1542 = vmatpush2.msra.mxu0 0.0
        %1543 = vmatprep.subr.mxu0 0.0
        %1544 = vmatpush2.msra.mxu0 0.0
        %1545 = vmatprep.subr.mxu0 0.0
        %1546 = vmatpush2.msra.mxu0 0.0
        %1547 = vmatprep.subr.mxu0 0.0
        %1548 = vmatpush2.msra.mxu0 0.0
        %1549 = vmatprep.subr.mxu0 0.0
        %1550 = vmatpush2.msra.mxu0 0.0
        %1551 = vmatprep.subr.mxu0 0.0
        %1552 = vmatpush2.msra.mxu0 0.0
        %1553 = vmatprep.subr.mxu0 0.0
        %1554 = vmatpush2.msra.mxu0 0.0
        %1555 = vmatprep.subr.mxu0 0.0
        %1556 = vmatpush2.msra.mxu0 0.0
        %1557 = vmatprep.subr.mxu0 0.0
        %1558 = vmatpush2.msra.mxu0 0.0
        %1559 = vmatprep.subr.mxu0 0.0
        %1560 = vmatpush2.msra.mxu0 0.0
        %1561 = vmatprep.subr.mxu0 0.0
        %1562 = vmatpush2.msra.mxu0 0.0
        %1563 = vmatprep.subr.mxu0 0.0
        %1564 = vmatpush2.msra.mxu0 0.0
        %1565 = vmatprep.subr.mxu0 0.0
        %1566 = vmatpush2.msra.mxu0 0.0
        %1567 = vmatprep.subr.mxu0 0.0
        %1568 = vmatpush2.msra.mxu0 0.0
        %1569 = vmatprep.subr.mxu0 0.0
        %1570 = vmatpush2.msra.mxu0 0.0
        %1571 = vmatprep.mubr.f32.mxu0 0.0
        %v1572 = vand.u32 %v1500, 4294901760
        %v1573 = vsub.f32 %v1500, %v1572
        %v1574 = vand.u32 %v1573, 4294901760
        %v1575 = vsub.f32 %v1573, %v1574
        %v1576 = vand.u32 %v1575, 4294901760
        %1577 = vmatmul.mubr.f32.gmra.mxu0 %v1576
        %v1578 = vpop.f32.mrf.mxu0
        %v1579 = vadd.f32 %v1498, %v1578
        %v1580 = vpop.f32.mrf.mxu0
        %1581 = vdwg.mxu0
        %1582 = vmatprep.subr.mxu0 0.0
        %1583 = vmatpush1.msra.mxu0 0.0
        %1584 = vmatprep.subr.mxu0 0.0
        %1585 = vmatpush1.msra.mxu0 0.0
        %1586 = vmatprep.subr.mxu0 0.0
        %1587 = vmatpush1.msra.mxu0 0.0
        %1588 = vmatprep.subr.mxu0 0.0
        %1589 = vmatpush1.msra.mxu0 0.0
        %1590 = vmatprep.subr.mxu0 0.0
        %1591 = vmatpush1.msra.mxu0 0.0
        %1592 = vmatprep.subr.mxu0 0.0
        %1593 = vmatpush1.msra.mxu0 0.0
        %1594 = vmatprep.subr.mxu0 0.0
        %1595 = vmatpush1.msra.mxu0 0.0
        %1596 = vmatprep.subr.mxu0 0.0
        %1597 = vmatpush1.msra.mxu0 0.0
        %1598 = vmatprep.subr.mxu0 0.0
        %1599 = vmatpush1.msra.mxu0 0.0
        %1600 = vmatprep.subr.mxu0 0.0
        %1601 = vmatpush1.msra.mxu0 0.0
        %1602 = vmatprep.subr.mxu0 0.0
        %1603 = vmatpush1.msra.mxu0 0.0
        %1604 = vmatprep.subr.mxu0 0.0
        %1605 = vmatpush1.msra.mxu0 0.0
        %1606 = vmatprep.subr.mxu0 0.0
        %1607 = vmatpush1.msra.mxu0 0.0
        %1608 = vmatprep.subr.mxu0 0.0
        %1609 = vmatpush1.msra.mxu0 0.0
        %1610 = vmatprep.subr.mxu0 0.0
        %v1611 = vand.u32 %v1503, 4294901760
        %v1612 = vsub.f32 %v1503, %v1611
        %v1613 = vand.u32 %v1612, 4294901760
        %v1614 = vsub.f32 %v1612, %v1613
        %v1615 = vand.u32 %v1614, 4294901760
        %1616 = vmatpush1.msra.mxu0 %v1615
        %1617 = vmatprep.subr.mxu0 0.0
        %v1618 = vand.u32 %v1486, 4294901760
        %v1619 = vsub.f32 %v1486, %v1618
        %v1620 = vand.u32 %v1619, 4294901760
        %v1621 = vsub.f32 %v1619, %v1620
        %v1622 = vand.u32 %v1621, 4294901760
        %1623 = vmatpush1.msra.mxu0 %v1622
        %1624 = vmatprep.subr.mxu0 0.0
        %1625 = vmatpush2.msra.mxu0 0.0
        %1626 = vmatprep.subr.mxu0 0.0
        %1627 = vmatpush2.msra.mxu0 0.0
        %1628 = vmatprep.subr.mxu0 0.0
        %1629 = vmatpush2.msra.mxu0 0.0
        %1630 = vmatprep.subr.mxu0 0.0
        %1631 = vmatpush2.msra.mxu0 0.0
        %1632 = vmatprep.subr.mxu0 0.0
        %1633 = vmatpush2.msra.mxu0 0.0
        %1634 = vmatprep.subr.mxu0 0.0
        %1635 = vmatpush2.msra.mxu0 0.0
        %1636 = vmatprep.subr.mxu0 0.0
        %1637 = vmatpush2.msra.mxu0 0.0
        %1638 = vmatprep.subr.mxu0 0.0
        %1639 = vmatpush2.msra.mxu0 0.0
        %1640 = vmatprep.subr.mxu0 0.0
        %1641 = vmatpush2.msra.mxu0 0.0
        %1642 = vmatprep.subr.mxu0 0.0
        %1643 = vmatpush2.msra.mxu0 0.0
        %1644 = vmatprep.subr.mxu0 0.0
        %1645 = vmatpush2.msra.mxu0 0.0
        %1646 = vmatprep.subr.mxu0 0.0
        %1647 = vmatpush2.msra.mxu0 0.0
        %1648 = vmatprep.subr.mxu0 0.0
        %1649 = vmatpush2.msra.mxu0 0.0
        %1650 = vmatprep.subr.mxu0 0.0
        %1651 = vmatpush2.msra.mxu0 0.0
        %1652 = vmatprep.subr.mxu0 0.0
        %1653 = vmatpush2.msra.mxu0 0.0
        %1654 = vmatprep.subr.mxu0 0.0
        %1655 = vmatpush2.msra.mxu0 0.0
        %1656 = vmatprep.mubr.f32.mxu0 0.0
        %v1657 = vand.u32 %v1500, 4294901760
        %1658 = vmatmul.mubr.f32.gmra.mxu0 %v1657
        %v1659 = vpop.f32.mrf.mxu0
        %v1660 = vadd.f32 %v1579, %v1659
        %v1661 = vpop.f32.mrf.mxu0
        %1662 = vdwg.mxu0
        %1663 = vmatprep.subr.mxu0 0.0
        %1664 = vmatpush1.msra.mxu0 0.0
        %1665 = vmatprep.subr.mxu0 0.0
        %1666 = vmatpush1.msra.mxu0 0.0
        %1667 = vmatprep.subr.mxu0 0.0
        %1668 = vmatpush1.msra.mxu0 0.0
        %1669 = vmatprep.subr.mxu0 0.0
        %1670 = vmatpush1.msra.mxu0 0.0
        %1671 = vmatprep.subr.mxu0 0.0
        %1672 = vmatpush1.msra.mxu0 0.0
        %1673 = vmatprep.subr.mxu0 0.0
        %1674 = vmatpush1.msra.mxu0 0.0
        %1675 = vmatprep.subr.mxu0 0.0
        %1676 = vmatpush1.msra.mxu0 0.0
        %1677 = vmatprep.subr.mxu0 0.0
        %1678 = vmatpush1.msra.mxu0 0.0
        %1679 = vmatprep.subr.mxu0 0.0
        %1680 = vmatpush1.msra.mxu0 0.0
        %1681 = vmatprep.subr.mxu0 0.0
        %1682 = vmatpush1.msra.mxu0 0.0
        %1683 = vmatprep.subr.mxu0 0.0
        %1684 = vmatpush1.msra.mxu0 0.0
        %1685 = vmatprep.subr.mxu0 0.0
        %1686 = vmatpush1.msra.mxu0 0.0
        %1687 = vmatprep.subr.mxu0 0.0
        %1688 = vmatpush1.msra.mxu0 0.0
        %1689 = vmatprep.subr.mxu0 0.0
        %1690 = vmatpush1.msra.mxu0 0.0
        %1691 = vmatprep.subr.mxu0 0.0
        %v1692 = vand.u32 %v1503, 4294901760
        %v1693 = vsub.f32 %v1503, %v1692
        %1694 = vmatpush1.msra.mxu0 %v1693
        %1695 = vmatprep.subr.mxu0 0.0
        %v1696 = vand.u32 %v1486, 4294901760
        %v1697 = vsub.f32 %v1486, %v1696
        %1698 = vmatpush1.msra.mxu0 %v1697
        %1699 = vmatprep.subr.mxu0 0.0
        %1700 = vmatpush2.msra.mxu0 0.0
        %1701 = vmatprep.subr.mxu0 0.0
        %1702 = vmatpush2.msra.mxu0 0.0
        %1703 = vmatprep.subr.mxu0 0.0
        %1704 = vmatpush2.msra.mxu0 0.0
        %1705 = vmatprep.subr.mxu0 0.0
        %1706 = vmatpush2.msra.mxu0 0.0
        %1707 = vmatprep.subr.mxu0 0.0
        %1708 = vmatpush2.msra.mxu0 0.0
        %1709 = vmatprep.subr.mxu0 0.0
        %1710 = vmatpush2.msra.mxu0 0.0
        %1711 = vmatprep.subr.mxu0 0.0
        %1712 = vmatpush2.msra.mxu0 0.0
        %1713 = vmatprep.subr.mxu0 0.0
        %1714 = vmatpush2.msra.mxu0 0.0
        %1715 = vmatprep.subr.mxu0 0.0
        %1716 = vmatpush2.msra.mxu0 0.0
        %1717 = vmatprep.subr.mxu0 0.0
        %1718 = vmatpush2.msra.mxu0 0.0
        %1719 = vmatprep.subr.mxu0 0.0
        %1720 = vmatpush2.msra.mxu0 0.0
        %1721 = vmatprep.subr.mxu0 0.0
        %1722 = vmatpush2.msra.mxu0 0.0
        %1723 = vmatprep.subr.mxu0 0.0
        %1724 = vmatpush2.msra.mxu0 0.0
        %1725 = vmatprep.subr.mxu0 0.0
        %1726 = vmatpush2.msra.mxu0 0.0
        %1727 = vmatprep.subr.mxu0 0.0
        %1728 = vmatpush2.msra.mxu0 0.0
        %1729 = vmatprep.subr.mxu0 0.0
        %1730 = vmatpush2.msra.mxu0 0.0
        %1731 = vmatprep.mubr.f32.mxu0 0.0
        %v1732 = vand.u32 %v1500, 4294901760
        %v1733 = vsub.f32 %v1500, %v1732
        %1734 = vmatmul.mubr.f32.gmra.mxu0 %v1733
        %v1735 = vpop.f32.mrf.mxu0
        %v1736 = vadd.f32 %v1660, %v1735
        %v1737 = vpop.f32.mrf.mxu0
        %1738 = vdwg.mxu0
        %1739 = vmatprep.subr.mxu0 0.0
        %1740 = vmatpush1.msra.mxu0 0.0
        %1741 = vmatprep.subr.mxu0 0.0
        %1742 = vmatpush1.msra.mxu0 0.0
        %1743 = vmatprep.subr.mxu0 0.0
        %1744 = vmatpush1.msra.mxu0 0.0
        %1745 = vmatprep.subr.mxu0 0.0
        %1746 = vmatpush1.msra.mxu0 0.0
        %1747 = vmatprep.subr.mxu0 0.0
        %1748 = vmatpush1.msra.mxu0 0.0
        %1749 = vmatprep.subr.mxu0 0.0
        %1750 = vmatpush1.msra.mxu0 0.0
        %1751 = vmatprep.subr.mxu0 0.0
        %1752 = vmatpush1.msra.mxu0 0.0
        %1753 = vmatprep.subr.mxu0 0.0
        %1754 = vmatpush1.msra.mxu0 0.0
        %1755 = vmatprep.subr.mxu0 0.0
        %1756 = vmatpush1.msra.mxu0 0.0
        %1757 = vmatprep.subr.mxu0 0.0
        %1758 = vmatpush1.msra.mxu0 0.0
        %1759 = vmatprep.subr.mxu0 0.0
        %1760 = vmatpush1.msra.mxu0 0.0
        %1761 = vmatprep.subr.mxu0 0.0
        %1762 = vmatpush1.msra.mxu0 0.0
        %1763 = vmatprep.subr.mxu0 0.0
        %1764 = vmatpush1.msra.mxu0 0.0
        %1765 = vmatprep.subr.mxu0 0.0
        %1766 = vmatpush1.msra.mxu0 0.0
        %1767 = vmatprep.subr.mxu0 0.0
        %v1768 = vand.u32 %v1503, 4294901760
        %1769 = vmatpush1.msra.mxu0 %v1768
        %1770 = vmatprep.subr.mxu0 0.0
        %v1771 = vand.u32 %v1486, 4294901760
        %1772 = vmatpush1.msra.mxu0 %v1771
        %1773 = vmatprep.subr.mxu0 0.0
        %1774 = vmatpush2.msra.mxu0 0.0
        %1775 = vmatprep.subr.mxu0 0.0
        %1776 = vmatpush2.msra.mxu0 0.0
        %1777 = vmatprep.subr.mxu0 0.0
        %1778 = vmatpush2.msra.mxu0 0.0
        %1779 = vmatprep.subr.mxu0 0.0
        %1780 = vmatpush2.msra.mxu0 0.0
        %1781 = vmatprep.subr.mxu0 0.0
        %1782 = vmatpush2.msra.mxu0 0.0
        %1783 = vmatprep.subr.mxu0 0.0
        %1784 = vmatpush2.msra.mxu0 0.0
        %1785 = vmatprep.subr.mxu0 0.0
        %1786 = vmatpush2.msra.mxu0 0.0
        %1787 = vmatprep.subr.mxu0 0.0
        %1788 = vmatpush2.msra.mxu0 0.0
        %1789 = vmatprep.subr.mxu0 0.0
        %1790 = vmatpush2.msra.mxu0 0.0
        %1791 = vmatprep.subr.mxu0 0.0
        %1792 = vmatpush2.msra.mxu0 0.0
        %1793 = vmatprep.subr.mxu0 0.0
        %1794 = vmatpush2.msra.mxu0 0.0
        %1795 = vmatprep.subr.mxu0 0.0
        %1796 = vmatpush2.msra.mxu0 0.0
        %1797 = vmatprep.subr.mxu0 0.0
        %1798 = vmatpush2.msra.mxu0 0.0
        %1799 = vmatprep.subr.mxu0 0.0
        %1800 = vmatpush2.msra.mxu0 0.0
        %1801 = vmatprep.subr.mxu0 0.0
        %1802 = vmatpush2.msra.mxu0 0.0
        %1803 = vmatprep.subr.mxu0 0.0
        %1804 = vmatpush2.msra.mxu0 0.0
        %1805 = vmatprep.mubr.f32.mxu0 0.0
        %v1806 = vand.u32 %v1500, 4294901760
        %v1807 = vsub.f32 %v1500, %v1806
        %v1808 = vand.u32 %v1807, 4294901760
        %1809 = vmatmul.mubr.f32.gmra.mxu0 %v1808
        %v1810 = vpop.f32.mrf.mxu0
        %v1811 = vadd.f32 %v1736, %v1810
        %v1812 = vpop.f32.mrf.mxu0
        %1813 = vdwg.mxu0
        %1814 = vmatprep.subr.mxu0 0.0
        %1815 = vmatpush1.msra.mxu0 0.0
        %1816 = vmatprep.subr.mxu0 0.0
        %1817 = vmatpush1.msra.mxu0 0.0
        %1818 = vmatprep.subr.mxu0 0.0
        %1819 = vmatpush1.msra.mxu0 0.0
        %1820 = vmatprep.subr.mxu0 0.0
        %1821 = vmatpush1.msra.mxu0 0.0
        %1822 = vmatprep.subr.mxu0 0.0
        %1823 = vmatpush1.msra.mxu0 0.0
        %1824 = vmatprep.subr.mxu0 0.0
        %1825 = vmatpush1.msra.mxu0 0.0
        %1826 = vmatprep.subr.mxu0 0.0
        %1827 = vmatpush1.msra.mxu0 0.0
        %1828 = vmatprep.subr.mxu0 0.0
        %1829 = vmatpush1.msra.mxu0 0.0
        %1830 = vmatprep.subr.mxu0 0.0
        %1831 = vmatpush1.msra.mxu0 0.0
        %1832 = vmatprep.subr.mxu0 0.0
        %1833 = vmatpush1.msra.mxu0 0.0
        %1834 = vmatprep.subr.mxu0 0.0
        %1835 = vmatpush1.msra.mxu0 0.0
        %1836 = vmatprep.subr.mxu0 0.0
        %1837 = vmatpush1.msra.mxu0 0.0
        %1838 = vmatprep.subr.mxu0 0.0
        %1839 = vmatpush1.msra.mxu0 0.0
        %1840 = vmatprep.subr.mxu0 0.0
        %1841 = vmatpush1.msra.mxu0 0.0
        %1842 = vmatprep.subr.mxu0 0.0
        %v1843 = vand.u32 %v1503, 4294901760
        %v1844 = vsub.f32 %v1503, %v1843
        %v1845 = vand.u32 %v1844, 4294901760
        %1846 = vmatpush1.msra.mxu0 %v1845
        %1847 = vmatprep.subr.mxu0 0.0
        %v1848 = vand.u32 %v1486, 4294901760
        %v1849 = vsub.f32 %v1486, %v1848
        %v1850 = vand.u32 %v1849, 4294901760
        %1851 = vmatpush1.msra.mxu0 %v1850
        %1852 = vmatprep.subr.mxu0 0.0
        %1853 = vmatpush2.msra.mxu0 0.0
        %1854 = vmatprep.subr.mxu0 0.0
        %1855 = vmatpush2.msra.mxu0 0.0
        %1856 = vmatprep.subr.mxu0 0.0
        %1857 = vmatpush2.msra.mxu0 0.0
        %1858 = vmatprep.subr.mxu0 0.0
        %1859 = vmatpush2.msra.mxu0 0.0
        %1860 = vmatprep.subr.mxu0 0.0
        %1861 = vmatpush2.msra.mxu0 0.0
        %1862 = vmatprep.subr.mxu0 0.0
        %1863 = vmatpush2.msra.mxu0 0.0
        %1864 = vmatprep.subr.mxu0 0.0
        %1865 = vmatpush2.msra.mxu0 0.0
        %1866 = vmatprep.subr.mxu0 0.0
        %1867 = vmatpush2.msra.mxu0 0.0
        %1868 = vmatprep.subr.mxu0 0.0
        %1869 = vmatpush2.msra.mxu0 0.0
        %1870 = vmatprep.subr.mxu0 0.0
        %1871 = vmatpush2.msra.mxu0 0.0
        %1872 = vmatprep.subr.mxu0 0.0
        %1873 = vmatpush2.msra.mxu0 0.0
        %1874 = vmatprep.subr.mxu0 0.0
        %1875 = vmatpush2.msra.mxu0 0.0
        %1876 = vmatprep.subr.mxu0 0.0
        %1877 = vmatpush2.msra.mxu0 0.0
        %1878 = vmatprep.subr.mxu0 0.0
        %1879 = vmatpush2.msra.mxu0 0.0
        %1880 = vmatprep.subr.mxu0 0.0
        %1881 = vmatpush2.msra.mxu0 0.0
        %1882 = vmatprep.subr.mxu0 0.0
        %1883 = vmatpush2.msra.mxu0 0.0
        %1884 = vmatprep.mubr.f32.mxu0 0.0
        %v1885 = vand.u32 %v1500, 4294901760
        %1886 = vmatmul.mubr.f32.gmra.mxu0 %v1885
        %v1887 = vpop.f32.mrf.mxu0
        %v1888 = vadd.f32 %v1811, %v1887
        %v1889 = vpop.f32.mrf.mxu0
        %1890 = vdwg.mxu0
        %1891 = vmatprep.subr.mxu0 0.0
        %1892 = vmatpush1.msra.mxu0 0.0
        %1893 = vmatprep.subr.mxu0 0.0
        %1894 = vmatpush1.msra.mxu0 0.0
        %1895 = vmatprep.subr.mxu0 0.0
        %1896 = vmatpush1.msra.mxu0 0.0
        %1897 = vmatprep.subr.mxu0 0.0
        %1898 = vmatpush1.msra.mxu0 0.0
        %1899 = vmatprep.subr.mxu0 0.0
        %1900 = vmatpush1.msra.mxu0 0.0
        %1901 = vmatprep.subr.mxu0 0.0
        %1902 = vmatpush1.msra.mxu0 0.0
        %1903 = vmatprep.subr.mxu0 0.0
        %1904 = vmatpush1.msra.mxu0 0.0
        %1905 = vmatprep.subr.mxu0 0.0
        %1906 = vmatpush1.msra.mxu0 0.0
        %1907 = vmatprep.subr.mxu0 0.0
        %1908 = vmatpush1.msra.mxu0 0.0
        %1909 = vmatprep.subr.mxu0 0.0
        %1910 = vmatpush1.msra.mxu0 0.0
        %1911 = vmatprep.subr.mxu0 0.0
        %1912 = vmatpush1.msra.mxu0 0.0
        %1913 = vmatprep.subr.mxu0 0.0
        %1914 = vmatpush1.msra.mxu0 0.0
        %1915 = vmatprep.subr.mxu0 0.0
        %1916 = vmatpush1.msra.mxu0 0.0
        %1917 = vmatprep.subr.mxu0 0.0
        %1918 = vmatpush1.msra.mxu0 0.0
        %1919 = vmatprep.subr.mxu0 0.0
        %v1920 = vand.u32 %v1503, 4294901760
        %1921 = vmatpush1.msra.mxu0 %v1920
        %1922 = vmatprep.subr.mxu0 0.0
        %v1923 = vand.u32 %v1486, 4294901760
        %1924 = vmatpush1.msra.mxu0 %v1923
        %1925 = vmatprep.subr.mxu0 0.0
        %1926 = vmatpush2.msra.mxu0 0.0
        %1927 = vmatprep.subr.mxu0 0.0
        %1928 = vmatpush2.msra.mxu0 0.0
        %1929 = vmatprep.subr.mxu0 0.0
        %1930 = vmatpush2.msra.mxu0 0.0
        %1931 = vmatprep.subr.mxu0 0.0
        %1932 = vmatpush2.msra.mxu0 0.0
        %1933 = vmatprep.subr.mxu0 0.0
        %1934 = vmatpush2.msra.mxu0 0.0
        %1935 = vmatprep.subr.mxu0 0.0
        %1936 = vmatpush2.msra.mxu0 0.0
        %1937 = vmatprep.subr.mxu0 0.0
        %1938 = vmatpush2.msra.mxu0 0.0
        %1939 = vmatprep.subr.mxu0 0.0
        %1940 = vmatpush2.msra.mxu0 0.0
        %1941 = vmatprep.subr.mxu0 0.0
        %1942 = vmatpush2.msra.mxu0 0.0
        %1943 = vmatprep.subr.mxu0 0.0
        %1944 = vmatpush2.msra.mxu0 0.0
        %1945 = vmatprep.subr.mxu0 0.0
        %1946 = vmatpush2.msra.mxu0 0.0
        %1947 = vmatprep.subr.mxu0 0.0
        %1948 = vmatpush2.msra.mxu0 0.0
        %1949 = vmatprep.subr.mxu0 0.0
        %1950 = vmatpush2.msra.mxu0 0.0
        %1951 = vmatprep.subr.mxu0 0.0
        %1952 = vmatpush2.msra.mxu0 0.0
        %1953 = vmatprep.subr.mxu0 0.0
        %1954 = vmatpush2.msra.mxu0 0.0
        %1955 = vmatprep.subr.mxu0 0.0
        %1956 = vmatpush2.msra.mxu0 0.0
        %1957 = vmatprep.mubr.f32.mxu0 0.0
        %v1958 = vand.u32 %v1500, 4294901760
        %1959 = vmatmul.mubr.f32.gmra.mxu0 %v1958
        %v1960 = vpop.f32.mrf.mxu0
        %v1961 = vadd.f32 %v1888, %v1960
        %v1962 = vpop.f32.mrf.mxu0
        %1963 = vdwg.mxu0
        %1964 = vst [vmem:[%s322] sm:$0x1] %v1961
        %s1965 = sand.u32 %s227, 1
        %s1966 = scalar_lea.sflag [#allocation4], %s1965
        %s1967 = sand.u32 %s227, 1
        %s1968 = scalar_lea.vmem [#allocation3], %s1967
        // Predicated region
        $region57: #{tpu_custom_call.1} parent=55 // pred_check
          %p1969 = pneg %p237
        $region58: #{tpu_custom_call.1} parent=55 // pred_check_branch
          %1971 = sbr.rel (%p1969) target = $region60
        $region59: #{tpu_custom_call.1} parent=55 // pred_region
          %s1973 = ssub.s32 16, 16
          %1974 = vsyncadd %s1966, %s1973
          %s1975 = smul.addr %s25, 16
          %s1976 = scalar_lea.hbm %s9, %s1975
          %s1978 = sshll.u32 %s1968, 4
          %s1979 = int_to_ptr.vmem [resolvable:$true] %s1978
          %1981 = dma.vmem_to_hbm [thread:$0]  %s1979, 16, %s1976, %s1966
        $region60: #{tpu_custom_call.1} parent=55 // pred_fallthru
          _
      $region56: #{tpu_custom_call.1} parent=5 // pred_fallthru
        _
      %p1982 = scmp.le.s32.totalorder 2, %s20
      // Predicated region
      $region61: #{tpu_custom_call.1} parent=5 // pred_check
        %p1983 = pneg %p1982
      $region62: #{tpu_custom_call.1} parent=5 // pred_check_branch
        %1985 = sbr.rel (%p1983) target = $region64
      $region63: #{tpu_custom_call.1} parent=5 // pred_region
        %s1986 = ssub.s32 %s20, 2
        // Predicated region
        $region65: #{tpu_custom_call.1} parent=63 // pred_check
          %p1987 = pneg %p243
        $region66: #{tpu_custom_call.1} parent=63 // pred_check_branch
          %1989 = sbr.rel (%p1987) target = $region68
        $region67: #{tpu_custom_call.1} parent=63 // pred_region
          %s1990 = sand.u32 %s228, 1
          %s1991 = scalar_lea.sflag [#allocation4], %s1990
          %s1992 = sand.u32 %s228, 1
          %s1993 = scalar_lea.vmem [#allocation3], %s1992
          %1994 = dma.done %s1991, 16
        $region68: #{tpu_custom_call.1} parent=63 // pred_fallthru
          _
      $region64: #{tpu_custom_call.1} parent=5 // pred_fallthru
        _
    $region6: #{tpu_custom_call.1} parent=1 // loop_footer
      %s24 = sadd.s32 1, %s20
    $region7: #{tpu_custom_call.1} parent=1 // loop_footer_branch
      %19 = sbr.rel target = $region3
    $region8: #{tpu_custom_call.1} parent=1 // loop_exit
      _
    %1995 = vsyncpa [#allocation4], 1
    %s1996 = scalar_lea.sflag [#allocation4], 1
    %1997 = vsyncpa %s1996, 1

</llo_original>
